<compile_context>
chip_gen: v7x
topology: tpu7x:2x2x1
jax: 0.10.0
libtpu: 0.0.40
codegen_flags: <defaults>
</compile_context>

<pallas_src>
import functools

import jax
import jax.numpy as jnp
from jax import lax
from jax.experimental import pallas as pl
from jax.experimental.pallas import tpu as pltpu


# Channel count at/above which the 3x3 convs switch from one fused im2col
# matmul (contraction dim 9*C, good for tiny C) to 9 per-tap matmuls
# accumulated in f32 (no (M, 9C) temporary once C alone already fills the MXU
# contraction dimension).
_IM2COL_MAX_C = 128


def _conv3x3_from_padded(pad_ref, w_ref, b_ref, *, H, W, C, Cout):
  """3x3 'same' conv from an (H+2, W+2, C) zero-padded activation scratch.

  w_ref is (9*C, Cout) bf16 with rows ordered (dy, dx, c); b_ref is (1, Cout)
  f32.  Returns the (H*W, Cout) f32 conv output with bias added.
  """
  f32, bf16 = jnp.float32, jnp.bfloat16
  M = H * W
  taps = [(dy, dx) for dy in range(3) for dx in range(3)]
  if C < _IM2COL_MAX_C:
    # Fused im2col: one MXU matmul with contraction dim 9*C.  Slices are cast
    # to bf16 before the lane-concat, so only the bf16 (M, 9C) patch matrix is
    # materialized (no separate f32 copy + full-size cast pass).
    patches = jnp.concatenate(
        [pad_ref[dy:dy + H, dx:dx + W, :].reshape(M, C).astype(bf16)
         for dy, dx in taps], axis=1)                              # (M, 9*C)
    out = jnp.dot(patches, w_ref[...], preferred_element_type=f32)
  else:
    # Per-tap accumulation: 9 matmuls with contraction dim C, no im2col
    # temporary at all (keeps VMEM/store traffic bounded for large C).
    out = jnp.zeros((M, Cout), f32)
    for t, (dy, dx) in enumerate(taps):
      out += jnp.dot(
          pad_ref[dy:dy + H, dx:dx + W, :].reshape(M, C).astype(bf16),
          w_ref[t * C:(t + 1) * C, :], preferred_element_type=f32)
  return out + b_ref[...]


# --------------------------------- kernel -----------------------------------
def _dis_block_kernel(*refs, H, W, Cin, Chid, Cout, downsample, learnable_sc,
                      lane_dense_out):
  f32, bf16 = jnp.float32, jnp.bfloat16
  M = H * W
  Ho, Wo = (H // 2, W // 2) if downsample else (H, W)

  if learnable_sc:
    (x_ref, w1_ref, b1_ref, w2_ref, b2_ref, wsc_ref, bsc_ref,
     o_ref, *scr) = refs
  else:
    (x_ref, w1_ref, b1_ref, w2_ref, b2_ref, o_ref, *scr) = refs
    wsc_ref = bsc_ref = None
  xpad_s, hpad_s, *scr = scr
  ystage_s = scr[0] if scr else None

  # Zero only the 1-pixel border of the padded activation scratches (the
  # interior is fully overwritten every step).  O(H+W) work instead of a full
  # (H+2)*(W+2)*C store pass; redone every step so it is megacore-safe.
  def _zero_border(s):
    c = s.shape[-1]
    z_row = jnp.zeros((1, W + 2, c), s.dtype)
    z_col = jnp.zeros((H + 2, 1, c), s.dtype)
    s[0:1, :, :] = z_row
    s[H + 1:H + 2, :, :] = z_row
    s[:, 0:1, :] = z_col
    s[:, W + 1:W + 2, :] = z_col

  _zero_border(xpad_s)
  _zero_border(hpad_s)

  x = x_ref[0]                                        # (H, W, Cin) f32

  # ---- residual path: c2(ReLU(c1(ReLU(x)))) --------------------------------
  xpad_s[1:H + 1, 1:W + 1, :] = jnp.maximum(x, 0.0)   # padding of ReLU(x) is 0
  h1 = _conv3x3_from_padded(xpad_s, w1_ref, b1_ref,
                            H=H, W=W, C=Cin, Cout=Chid)            # (M, Chid)
  hpad_s[1:H + 1, 1:W + 1, :] = jnp.maximum(h1, 0.0).reshape(H, W, Chid)
  h2 = _conv3x3_from_padded(hpad_s, w2_ref, b2_ref,
                            H=H, W=W, C=Chid, Cout=Cout)           # (M, Cout)

  # ---- shortcut: 1x1 conv on the *un-activated* input, or identity ---------
  x2d = x.reshape(M, Cin)
  if learnable_sc:
    sc = jnp.dot(x2d.astype(bf16), wsc_ref[...],
                 preferred_element_type=f32) + bsc_ref[...]
  else:
    sc = x2d                                   # identity (requires Cin == Cout)

  y = h2 + sc                                                      # (M, Cout)

  # ---- optional AvgPool2d(2) + output store ---------------------------------
  # When downsample=True the 0.25 pooling scale has been folded into w2/b2 and
  # wsc/bsc in the wrapper, so pooling here is a plain 2x2 sum.
  if downsample:
    y4 = y.reshape(H // 2, 2, W, Cout)
    yrows = y4[:, 0] + y4[:, 1]                                    # (Ho, W, Cout)
  else:
    yrows = y.reshape(H, W, Cout)                                  # (Ho, W, Cout)

  if lane_dense_out:
    # Lane-dense output: o_ref block is (1, Ho, Wo*Cout), so the final store
    # and the output DMA use rows Wo*Cout wide instead of Cout (<128) wide.
    ystage_s[...] = yrows
    if downsample:
      cols = [ystage_s[:, 2 * w, :] + ystage_s[:, 2 * w + 1, :]    # width pool
              for w in range(Wo)]
    else:
      cols = [ystage_s[:, w, :] for w in range(Wo)]
    o_ref[0] = jnp.concatenate(cols, axis=-1).astype(o_ref.dtype)
  else:
    if downsample:
      ystage_s[...] = yrows
      even = ystage_s[:, pl.ds(0, Wo, stride=2), :]
      odd = ystage_s[:, pl.ds(1, Wo, stride=2), :]
      o_ref[0] = (even + odd).astype(o_ref.dtype)
    else:
      o_ref[0] = yrows.astype(o_ref.dtype)


# --------------------------------- wrapper ----------------------------------
def _vmem_limit_bytes():
  # Generation-conditional VMEM budget: leave headroom under the physical
  # capacity (128 MiB on v5e/v6e -> ~112 MiB; 64 MiB per core on v7x -> ~48 MiB).
  cap = 64 * 1024 * 1024          # conservative fallback if the query fails
  try:
    cap = int(pltpu.get_tpu_info().vmem_capacity_bytes)
  except Exception:
    pass
  return int(max(32 * 1024 * 1024,
                 min(cap - 16 * 1024 * 1024, 112 * 1024 * 1024)))


def dis_block_forward_nhwc(x_nhwc, params, *, downsample, learnable_sc=None):
  """Pallas forward for DisBlock on NHWC input (preferred: no transposes)."""
  w1, b1, w2, b2, wsc, bsc = params            # w1, w2: HWIO;  wsc: (Cin, Cout)
  N, H, W, Cin = x_nhwc.shape
  Chid = w1.shape[-1]
  Cout = w2.shape[-1]
  if learnable_sc is None:
    learnable_sc = (Cin != Cout) or downsample
  if downsample:
    assert learnable_sc, "downsample implies a learnable 1x1 shortcut"
    assert H % 2 == 0 and W % 2 == 0
  if not learnable_sc:
    assert Cin == Cout, "identity shortcut requires Cin == Cout"
  Ho, Wo = (H // 2, W // 2) if downsample else (H, W)
  lane_dense_out = Cout < 128     # early discriminator blocks: small Cout

  # Weight prep (f32 math first, then bf16 for the MXU; biases stay f32 and
  # are added post-accumulation).
  w1f = w1.reshape(9 * Cin, Chid).astype(jnp.float32)   # (dy,dx,cin)-major rows
  w2f = w2.reshape(9 * Chid, Cout).astype(jnp.float32)
  wscf = wsc.astype(jnp.float32)
  b1f = b1.reshape(1, Chid).astype(jnp.float32)
  b2f = b2.reshape(1, Cout).astype(jnp.float32)
  bscf = bsc.reshape(1, Cout).astype(jnp.float32)
  if downsample:
    # AvgPool2d(2) is linear: fold its 0.25 scale into everything feeding the
    # pooled sum, so the kernel's pool is a plain add (no VPU multiply pass).
    w2f, b2f, wscf, bscf = 0.25 * w2f, 0.25 * b2f, 0.25 * wscf, 0.25 * bscf

  x = x_nhwc.astype(jnp.float32)
  ops = [x, w1f.astype(jnp.bfloat16), b1f, w2f.astype(jnp.bfloat16), b2f]
  in_specs = [
      pl.BlockSpec((1, H, W, Cin), lambda n: (n, 0, 0, 0)),
      pl.BlockSpec((9 * Cin, Chid), lambda n: (0, 0)),   # resident (const map)
      pl.BlockSpec((1, Chid), lambda n: (0, 0)),
      pl.BlockSpec((9 * Chid, Cout), lambda n: (0, 0)),
      pl.BlockSpec((1, Cout), lambda n: (0, 0)),
  ]
  if learnable_sc:
    ops += [wscf.astype(jnp.bfloat16), bscf]
    in_specs += [pl.BlockSpec((Cin, Cout), lambda n: (0, 0)),
                 pl.BlockSpec((1, Cout), lambda n: (0, 0))]
  # Note: weight/bias blocks are grid-invariant; single-buffering them
  # (pipeline_mode=pl.Buffered(1)) would halve their VMEM footprint, but the
  # knob is left off here until verified on all target toolchains.

  scratch = [
      pltpu.VMEM((H + 2, W + 2, Cin), jnp.float32),   # zero-padded ReLU(x)
      pltpu.VMEM((H + 2, W + 2, Chid), jnp.float32),  # zero-padded ReLU(c1(.))
  ]
  if lane_dense_out or downsample:
    scratch.append(pltpu.VMEM((Ho, W, Cout), jnp.float32))  # output staging

  if lane_dense_out:
    out_shape = jax.ShapeDtypeStruct((N, Ho, Wo * Cout), jnp.float32)
    out_specs = pl.BlockSpec((1, Ho, Wo * Cout), lambda n: (n, 0, 0))
  else:
    out_shape = jax.ShapeDtypeStruct((N, Ho, Wo, Cout), jnp.float32)
    out_specs = pl.BlockSpec((1, Ho, Wo, Cout), lambda n: (n, 0, 0, 0))

  kernel = functools.partial(_dis_block_kernel, H=H, W=W, Cin=Cin, Chid=Chid,
                             Cout=Cout, downsample=downsample,
                             learnable_sc=learnable_sc,
                             lane_dense_out=lane_dense_out)
  out = pl.pallas_call(
      kernel,
      out_shape=out_shape,
      grid_spec=pltpu.PrefetchScalarGridSpec(
          num_scalar_prefetch=0,
          grid=(N,),                                   # one image per step
          in_specs=in_specs,
          out_specs=out_specs,
          scratch_shapes=scratch),
      compiler_params=pltpu.CompilerParams(
          dimension_semantics=("parallel",),           # v7x: split grid over TCs
          vmem_limit_bytes=_vmem_limit_bytes()),
  )(*ops)
  if lane_dense_out:
    out = out.reshape(N, Ho, Wo, Cout)
  return out


def dis_block_forward(x_nchw, params, *, downsample, learnable_sc=None):
  """NCHW (PyTorch-convention) wrapper.  NHWC callers should use
  dis_block_forward_nhwc directly and skip both transposes."""
  x_nhwc = jnp.transpose(x_nchw, (0, 2, 3, 1))
  out = dis_block_forward_nhwc(x_nhwc, params, downsample=downsample,
                               learnable_sc=learnable_sc)
  return jnp.transpose(out, (0, 3, 1, 2))


# ----------------------------- parameter setup ------------------------------
def _spectral_normalize(w_hwio, n_iter=100):
  """Divide the conv weight by its largest singular value."""
  # TODO(synk): torch's spectral_norm does one un-converged power-iteration
  # step per forward with stateful u/v buffers; here sigma is computed
  # deterministically at parameter-setup time.
  w2d = w_hwio.reshape(-1, w_hwio.shape[-1])
  u = jnp.ones((w2d.shape[1],), jnp.float32)

  def body(_, u):
    v = w2d @ u
    v = v / (jnp.linalg.norm(v) + 1e-12)
    u = w2d.T @ v
    return u / (jnp.linalg.norm(u) + 1e-12)

  u = lax.fori_loop(0, n_iter, body, u)
  sigma = jnp.linalg.norm(w2d @ u)
  return w_hwio / sigma


def init_params(key, Cin, Chid, Cout):
  ks = jax.random.split(key, 6)

  def conv_w(k, kh, kw, cin, cout):
    bound = (cin * kh * kw) ** -0.5
    w = jax.random.uniform(k, (kh, kw, cin, cout), jnp.float32, -bound, bound)
    return _spectral_normalize(w)

  def conv_b(k, kh, kw, cin, cout):
    bound = (cin * kh * kw) ** -0.5
    return jax.random.uniform(k, (cout,), jnp.float32, -bound, bound)

  w1 = conv_w(ks[0], 3, 3, Cin, Chid)
  b1 = conv_b(ks[1], 3, 3, Cin, Chid)
  w2 = conv_w(ks[2], 3, 3, Chid, Cout)
  b2 = conv_b(ks[3], 3, 3, Chid, Cout)
  wsc = conv_w(ks[4], 1, 1, Cin, Cout).reshape(Cin, Cout)
  bsc = conv_b(ks[5], 1, 1, Cin, Cout)
  return (w1, b1, w2, b2, wsc, bsc)


# ------------------------------ pure-JAX reference --------------------------
def ref_forward(x_nchw, params, *, downsample, learnable_sc=None):
  w1, b1, w2, b2, wsc, bsc = params
  Cin, Cout = wsc.shape
  if learnable_sc is None:
    learnable_sc = (Cin != Cout) or downsample
  x = jnp.transpose(x_nchw, (0, 2, 3, 1)).astype(jnp.float32)
  dn = ('NHWC', 'HWIO', 'NHWC')

  def conv(h, w, b, pad):
    out = lax.conv_general_dilated(h, w, (1, 1), [(pad, pad), (pad, pad)],
                                   dimension_numbers=dn,
                                   precision=lax.Precision.HIGHEST)
    return out + b.reshape(1, 1, 1, -1)

  pool = lambda t: lax.reduce_window(t, 0.0, lax.add, (1, 2, 2, 1),
                                     (1, 2, 2, 1), 'VALID') * 0.25
  h = jnp.maximum(x, 0.0)
  h = conv(h, w1, b1, 1)
  h = jnp.maximum(h, 0.0)
  h = conv(h, w2, b2, 1)
  if downsample:
    h = pool(h)
  if learnable_sc:
    sc = conv(x, wsc.reshape(1, 1, Cin, Cout), bsc, 0)
    if downsample:
      sc = pool(sc)
  else:
    sc = x
  return jnp.transpose(h + sc, (0, 3, 1, 2))


if __name__ == "__main__":
  key = jax.random.PRNGKey(0)
  k1, k2, k3, k4 = jax.random.split(key, 4)

  # bf16 MXU inputs (f32 accumulation) -> compare against the f32 reference
  # with a correspondingly relaxed tolerance.
  TOL = dict(atol=3e-2, rtol=3e-2)

  # Config 1: downsample + channel change -> learnable 1x1 shortcut,
  # lane-dense (Wo*Cout) output path, pool scale folded into weights.
  N, Cin, Cout, H, W = 2, 4, 8, 16, 16
  x = jax.random.normal(k1, (N, Cin, H, W), jnp.float32)
  params = init_params(k2, Cin, Cin, Cout)      # hidden_channels = in_channels
  out = jax.block_until_ready(dis_block_forward(x, params, downsample=True))
  ref = ref_forward(x, params, downsample=True)
  assert out.shape == (N, Cout, H // 2, W // 2), out.shape
  assert jnp.allclose(out, ref, **TOL), float(jnp.max(jnp.abs(out - ref)))

  # Config 2: Cin == Cout, no downsample -> identity shortcut (learnable_sc=False).
  C2 = 8
  x2 = jax.random.normal(k3, (N, C2, H, W), jnp.float32)
  params2 = init_params(k4, C2, C2, C2)
  out2 = jax.block_until_ready(dis_block_forward(x2, params2, downsample=False))
  ref2 = ref_forward(x2, params2, downsample=False)
  assert out2.shape == (N, C2, H, W), out2.shape
  assert jnp.allclose(out2, ref2, **TOL), float(jnp.max(jnp.abs(out2 - ref2)))

  print("KERNEL_OK")
</pallas_src>

<mosaic_0001>
module attributes {stable_mosaic.version = 11 : i64} {
  func.func @_dis_block_kernel(%arg0: i32, %arg1: memref<1x16x16x4xf32, #tpu.memory_space<vmem>>, %arg2: memref<36x4xbf16, #tpu.memory_space<vmem>>, %arg3: memref<1x4xf32, #tpu.memory_space<vmem>>, %arg4: memref<36x8xbf16, #tpu.memory_space<vmem>>, %arg5: memref<1x8xf32, #tpu.memory_space<vmem>>, %arg6: memref<4x8xbf16, #tpu.memory_space<vmem>>, %arg7: memref<1x8xf32, #tpu.memory_space<vmem>>, %arg8: memref<1x8x64xf32, #tpu.memory_space<vmem>>, %arg9: memref<18x18x4xf32, #tpu.memory_space<vmem>>, %arg10: memref<18x18x4xf32, #tpu.memory_space<vmem>>, %arg11: memref<8x16x8xf32, #tpu.memory_space<vmem>>) attributes {dimension_semantics = [#tpu.dimension_semantics<parallel>], iteration_bounds = array<i64: 2>, scalar_prefetch = 0 : i64, scratch_operands = 3 : i64, tpu.core_type = #tpu.core_type<tc>, window_params = [{transform_indices = @transform_0, window_bounds = array<i64: 1, 16, 16, 4>}, {pipeline_mode = #tpu.pipeline_mode<synchronous>, transform_indices = @transform_1, window_bounds = array<i64: 36, 4>}, {pipeline_mode = #tpu.pipeline_mode<synchronous>, transform_indices = @transform_2, window_bounds = array<i64: 1, 4>}, {pipeline_mode = #tpu.pipeline_mode<synchronous>, transform_indices = @transform_3, window_bounds = array<i64: 36, 8>}, {pipeline_mode = #tpu.pipeline_mode<synchronous>, transform_indices = @transform_4, window_bounds = array<i64: 1, 8>}, {pipeline_mode = #tpu.pipeline_mode<synchronous>, transform_indices = @transform_5, window_bounds = array<i64: 4, 8>}, {pipeline_mode = #tpu.pipeline_mode<synchronous>, transform_indices = @transform_6, window_bounds = array<i64: 1, 8>}, {transform_indices = @transform_7, window_bounds = array<i64: 1, 8, 64>}]} {
    %cst = arith.constant 0.000000e+00 : f32
    %0 = vector.broadcast %cst : f32 to vector<1x18x4xf32>
    %cst_0 = arith.constant 0.000000e+00 : f32
    %1 = vector.broadcast %cst_0 : f32 to vector<18x1x4xf32>
    %c0 = arith.constant 0 : index
    %c0_1 = arith.constant 0 : index
    %c0_2 = arith.constant 0 : index
    %2 = vector.load %arg9[%c0, %c0_1, %c0_2] : memref<18x18x4xf32, #tpu.memory_space<vmem>>, vector<1x18x4xf32>
    tpu.vector_store %arg9[%c0, %c0_1, %c0_2], %0 {strides = array<i32>} : memref<18x18x4xf32, #tpu.memory_space<vmem>>, vector<1x18x4xf32>,
    %c17 = arith.constant 17 : index
    %c0_3 = arith.constant 0 : index
    %c0_4 = arith.constant 0 : index
    %3 = vector.load %arg9[%c17, %c0_3, %c0_4] : memref<18x18x4xf32, #tpu.memory_space<vmem>>, vector<1x18x4xf32>
    tpu.vector_store %arg9[%c17, %c0_3, %c0_4], %0 {strides = array<i32>} : memref<18x18x4xf32, #tpu.memory_space<vmem>>, vector<1x18x4xf32>,
    %c0_5 = arith.constant 0 : index
    %c0_6 = arith.constant 0 : index
    %c0_7 = arith.constant 0 : index
    %4 = vector.load %arg9[%c0_5, %c0_6, %c0_7] : memref<18x18x4xf32, #tpu.memory_space<vmem>>, vector<18x1x4xf32>
    tpu.vector_store %arg9[%c0_5, %c0_6, %c0_7], %1 {strides = array<i32>} : memref<18x18x4xf32, #tpu.memory_space<vmem>>, vector<18x1x4xf32>,
    %c0_8 = arith.constant 0 : index
    %c17_9 = arith.constant 17 : index
    %c0_10 = arith.constant 0 : index
    %5 = vector.load %arg9[%c0_8, %c17_9, %c0_10] : memref<18x18x4xf32, #tpu.memory_space<vmem>>, vector<18x1x4xf32>
    tpu.vector_store %arg9[%c0_8, %c17_9, %c0_10], %1 {strides = array<i32>} : memref<18x18x4xf32, #tpu.memory_space<vmem>>, vector<18x1x4xf32>,
    %cst_11 = arith.constant 0.000000e+00 : f32
    %6 = vector.broadcast %cst_11 : f32 to vector<1x18x4xf32>
    %cst_12 = arith.constant 0.000000e+00 : f32
    %7 = vector.broadcast %cst_12 : f32 to vector<18x1x4xf32>
    %c0_13 = arith.constant 0 : index
    %c0_14 = arith.constant 0 : index
    %c0_15 = arith.constant 0 : index
    %8 = vector.load %arg10[%c0_13, %c0_14, %c0_15] : memref<18x18x4xf32, #tpu.memory_space<vmem>>, vector<1x18x4xf32>
    tpu.vector_store %arg10[%c0_13, %c0_14, %c0_15], %6 {strides = array<i32>} : memref<18x18x4xf32, #tpu.memory_space<vmem>>, vector<1x18x4xf32>,
    %c17_16 = arith.constant 17 : index
    %c0_17 = arith.constant 0 : index
    %c0_18 = arith.constant 0 : index
    %9 = vector.load %arg10[%c17_16, %c0_17, %c0_18] : memref<18x18x4xf32, #tpu.memory_space<vmem>>, vector<1x18x4xf32>
    tpu.vector_store %arg10[%c17_16, %c0_17, %c0_18], %6 {strides = array<i32>} : memref<18x18x4xf32, #tpu.memory_space<vmem>>, vector<1x18x4xf32>,
    %c0_19 = arith.constant 0 : index
    %c0_20 = arith.constant 0 : index
    %c0_21 = arith.constant 0 : index
    %10 = vector.load %arg10[%c0_19, %c0_20, %c0_21] : memref<18x18x4xf32, #tpu.memory_space<vmem>>, vector<18x1x4xf32>
    tpu.vector_store %arg10[%c0_19, %c0_20, %c0_21], %7 {strides = array<i32>} : memref<18x18x4xf32, #tpu.memory_space<vmem>>, vector<18x1x4xf32>,
    %c0_22 = arith.constant 0 : index
    %c17_23 = arith.constant 17 : index
    %c0_24 = arith.constant 0 : index
    %11 = vector.load %arg10[%c0_22, %c17_23, %c0_24] : memref<18x18x4xf32, #tpu.memory_space<vmem>>, vector<18x1x4xf32>
    tpu.vector_store %arg10[%c0_22, %c17_23, %c0_24], %7 {strides = array<i32>} : memref<18x18x4xf32, #tpu.memory_space<vmem>>, vector<18x1x4xf32>,
    %c0_25 = arith.constant 0 : index
    %c0_26 = arith.constant 0 : index
    %c0_27 = arith.constant 0 : index
    %c0_28 = arith.constant 0 : index
    %12 = vector.load %arg1[%c0_25, %c0_26, %c0_27, %c0_28] : memref<1x16x16x4xf32, #tpu.memory_space<vmem>>, vector<1x16x16x4xf32>
    %13 = vector.shape_cast %12 : vector<1x16x16x4xf32> to vector<16x16x4xf32>
    %cst_29 = arith.constant 0.000000e+00 : f32
    %14 = vector.broadcast %cst_29 : f32 to vector<16x16x4xf32>
    %15 = arith.maximumf %13, %14 : vector<16x16x4xf32>
    %c1 = arith.constant 1 : index
    %c1_30 = arith.constant 1 : index
    %c0_31 = arith.constant 0 : index
    %16 = vector.load %arg9[%c1, %c1_30, %c0_31] : memref<18x18x4xf32, #tpu.memory_space<vmem>>, vector<16x16x4xf32>
    tpu.vector_store %arg9[%c1, %c1_30, %c0_31], %15 {strides = array<i32>} : memref<18x18x4xf32, #tpu.memory_space<vmem>>, vector<16x16x4xf32>,
    %c0_32 = arith.constant 0 : index
    %c0_33 = arith.constant 0 : index
    %c0_34 = arith.constant 0 : index
    %17 = vector.load %arg9[%c0_32, %c0_33, %c0_34] : memref<18x18x4xf32, #tpu.memory_space<vmem>>, vector<16x16x4xf32>
    %18 = vector.shape_cast %17 : vector<16x16x4xf32> to vector<256x4xf32>
    %19 = arith.truncf %18 : vector<256x4xf32> to vector<256x4xbf16>
    %c0_35 = arith.constant 0 : index
    %c1_36 = arith.constant 1 : index
    %c0_37 = arith.constant 0 : index
    %20 = vector.load %arg9[%c0_35, %c1_36, %c0_37] : memref<18x18x4xf32, #tpu.memory_space<vmem>>, vector<16x16x4xf32>
    %21 = vector.shape_cast %20 : vector<16x16x4xf32> to vector<256x4xf32>
    %22 = arith.truncf %21 : vector<256x4xf32> to vector<256x4xbf16>
    %c0_38 = arith.constant 0 : index
    %c2 = arith.constant 2 : index
    %c0_39 = arith.constant 0 : index
    %23 = vector.load %arg9[%c0_38, %c2, %c0_39] : memref<18x18x4xf32, #tpu.memory_space<vmem>>, vector<16x16x4xf32>
    %24 = vector.shape_cast %23 : vector<16x16x4xf32> to vector<256x4xf32>
    %25 = arith.truncf %24 : vector<256x4xf32> to vector<256x4xbf16>
    %c1_40 = arith.constant 1 : index
    %c0_41 = arith.constant 0 : index
    %c0_42 = arith.constant 0 : index
    %26 = vector.load %arg9[%c1_40, %c0_41, %c0_42] : memref<18x18x4xf32, #tpu.memory_space<vmem>>, vector<16x16x4xf32>
    %27 = vector.shape_cast %26 : vector<16x16x4xf32> to vector<256x4xf32>
    %28 = arith.truncf %27 : vector<256x4xf32> to vector<256x4xbf16>
    %c1_43 = arith.constant 1 : index
    %c1_44 = arith.constant 1 : index
    %c0_45 = arith.constant 0 : index
    %29 = vector.load %arg9[%c1_43, %c1_44, %c0_45] : memref<18x18x4xf32, #tpu.memory_space<vmem>>, vector<16x16x4xf32>
    %30 = vector.shape_cast %29 : vector<16x16x4xf32> to vector<256x4xf32>
    %31 = arith.truncf %30 : vector<256x4xf32> to vector<256x4xbf16>
    %c1_46 = arith.constant 1 : index
    %c2_47 = arith.constant 2 : index
    %c0_48 = arith.constant 0 : index
    %32 = vector.load %arg9[%c1_46, %c2_47, %c0_48] : memref<18x18x4xf32, #tpu.memory_space<vmem>>, vector<16x16x4xf32>
    %33 = vector.shape_cast %32 : vector<16x16x4xf32> to vector<256x4xf32>
    %34 = arith.truncf %33 : vector<256x4xf32> to vector<256x4xbf16>
    %c2_49 = arith.constant 2 : index
    %c0_50 = arith.constant 0 : index
    %c0_51 = arith.constant 0 : index
    %35 = vector.load %arg9[%c2_49, %c0_50, %c0_51] : memref<18x18x4xf32, #tpu.memory_space<vmem>>, vector<16x16x4xf32>
    %36 = vector.shape_cast %35 : vector<16x16x4xf32> to vector<256x4xf32>
    %37 = arith.truncf %36 : vector<256x4xf32> to vector<256x4xbf16>
    %c2_52 = arith.constant 2 : index
    %c1_53 = arith.constant 1 : index
    %c0_54 = arith.constant 0 : index
    %38 = vector.load %arg9[%c2_52, %c1_53, %c0_54] : memref<18x18x4xf32, #tpu.memory_space<vmem>>, vector<16x16x4xf32>
    %39 = vector.shape_cast %38 : vector<16x16x4xf32> to vector<256x4xf32>
    %40 = arith.truncf %39 : vector<256x4xf32> to vector<256x4xbf16>
    %c2_55 = arith.constant 2 : index
    %c2_56 = arith.constant 2 : index
    %c0_57 = arith.constant 0 : index
    %41 = vector.load %arg9[%c2_55, %c2_56, %c0_57] : memref<18x18x4xf32, #tpu.memory_space<vmem>>, vector<16x16x4xf32>
    %42 = vector.shape_cast %41 : vector<16x16x4xf32> to vector<256x4xf32>
    %43 = arith.truncf %42 : vector<256x4xf32> to vector<256x4xbf16>
    %44 = tpu.concatenate %19, %22, %25, %28, %31, %34, %37, %40, %43 in 1 : vector<256x4xbf16>, vector<256x4xbf16>, vector<256x4xbf16>, vector<256x4xbf16>, vector<256x4xbf16>, vector<256x4xbf16>, vector<256x4xbf16>, vector<256x4xbf16>, vector<256x4xbf16> -> vector<256x36xbf16>
    %c0_58 = arith.constant 0 : index
    %c0_59 = arith.constant 0 : index
    %45 = vector.load %arg2[%c0_58, %c0_59] : memref<36x4xbf16, #tpu.memory_space<vmem>>, vector<36x4xbf16>
    %cst_60 = arith.constant dense<0.000000e+00> : vector<256x4xf32>
    %46 = tpu.matmul %44, %45, %cst_60 {dimension_numbers = #tpu.dot_dimension_numbers<[1], [0], [0], [1], [0, 0, 1, 1], [], []>} : vector<256x36xbf16>, vector<36x4xbf16>, vector<256x4xf32> -> vector<256x4xf32>
    %c0_61 = arith.constant 0 : index
    %c0_62 = arith.constant 0 : index
    %47 = vector.load %arg3[%c0_61, %c0_62] : memref<1x4xf32, #tpu.memory_space<vmem>>, vector<1x4xf32>
    %48 = vector.broadcast %47 : vector<1x4xf32> to vector<256x4xf32>
    %49 = arith.addf %46, %48 : vector<256x4xf32>
    %cst_63 = arith.constant 0.000000e+00 : f32
    %50 = vector.broadcast %cst_63 : f32 to vector<256x4xf32>
    %51 = arith.maximumf %49, %50 : vector<256x4xf32>
    %52 = vector.shape_cast %51 : vector<256x4xf32> to vector<16x16x4xf32>
    %c1_64 = arith.constant 1 : index
    %c1_65 = arith.constant 1 : index
    %c0_66 = arith.constant 0 : index
    %53 = vector.load %arg10[%c1_64, %c1_65, %c0_66] : memref<18x18x4xf32, #tpu.memory_space<vmem>>, vector<16x16x4xf32>
    tpu.vector_store %arg10[%c1_64, %c1_65, %c0_66], %52 {strides = array<i32>} : memref<18x18x4xf32, #tpu.memory_space<vmem>>, vector<16x16x4xf32>,
    %c0_67 = arith.constant 0 : index
    %c0_68 = arith.constant 0 : index
    %c0_69 = arith.constant 0 : index
    %54 = vector.load %arg10[%c0_67, %c0_68, %c0_69] : memref<18x18x4xf32, #tpu.memory_space<vmem>>, vector<16x16x4xf32>
    %55 = vector.shape_cast %54 : vector<16x16x4xf32> to vector<256x4xf32>
    %56 = arith.truncf %55 : vector<256x4xf32> to vector<256x4xbf16>
    %c0_70 = arith.constant 0 : index
    %c1_71 = arith.constant 1 : index
    %c0_72 = arith.constant 0 : index
    %57 = vector.load %arg10[%c0_70, %c1_71, %c0_72] : memref<18x18x4xf32, #tpu.memory_space<vmem>>, vector<16x16x4xf32>
    %58 = vector.shape_cast %57 : vector<16x16x4xf32> to vector<256x4xf32>
    %59 = arith.truncf %58 : vector<256x4xf32> to vector<256x4xbf16>
    %c0_73 = arith.constant 0 : index
    %c2_74 = arith.constant 2 : index
    %c0_75 = arith.constant 0 : index
    %60 = vector.load %arg10[%c0_73, %c2_74, %c0_75] : memref<18x18x4xf32, #tpu.memory_space<vmem>>, vector<16x16x4xf32>
    %61 = vector.shape_cast %60 : vector<16x16x4xf32> to vector<256x4xf32>
    %62 = arith.truncf %61 : vector<256x4xf32> to vector<256x4xbf16>
    %c1_76 = arith.constant 1 : index
    %c0_77 = arith.constant 0 : index
    %c0_78 = arith.constant 0 : index
    %63 = vector.load %arg10[%c1_76, %c0_77, %c0_78] : memref<18x18x4xf32, #tpu.memory_space<vmem>>, vector<16x16x4xf32>
    %64 = vector.shape_cast %63 : vector<16x16x4xf32> to vector<256x4xf32>
    %65 = arith.truncf %64 : vector<256x4xf32> to vector<256x4xbf16>
    %c1_79 = arith.constant 1 : index
    %c1_80 = arith.constant 1 : index
    %c0_81 = arith.constant 0 : index
    %66 = vector.load %arg10[%c1_79, %c1_80, %c0_81] : memref<18x18x4xf32, #tpu.memory_space<vmem>>, vector<16x16x4xf32>
    %67 = vector.shape_cast %66 : vector<16x16x4xf32> to vector<256x4xf32>
    %68 = arith.truncf %67 : vector<256x4xf32> to vector<256x4xbf16>
    %c1_82 = arith.constant 1 : index
    %c2_83 = arith.constant 2 : index
    %c0_84 = arith.constant 0 : index
    %69 = vector.load %arg10[%c1_82, %c2_83, %c0_84] : memref<18x18x4xf32, #tpu.memory_space<vmem>>, vector<16x16x4xf32>
    %70 = vector.shape_cast %69 : vector<16x16x4xf32> to vector<256x4xf32>
    %71 = arith.truncf %70 : vector<256x4xf32> to vector<256x4xbf16>
    %c2_85 = arith.constant 2 : index
    %c0_86 = arith.constant 0 : index
    %c0_87 = arith.constant 0 : index
    %72 = vector.load %arg10[%c2_85, %c0_86, %c0_87] : memref<18x18x4xf32, #tpu.memory_space<vmem>>, vector<16x16x4xf32>
    %73 = vector.shape_cast %72 : vector<16x16x4xf32> to vector<256x4xf32>
    %74 = arith.truncf %73 : vector<256x4xf32> to vector<256x4xbf16>
    %c2_88 = arith.constant 2 : index
    %c1_89 = arith.constant 1 : index
    %c0_90 = arith.constant 0 : index
    %75 = vector.load %arg10[%c2_88, %c1_89, %c0_90] : memref<18x18x4xf32, #tpu.memory_space<vmem>>, vector<16x16x4xf32>
    %76 = vector.shape_cast %75 : vector<16x16x4xf32> to vector<256x4xf32>
    %77 = arith.truncf %76 : vector<256x4xf32> to vector<256x4xbf16>
    %c2_91 = arith.constant 2 : index
    %c2_92 = arith.constant 2 : index
    %c0_93 = arith.constant 0 : index
    %78 = vector.load %arg10[%c2_91, %c2_92, %c0_93] : memref<18x18x4xf32, #tpu.memory_space<vmem>>, vector<16x16x4xf32>
    %79 = vector.shape_cast %78 : vector<16x16x4xf32> to vector<256x4xf32>
    %80 = arith.truncf %79 : vector<256x4xf32> to vector<256x4xbf16>
    %81 = tpu.concatenate %56, %59, %62, %65, %68, %71, %74, %77, %80 in 1 : vector<256x4xbf16>, vector<256x4xbf16>, vector<256x4xbf16>, vector<256x4xbf16>, vector<256x4xbf16>, vector<256x4xbf16>, vector<256x4xbf16>, vector<256x4xbf16>, vector<256x4xbf16> -> vector<256x36xbf16>
    %c0_94 = arith.constant 0 : index
    %c0_95 = arith.constant 0 : index
    %82 = vector.load %arg4[%c0_94, %c0_95] : memref<36x8xbf16, #tpu.memory_space<vmem>>, vector<36x8xbf16>
    %cst_96 = arith.constant dense<0.000000e+00> : vector<256x8xf32>
    %83 = tpu.matmul %81, %82, %cst_96 {dimension_numbers = #tpu.dot_dimension_numbers<[1], [0], [0], [1], [0, 0, 1, 1], [], []>} : vector<256x36xbf16>, vector<36x8xbf16>, vector<256x8xf32> -> vector<256x8xf32>
    %c0_97 = arith.constant 0 : index
    %c0_98 = arith.constant 0 : index
    %84 = vector.load %arg5[%c0_97, %c0_98] : memref<1x8xf32, #tpu.memory_space<vmem>>, vector<1x8xf32>
    %85 = vector.broadcast %84 : vector<1x8xf32> to vector<256x8xf32>
    %86 = arith.addf %83, %85 : vector<256x8xf32>
    %87 = vector.shape_cast %13 : vector<16x16x4xf32> to vector<256x4xf32>
    %88 = arith.truncf %87 : vector<256x4xf32> to vector<256x4xbf16>
    %c0_99 = arith.constant 0 : index
    %c0_100 = arith.constant 0 : index
    %89 = vector.load %arg6[%c0_99, %c0_100] : memref<4x8xbf16, #tpu.memory_space<vmem>>, vector<4x8xbf16>
    %cst_101 = arith.constant dense<0.000000e+00> : vector<256x8xf32>
    %90 = tpu.matmul %88, %89, %cst_101 {dimension_numbers = #tpu.dot_dimension_numbers<[1], [0], [0], [1], [0, 0, 1, 1], [], []>} : vector<256x4xbf16>, vector<4x8xbf16>, vector<256x8xf32> -> vector<256x8xf32>
    %c0_102 = arith.constant 0 : index
    %c0_103 = arith.constant 0 : index
    %91 = vector.load %arg7[%c0_102, %c0_103] : memref<1x8xf32, #tpu.memory_space<vmem>>, vector<1x8xf32>
    %92 = vector.broadcast %91 : vector<1x8xf32> to vector<256x8xf32>
    %93 = arith.addf %90, %92 : vector<256x8xf32>
    %94 = arith.addf %86, %93 : vector<256x8xf32>
    %95 = vector.shape_cast %94 : vector<256x8xf32> to vector<8x2x16x8xf32>
    %96 = vector.extract_strided_slice %95 {offsets = [0, 0, 0, 0], sizes = [8, 1, 16, 8], strides = [1, 1, 1, 1]} : vector<8x2x16x8xf32> to vector<8x1x16x8xf32>
    %97 = vector.shape_cast %96 : vector<8x1x16x8xf32> to vector<8x16x8xf32>
    %98 = vector.extract_strided_slice %95 {offsets = [0, 1, 0, 0], sizes = [8, 1, 16, 8], strides = [1, 1, 1, 1]} : vector<8x2x16x8xf32> to vector<8x1x16x8xf32>
    %99 = vector.shape_cast %98 : vector<8x1x16x8xf32> to vector<8x16x8xf32>
    %100 = arith.addf %97, %99 : vector<8x16x8xf32>
    %c0_104 = arith.constant 0 : index
    %c0_105 = arith.constant 0 : index
    %c0_106 = arith.constant 0 : index
    %101 = vector.load %arg11[%c0_104, %c0_105, %c0_106] : memref<8x16x8xf32, #tpu.memory_space<vmem>>, vector<8x16x8xf32>
    tpu.vector_store %arg11[%c0_104, %c0_105, %c0_106], %100 {strides = array<i32>} : memref<8x16x8xf32, #tpu.memory_space<vmem>>, vector<8x16x8xf32>,
    %c0_107 = arith.constant 0 : index
    %c0_108 = arith.constant 0 : index
    %c0_109 = arith.constant 0 : index
    %102 = vector.load %arg11[%c0_107, %c0_108, %c0_109] : memref<8x16x8xf32, #tpu.memory_space<vmem>>, vector<8x1x8xf32>
    %103 = vector.shape_cast %102 : vector<8x1x8xf32> to vector<8x8xf32>
    %c0_110 = arith.constant 0 : index
    %c1_111 = arith.constant 1 : index
    %c0_112 = arith.constant 0 : index
    %104 = vector.load %arg11[%c0_110, %c1_111, %c0_112] : memref<8x16x8xf32, #tpu.memory_space<vmem>>, vector<8x1x8xf32>
    %105 = vector.shape_cast %104 : vector<8x1x8xf32> to vector<8x8xf32>
    %106 = arith.addf %103, %105 : vector<8x8xf32>
    %c0_113 = arith.constant 0 : index
    %c2_114 = arith.constant 2 : index
    %c0_115 = arith.constant 0 : index
    %107 = vector.load %arg11[%c0_113, %c2_114, %c0_115] : memref<8x16x8xf32, #tpu.memory_space<vmem>>, vector<8x1x8xf32>
    %108 = vector.shape_cast %107 : vector<8x1x8xf32> to vector<8x8xf32>
    %c0_116 = arith.constant 0 : index
    %c3 = arith.constant 3 : index
    %c0_117 = arith.constant 0 : index
    %109 = vector.load %arg11[%c0_116, %c3, %c0_117] : memref<8x16x8xf32, #tpu.memory_space<vmem>>, vector<8x1x8xf32>
    %110 = vector.shape_cast %109 : vector<8x1x8xf32> to vector<8x8xf32>
    %111 = arith.addf %108, %110 : vector<8x8xf32>
    %c0_118 = arith.constant 0 : index
    %c4 = arith.constant 4 : index
    %c0_119 = arith.constant 0 : index
    %112 = vector.load %arg11[%c0_118, %c4, %c0_119] : memref<8x16x8xf32, #tpu.memory_space<vmem>>, vector<8x1x8xf32>
    %113 = vector.shape_cast %112 : vector<8x1x8xf32> to vector<8x8xf32>
    %c0_120 = arith.constant 0 : index
    %c5 = arith.constant 5 : index
    %c0_121 = arith.constant 0 : index
    %114 = vector.load %arg11[%c0_120, %c5, %c0_121] : memref<8x16x8xf32, #tpu.memory_space<vmem>>, vector<8x1x8xf32>
    %115 = vector.shape_cast %114 : vector<8x1x8xf32> to vector<8x8xf32>
    %116 = arith.addf %113, %115 : vector<8x8xf32>
    %c0_122 = arith.constant 0 : index
    %c6 = arith.constant 6 : index
    %c0_123 = arith.constant 0 : index
    %117 = vector.load %arg11[%c0_122, %c6, %c0_123] : memref<8x16x8xf32, #tpu.memory_space<vmem>>, vector<8x1x8xf32>
    %118 = vector.shape_cast %117 : vector<8x1x8xf32> to vector<8x8xf32>
    %c0_124 = arith.constant 0 : index
    %c7 = arith.constant 7 : index
    %c0_125 = arith.constant 0 : index
    %119 = vector.load %arg11[%c0_124, %c7, %c0_125] : memref<8x16x8xf32, #tpu.memory_space<vmem>>, vector<8x1x8xf32>
    %120 = vector.shape_cast %119 : vector<8x1x8xf32> to vector<8x8xf32>
    %121 = arith.addf %118, %120 : vector<8x8xf32>
    %c0_126 = arith.constant 0 : index
    %c8 = arith.constant 8 : index
    %c0_127 = arith.constant 0 : index
    %122 = vector.load %arg11[%c0_126, %c8, %c0_127] : memref<8x16x8xf32, #tpu.memory_space<vmem>>, vector<8x1x8xf32>
    %123 = vector.shape_cast %122 : vector<8x1x8xf32> to vector<8x8xf32>
    %c0_128 = arith.constant 0 : index
    %c9 = arith.constant 9 : index
    %c0_129 = arith.constant 0 : index
    %124 = vector.load %arg11[%c0_128, %c9, %c0_129] : memref<8x16x8xf32, #tpu.memory_space<vmem>>, vector<8x1x8xf32>
    %125 = vector.shape_cast %124 : vector<8x1x8xf32> to vector<8x8xf32>
    %126 = arith.addf %123, %125 : vector<8x8xf32>
    %c0_130 = arith.constant 0 : index
    %c10 = arith.constant 10 : index
    %c0_131 = arith.constant 0 : index
    %127 = vector.load %arg11[%c0_130, %c10, %c0_131] : memref<8x16x8xf32, #tpu.memory_space<vmem>>, vector<8x1x8xf32>
    %128 = vector.shape_cast %127 : vector<8x1x8xf32> to vector<8x8xf32>
    %c0_132 = arith.constant 0 : index
    %c11 = arith.constant 11 : index
    %c0_133 = arith.constant 0 : index
    %129 = vector.load %arg11[%c0_132, %c11, %c0_133] : memref<8x16x8xf32, #tpu.memory_space<vmem>>, vector<8x1x8xf32>
    %130 = vector.shape_cast %129 : vector<8x1x8xf32> to vector<8x8xf32>
    %131 = arith.addf %128, %130 : vector<8x8xf32>
    %c0_134 = arith.constant 0 : index
    %c12 = arith.constant 12 : index
    %c0_135 = arith.constant 0 : index
    %132 = vector.load %arg11[%c0_134, %c12, %c0_135] : memref<8x16x8xf32, #tpu.memory_space<vmem>>, vector<8x1x8xf32>
    %133 = vector.shape_cast %132 : vector<8x1x8xf32> to vector<8x8xf32>
    %c0_136 = arith.constant 0 : index
    %c13 = arith.constant 13 : index
    %c0_137 = arith.constant 0 : index
    %134 = vector.load %arg11[%c0_136, %c13, %c0_137] : memref<8x16x8xf32, #tpu.memory_space<vmem>>, vector<8x1x8xf32>
    %135 = vector.shape_cast %134 : vector<8x1x8xf32> to vector<8x8xf32>
    %136 = arith.addf %133, %135 : vector<8x8xf32>
    %c0_138 = arith.constant 0 : index
    %c14 = arith.constant 14 : index
    %c0_139 = arith.constant 0 : index
    %137 = vector.load %arg11[%c0_138, %c14, %c0_139] : memref<8x16x8xf32, #tpu.memory_space<vmem>>, vector<8x1x8xf32>
    %138 = vector.shape_cast %137 : vector<8x1x8xf32> to vector<8x8xf32>
    %c0_140 = arith.constant 0 : index
    %c15 = arith.constant 15 : index
    %c0_141 = arith.constant 0 : index
    %139 = vector.load %arg11[%c0_140, %c15, %c0_141] : memref<8x16x8xf32, #tpu.memory_space<vmem>>, vector<8x1x8xf32>
    %140 = vector.shape_cast %139 : vector<8x1x8xf32> to vector<8x8xf32>
    %141 = arith.addf %138, %140 : vector<8x8xf32>
    %142 = tpu.concatenate %106, %111, %116, %121, %126, %131, %136, %141 in 1 : vector<8x8xf32>, vector<8x8xf32>, vector<8x8xf32>, vector<8x8xf32>, vector<8x8xf32>, vector<8x8xf32>, vector<8x8xf32>, vector<8x8xf32> -> vector<8x64xf32>
    %c0_142 = arith.constant 0 : index
    %c0_143 = arith.constant 0 : index
    %c0_144 = arith.constant 0 : index
    %143 = vector.load %arg8[%c0_142, %c0_143, %c0_144] : memref<1x8x64xf32, #tpu.memory_space<vmem>>, vector<1x8x64xf32>
    %144 = vector.shape_cast %143 : vector<1x8x64xf32> to vector<8x64xf32>
    %145 = vector.shape_cast %142 : vector<8x64xf32> to vector<1x8x64xf32>
    tpu.vector_store %arg8[%c0_142, %c0_143, %c0_144], %145 {strides = array<i32>} : memref<1x8x64xf32, #tpu.memory_space<vmem>>, vector<1x8x64xf32>,
    return
  }
  func.func @transform_0(%arg0: i32) -> (i32, i32, i32, i32) {
    %c0_i32 = arith.constant 0 : i32
    %c0_i32_0 = arith.constant 0 : i32
    %c0_i32_1 = arith.constant 0 : i32
    %c0_i32_2 = arith.constant 0 : i32
    return %arg0, %c0_i32, %c0_i32_0, %c0_i32_1 : i32, i32, i32, i32
  }
  func.func @transform_1(%arg0: i32) -> (i32, i32) {
    %c0_i32 = arith.constant 0 : i32
    %c0_i32_0 = arith.constant 0 : i32
    %c0_i32_1 = arith.constant 0 : i32
    return %c0_i32, %c0_i32_0 : i32, i32
  }
  func.func @transform_2(%arg0: i32) -> (i32, i32) {
    %c0_i32 = arith.constant 0 : i32
    %c0_i32_0 = arith.constant 0 : i32
    %c0_i32_1 = arith.constant 0 : i32
    return %c0_i32, %c0_i32_0 : i32, i32
  }
  func.func @transform_3(%arg0: i32) -> (i32, i32) {
    %c0_i32 = arith.constant 0 : i32
    %c0_i32_0 = arith.constant 0 : i32
    %c0_i32_1 = arith.constant 0 : i32
    return %c0_i32, %c0_i32_0 : i32, i32
  }
  func.func @transform_4(%arg0: i32) -> (i32, i32) {
    %c0_i32 = arith.constant 0 : i32
    %c0_i32_0 = arith.constant 0 : i32
    %c0_i32_1 = arith.constant 0 : i32
    return %c0_i32, %c0_i32_0 : i32, i32
  }
  func.func @transform_5(%arg0: i32) -> (i32, i32) {
    %c0_i32 = arith.constant 0 : i32
    %c0_i32_0 = arith.constant 0 : i32
    %c0_i32_1 = arith.constant 0 : i32
    return %c0_i32, %c0_i32_0 : i32, i32
  }
  func.func @transform_6(%arg0: i32) -> (i32, i32) {
    %c0_i32 = arith.constant 0 : i32
    %c0_i32_0 = arith.constant 0 : i32
    %c0_i32_1 = arith.constant 0 : i32
    return %c0_i32, %c0_i32_0 : i32, i32
  }
  func.func @transform_7(%arg0: i32) -> (i32, i32, i32) {
    %c0_i32 = arith.constant 0 : i32
    %c0_i32_0 = arith.constant 0 : i32
    %c0_i32_1 = arith.constant 0 : i32
    return %arg0, %c0_i32, %c0_i32_0 : i32, i32, i32
  }
}

</mosaic_0001>

<llo_original>
// kernel: tpu_custom_call.1
$region0: #{tpu_custom_call.1}
  #allocation0 [shape = 'u32[]', space=smem, size = 0x4, offset = 0x4, fixed_abs, tag = 'smem constant byte address 0x4 - core index']
  #allocation1 [shape = 'u32[144,128]{1,0:T(1,128)}', space=vmem, size = 0x12000, scoped, tag = 'internal scratch']
  #allocation2 [shape = 'f32[18,18,4]{2,1,0:T(8,128)}', space=vmem, size = 0x36000, scoped, tag = 'scratch operand']
  #allocation3 [shape = 'f32[18,18,4]{2,1,0:T(8,128)}', space=vmem, size = 0x36000, scoped, tag = 'scratch operand']
  #allocation4 [shape = 'f32[8,16,8]{2,1,0:T(8,128)}', space=vmem, size = 0x10000, scoped, tag = 'scratch operand']
  %s0 = inlined_call_operand.vmem [shape: f32[2,16,16,4], index: 0, kind: input, shape index: {}]
  %s1 = inlined_call_operand.vmem [shape: bf16[36,4], index: 1, kind: input, shape index: {}]
  %s2 = inlined_call_operand.vmem [shape: f32[1,4], index: 2, kind: input, shape index: {}]
  %s3 = inlined_call_operand.vmem [shape: bf16[36,8], index: 3, kind: input, shape index: {}]
  %s4 = inlined_call_operand.vmem [shape: f32[1,8], index: 4, kind: input, shape index: {}]
  %s5 = inlined_call_operand.vmem [shape: bf16[4,8], index: 5, kind: input, shape index: {}]
  %s6 = inlined_call_operand.vmem [shape: f32[1,8], index: 6, kind: input, shape index: {}]
  %s7 = inlined_call_operand.hbm [shape: f32[2,8,64], index: 7, kind: output, shape index: {}]
  %s8 = sld [smem:[#allocation0]]
  $region61: #{tpu_custom_call.1} parent=0
    _
  %s10 = ssub.s32 1, %s8
  %s11 = scalar_select 0, %s10, %s8
  $region1: #{tpu_custom_call.1} parent=0
    #allocation5 [shape = 'u8[8192]{0}', space=vmem, size = 0x2000, scoped, tag = 'output window, operand 0']
    #allocation6 [shape = 's32[2]{0}', space=sflag, size = 0x8, scoped, tag = 'scoped memory for tpu_custom_call.1']
    %12 = vsyncpa [#allocation6], 0
    %s13 = scalar_lea.sflag [#allocation6], 1
    %14 = vsyncpa %s13, 0
    loop: start=0, step=1, limit=4
    $region2: #{tpu_custom_call.1} parent=1 // loop_pre_header
      _
    $region3: #{tpu_custom_call.1} parent=1 // loop_header
      %s16 = sphi 0, %s20
      %p17 = scmp.ge.s32.totalorder %s16, 4
      %s26 = sphi 0, %s28
      %s29 = sphi 0, %s26
      %s30 = sphi 0, %s29
      %s46 = sphi 0, %s30
      %s50 = sphi 0, %s50
      %s52 = sphi 0, %s50
      %s53 = sphi 0, %s52
      %s67 = sphi 0, %s53
      %s71 = sphi 0, %s71
      %s73 = sphi 0, %s71
      %s74 = sphi 0, %s73
      %s88 = sphi 0, %s74
      %s92 = sphi 0, %s92
      %s94 = sphi 0, %s92
      %s95 = sphi 0, %s94
      %s109 = sphi 0, %s95
      %s113 = sphi 0, %s113
      %s115 = sphi 0, %s113
      %s116 = sphi 0, %s115
      %s130 = sphi 0, %s116
      %s134 = sphi 0, %s134
      %s136 = sphi 0, %s134
      %s137 = sphi 0, %s136
      %s151 = sphi 0, %s137
      %s155 = sphi 0, %s155
      %s157 = sphi 0, %s155
      %s158 = sphi 0, %s157
      %s172 = sphi 0, %s158
      %s178 = sphi 0, %s180
      %s181 = sphi 0, %s178
      %s182 = sphi 0, %s181
      %s198 = sphi 0, %s182
    $region4: #{tpu_custom_call.1} parent=1 // loop_header_branch
      %19 = sbr.rel (%p17) target = $region8
    $region5: #{tpu_custom_call.1} parent=1 // loop_body
      %s21 = ssub.s32 %s16, 1
      %s22 = ssub.s32 %s16, 2
      %s23 = sadd.s32 %s16, 1
      %s24 = ssub.s32 %s16, %s23
      %p25 = scmp.eq.s32.totalorder %s24, 0
      %s27 = sadd.s32 %s26, 1
      %s28 = scalar_select %p25, %s26, %s27
      %p31 = pneg %p25
      %p32 = scmp.eq.s32.totalorder %s16, 1
      %p33 = por %p31, %p32
      %p34 = scmp.ne.s32.totalorder %s26, %s29
      %p35 = scmp.eq.s32.totalorder %s16, 0
      %p36 = por %p34, %p35
      %p37 = scmp.ne.s32.totalorder %s26, %s29
      %p38 = scmp.eq.s32.totalorder %s21, 1
      %p39 = por %p37, %p38
      %p40 = scmp.ne.s32.totalorder %s29, %s30
      %p41 = scmp.eq.s32.totalorder %s21, 0
      %p42 = por %p40, %p41
      %p43 = scmp.ne.s32.totalorder %s29, %s30
      %p44 = scmp.eq.s32.totalorder %s22, 1
      %p45 = por %p43, %p44
      %p47 = scmp.ne.s32.totalorder %s30, %s46
      %p48 = scmp.eq.s32.totalorder %s22, 0
      %p49 = por %p47, %p48
      %s51 = sadd.s32 %s50, 1
      %p54 = scmp.eq.s32.totalorder %s16, 1
      %p55 = scmp.ne.s32.totalorder %s50, %s52
      %p56 = scmp.eq.s32.totalorder %s16, 0
      %p57 = por %p55, %p56
      %p58 = scmp.ne.s32.totalorder %s50, %s52
      %p59 = scmp.eq.s32.totalorder %s21, 1
      %p60 = por %p58, %p59
      %p61 = scmp.ne.s32.totalorder %s52, %s53
      %p62 = scmp.eq.s32.totalorder %s21, 0
      %p63 = por %p61, %p62
      %p64 = scmp.ne.s32.totalorder %s52, %s53
      %p65 = scmp.eq.s32.totalorder %s22, 1
      %p66 = por %p64, %p65
      %p68 = scmp.ne.s32.totalorder %s53, %s67
      %p69 = scmp.eq.s32.totalorder %s22, 0
      %p70 = por %p68, %p69
      %s72 = sadd.s32 %s71, 1
      %p75 = scmp.eq.s32.totalorder %s16, 1
      %p76 = scmp.ne.s32.totalorder %s71, %s73
      %p77 = scmp.eq.s32.totalorder %s16, 0
      %p78 = por %p76, %p77
      %p79 = scmp.ne.s32.totalorder %s71, %s73
      %p80 = scmp.eq.s32.totalorder %s21, 1
      %p81 = por %p79, %p80
      %p82 = scmp.ne.s32.totalorder %s73, %s74
      %p83 = scmp.eq.s32.totalorder %s21, 0
      %p84 = por %p82, %p83
      %p85 = scmp.ne.s32.totalorder %s73, %s74
      %p86 = scmp.eq.s32.totalorder %s22, 1
      %p87 = por %p85, %p86
      %p89 = scmp.ne.s32.totalorder %s74, %s88
      %p90 = scmp.eq.s32.totalorder %s22, 0
      %p91 = por %p89, %p90
      %s93 = sadd.s32 %s92, 1
      %p96 = scmp.eq.s32.totalorder %s16, 1
      %p97 = scmp.ne.s32.totalorder %s92, %s94
      %p98 = scmp.eq.s32.totalorder %s16, 0
      %p99 = por %p97, %p98
      %p100 = scmp.ne.s32.totalorder %s92, %s94
      %p101 = scmp.eq.s32.totalorder %s21, 1
      %p102 = por %p100, %p101
      %p103 = scmp.ne.s32.totalorder %s94, %s95
      %p104 = scmp.eq.s32.totalorder %s21, 0
      %p105 = por %p103, %p104
      %p106 = scmp.ne.s32.totalorder %s94, %s95
      %p107 = scmp.eq.s32.totalorder %s22, 1
      %p108 = por %p106, %p107
      %p110 = scmp.ne.s32.totalorder %s95, %s109
      %p111 = scmp.eq.s32.totalorder %s22, 0
      %p112 = por %p110, %p111
      %s114 = sadd.s32 %s113, 1
      %p117 = scmp.eq.s32.totalorder %s16, 1
      %p118 = scmp.ne.s32.totalorder %s113, %s115
      %p119 = scmp.eq.s32.totalorder %s16, 0
      %p120 = por %p118, %p119
      %p121 = scmp.ne.s32.totalorder %s113, %s115
      %p122 = scmp.eq.s32.totalorder %s21, 1
      %p123 = por %p121, %p122
      %p124 = scmp.ne.s32.totalorder %s115, %s116
      %p125 = scmp.eq.s32.totalorder %s21, 0
      %p126 = por %p124, %p125
      %p127 = scmp.ne.s32.totalorder %s115, %s116
      %p128 = scmp.eq.s32.totalorder %s22, 1
      %p129 = por %p127, %p128
      %p131 = scmp.ne.s32.totalorder %s116, %s130
      %p132 = scmp.eq.s32.totalorder %s22, 0
      %p133 = por %p131, %p132
      %s135 = sadd.s32 %s134, 1
      %p138 = scmp.eq.s32.totalorder %s16, 1
      %p139 = scmp.ne.s32.totalorder %s134, %s136
      %p140 = scmp.eq.s32.totalorder %s16, 0
      %p141 = por %p139, %p140
      %p142 = scmp.ne.s32.totalorder %s134, %s136
      %p143 = scmp.eq.s32.totalorder %s21, 1
      %p144 = por %p142, %p143
      %p145 = scmp.ne.s32.totalorder %s136, %s137
      %p146 = scmp.eq.s32.totalorder %s21, 0
      %p147 = por %p145, %p146
      %p148 = scmp.ne.s32.totalorder %s136, %s137
      %p149 = scmp.eq.s32.totalorder %s22, 1
      %p150 = por %p148, %p149
      %p152 = scmp.ne.s32.totalorder %s137, %s151
      %p153 = scmp.eq.s32.totalorder %s22, 0
      %p154 = por %p152, %p153
      %s156 = sadd.s32 %s155, 1
      %p159 = scmp.eq.s32.totalorder %s16, 1
      %p160 = scmp.ne.s32.totalorder %s155, %s157
      %p161 = scmp.eq.s32.totalorder %s16, 0
      %p162 = por %p160, %p161
      %p163 = scmp.ne.s32.totalorder %s155, %s157
      %p164 = scmp.eq.s32.totalorder %s21, 1
      %p165 = por %p163, %p164
      %p166 = scmp.ne.s32.totalorder %s157, %s158
      %p167 = scmp.eq.s32.totalorder %s21, 0
      %p168 = por %p166, %p167
      %p169 = scmp.ne.s32.totalorder %s157, %s158
      %p170 = scmp.eq.s32.totalorder %s22, 1
      %p171 = por %p169, %p170
      %p173 = scmp.ne.s32.totalorder %s158, %s172
      %p174 = scmp.eq.s32.totalorder %s22, 0
      %p175 = por %p173, %p174
      %s176 = ssub.s32 %s16, %s23
      %p177 = scmp.eq.s32.totalorder %s176, 0
      %s179 = sadd.s32 %s178, 1
      %s180 = scalar_select %p177, %s178, %s179
      %p183 = pneg %p177
      %p184 = scmp.eq.s32.totalorder %s16, 1
      %p185 = por %p183, %p184
      %p186 = scmp.ne.s32.totalorder %s178, %s181
      %p187 = scmp.eq.s32.totalorder %s16, 0
      %p188 = por %p186, %p187
      %p189 = scmp.ne.s32.totalorder %s178, %s181
      %p190 = scmp.eq.s32.totalorder %s21, 1
      %p191 = por %p189, %p190
      %p192 = scmp.ne.s32.totalorder %s181, %s182
      %p193 = scmp.eq.s32.totalorder %s21, 0
      %p194 = por %p192, %p193
      %p195 = scmp.ne.s32.totalorder %s181, %s182
      %p196 = scmp.eq.s32.totalorder %s22, 1
      %p197 = por %p195, %p196
      %p199 = scmp.ne.s32.totalorder %s182, %s198
      %p200 = scmp.eq.s32.totalorder %s22, 0
      %p201 = por %p199, %p200
      %p202 = scmp.le.s32.totalorder 1, %s16
      %p203 = scmp.lt.s32.totalorder %s16, 3
      %p204 = pnand %p202, %p203
      %p205 = pneg %p204
      // Predicated region
      $region9: #{tpu_custom_call.1} parent=5 // pred_check
        _
      $region10: #{tpu_custom_call.1} parent=5 // pred_check_branch
        %207 = sbr.rel (%p204) target = $region12
      $region11: #{tpu_custom_call.1} parent=5 // pred_region
        %s208 = ssub.s32 %s16, 1
        // Predicated region
        $region13: #{tpu_custom_call.1} parent=11 // pred_check
          %p209 = pneg %p63
        $region14: #{tpu_custom_call.1} parent=11 // pred_check_branch
          %211 = sbr.rel (%p209) target = $region16
        $region15: #{tpu_custom_call.1} parent=11 // pred_region
          _
        $region16: #{tpu_custom_call.1} parent=11 // pred_fallthru
          _
        // Predicated region
        $region17: #{tpu_custom_call.1} parent=11 // pred_check
          %p212 = pneg %p84
        $region18: #{tpu_custom_call.1} parent=11 // pred_check_branch
          %214 = sbr.rel (%p212) target = $region20
        $region19: #{tpu_custom_call.1} parent=11 // pred_region
          _
        $region20: #{tpu_custom_call.1} parent=11 // pred_fallthru
          _
        // Predicated region
        $region21: #{tpu_custom_call.1} parent=11 // pred_check
          %p215 = pneg %p105
        $region22: #{tpu_custom_call.1} parent=11 // pred_check_branch
          %217 = sbr.rel (%p215) target = $region24
        $region23: #{tpu_custom_call.1} parent=11 // pred_region
          _
        $region24: #{tpu_custom_call.1} parent=11 // pred_fallthru
          _
        // Predicated region
        $region25: #{tpu_custom_call.1} parent=11 // pred_check
          %p218 = pneg %p126
        $region26: #{tpu_custom_call.1} parent=11 // pred_check_branch
          %220 = sbr.rel (%p218) target = $region28
        $region27: #{tpu_custom_call.1} parent=11 // pred_region
          _
        $region28: #{tpu_custom_call.1} parent=11 // pred_fallthru
          _
        // Predicated region
        $region29: #{tpu_custom_call.1} parent=11 // pred_check
          %p221 = pneg %p147
        $region30: #{tpu_custom_call.1} parent=11 // pred_check_branch
          %223 = sbr.rel (%p221) target = $region32
        $region31: #{tpu_custom_call.1} parent=11 // pred_region
          _
        $region32: #{tpu_custom_call.1} parent=11 // pred_fallthru
          _
        // Predicated region
        $region33: #{tpu_custom_call.1} parent=11 // pred_check
          %p224 = pneg %p168
        $region34: #{tpu_custom_call.1} parent=11 // pred_check_branch
          %226 = sbr.rel (%p224) target = $region36
        $region35: #{tpu_custom_call.1} parent=11 // pred_region
          _
        $region36: #{tpu_custom_call.1} parent=11 // pred_fallthru
          _
      $region12: #{tpu_custom_call.1} parent=5 // pred_fallthru
        _
      %p227 = scmp.lt.s32.totalorder %s16, 2
      // Predicated region
      $region37: #{tpu_custom_call.1} parent=5 // pred_check
        %p228 = pneg %p227
      $region38: #{tpu_custom_call.1} parent=5 // pred_check_branch
        %230 = sbr.rel (%p228) target = $region40
      $region39: #{tpu_custom_call.1} parent=5 // pred_region
        // Predicated region
        $region41: #{tpu_custom_call.1} parent=39 // pred_check
          %p231 = pneg %p36
        $region42: #{tpu_custom_call.1} parent=39 // pred_check_branch
          %233 = sbr.rel (%p231) target = $region44
        $region43: #{tpu_custom_call.1} parent=39 // pred_region
          %p234 = scmp.lt.s32.totalorder %s16, 1
          %s235 = scalar_select %p234, %s16, 1
          %s236 = smul.addr %s235, 32
          %s237 = smul.addr %s236, 8
          %s238 = scalar_lea.vmem %s0, %s237
        $region44: #{tpu_custom_call.1} parent=39 // pred_fallthru
          _
      $region40: #{tpu_custom_call.1} parent=5 // pred_fallthru
        _
      %p239 = scmp.le.s32.totalorder 1, %s16
      %p240 = scmp.lt.s32.totalorder %s16, 3
      %p241 = pnand %p239, %p240
      %p242 = pneg %p241
      // Predicated region
      $region45: #{tpu_custom_call.1} parent=5 // pred_check
        _
      $region46: #{tpu_custom_call.1} parent=5 // pred_check_branch
        %244 = sbr.rel (%p241) target = $region48
      $region47: #{tpu_custom_call.1} parent=5 // pred_region
        %s245 = ssub.s32 %s16, 1
        %p246 = scmp.lt.s32.totalorder %s21, 1
        %s247 = scalar_select %p246, %s21, 1
        %s248 = smul.addr %s247, 32
        %s249 = smul.addr %s248, 8
        %s250 = scalar_lea.vmem %s0, %s249
        %p251 = pneg %p42
        %p252 = pneg %p39
        %p253 = pneg %p63
        %p254 = pneg %p60
        %p255 = pneg %p84
        %p256 = pneg %p81
        %p257 = pneg %p105
        %p258 = pneg %p102
        %p259 = pneg %p126
        %p260 = pneg %p123
        %p261 = pneg %p147
        %p262 = pneg %p144
        %p263 = pneg %p168
        %p264 = pneg %p165
        %p265 = pneg %p194
        %p266 = pneg %p191
        %s267 = sand.u32 %s181, 1
        %s268 = scalar_lea.sflag [#allocation6], %s267
        %s269 = sand.u32 %s181, 1
        %s270 = smul.addr %s269, 8
        %s271 = scalar_lea.vmem [#allocation5], %s270
        %p272 = scmp.lt.s32.totalorder %s21, 1
        %s273 = scalar_select %p272, %s21, 1
        %s274 = smul.addr %s273, 32
        %s275 = smul.addr %s274, 8
        %s276 = scalar_lea.vmem %s0, %s275
        %vm278 = vcmask 31744
        %279 = vst.msk [vmem:[#allocation2] sm:$0xff] %vm278, 0.0
        %280 = vst.msk [vmem:[#allocation2 + $0x8] sm:$0xff] %vm278, 0.0
        %vm281 = vcmask 25600
        %282 = vst.msk [vmem:[#allocation2 + $0x10] sm:$0x3] %vm281, 0.0
        %s283 = scalar_lea.vmem [#allocation2], 408
        %284 = vst.msk [vmem:[%s283] sm:$0xff] %vm278, 0.0
        %285 = vst.msk [vmem:[%s283 + $0x8] sm:$0xff] %vm278, 0.0
        %286 = vst.msk [vmem:[%s283 + $0x10] sm:$0x3] %vm281, 0.0
        %vm287 = vcmask 24576
        %288 = vst.msk [vmem:[#allocation2] sm:$0x1] %vm287, 0.0
        %289 = vst.msk [vmem:[#allocation2 + $0x18] sm:$0x1] %vm287, 0.0
        %290 = vst.msk [vmem:[#allocation2 + $0x30] sm:$0x1] %vm287, 0.0
        %291 = vst.msk [vmem:[#allocation2 + $0x48] sm:$0x1] %vm287, 0.0
        %292 = vst.msk [vmem:[#allocation2 + $0x60] sm:$0x1] %vm287, 0.0
        %293 = vst.msk [vmem:[#allocation2 + $0x78] sm:$0x1] %vm287, 0.0
        %294 = vst.msk [vmem:[#allocation2 + $0x90] sm:$0x1] %vm287, 0.0
        %295 = vst.msk [vmem:[#allocation2 + $0xa8] sm:$0x1] %vm287, 0.0
        %296 = vst.msk [vmem:[#allocation2 + $0xc0] sm:$0x1] %vm287, 0.0
        %297 = vst.msk [vmem:[#allocation2 + $0xd8] sm:$0x1] %vm287, 0.0
        %298 = vst.msk [vmem:[#allocation2 + $0xf0] sm:$0x1] %vm287, 0.0
        %299 = vst.msk [vmem:[#allocation2 + $0x108] sm:$0x1] %vm287, 0.0
        %300 = vst.msk [vmem:[#allocation2 + $0x120] sm:$0x1] %vm287, 0.0
        %301 = vst.msk [vmem:[#allocation2 + $0x138] sm:$0x1] %vm287, 0.0
        %302 = vst.msk [vmem:[#allocation2 + $0x150] sm:$0x1] %vm287, 0.0
        %303 = vst.msk [vmem:[#allocation2 + $0x168] sm:$0x1] %vm287, 0.0
        %304 = vst.msk [vmem:[#allocation2 + $0x180] sm:$0x1] %vm287, 0.0
        %305 = vst.msk [vmem:[#allocation2 + $0x198] sm:$0x1] %vm287, 0.0
        %306 = vst.msk [vmem:[#allocation2 + $0x11] sm:$0x1] %vm287, 0.0
        %307 = vst.msk [vmem:[#allocation2 + $0x29] sm:$0x1] %vm287, 0.0
        %308 = vst.msk [vmem:[#allocation2 + $0x41] sm:$0x1] %vm287, 0.0
        %309 = vst.msk [vmem:[#allocation2 + $0x59] sm:$0x1] %vm287, 0.0
        %310 = vst.msk [vmem:[#allocation2 + $0x71] sm:$0x1] %vm287, 0.0
        %311 = vst.msk [vmem:[#allocation2 + $0x89] sm:$0x1] %vm287, 0.0
        %312 = vst.msk [vmem:[#allocation2 + $0xa1] sm:$0x1] %vm287, 0.0
        %313 = vst.msk [vmem:[#allocation2 + $0xb9] sm:$0x1] %vm287, 0.0
        %314 = vst.msk [vmem:[#allocation2 + $0xd1] sm:$0x1] %vm287, 0.0
        %315 = vst.msk [vmem:[#allocation2 + $0xe9] sm:$0x1] %vm287, 0.0
        %316 = vst.msk [vmem:[#allocation2 + $0x101] sm:$0x1] %vm287, 0.0
        %317 = vst.msk [vmem:[#allocation2 + $0x119] sm:$0x1] %vm287, 0.0
        %318 = vst.msk [vmem:[#allocation2 + $0x131] sm:$0x1] %vm287, 0.0
        %319 = vst.msk [vmem:[#allocation2 + $0x149] sm:$0x1] %vm287, 0.0
        %320 = vst.msk [vmem:[#allocation2 + $0x161] sm:$0x1] %vm287, 0.0
        %321 = vst.msk [vmem:[#allocation2 + $0x179] sm:$0x1] %vm287, 0.0
        %322 = vst.msk [vmem:[#allocation2 + $0x191] sm:$0x1] %vm287, 0.0
        %323 = vst.msk [vmem:[#allocation2 + $0x1a9] sm:$0x1] %vm287, 0.0
        %324 = vst.msk [vmem:[#allocation3] sm:$0xff] %vm278, 0.0
        %325 = vst.msk [vmem:[#allocation3 + $0x8] sm:$0xff] %vm278, 0.0
        %326 = vst.msk [vmem:[#allocation3 + $0x10] sm:$0x3] %vm281, 0.0
        %s327 = scalar_lea.vmem [#allocation3], 408
        %328 = vst.msk [vmem:[%s327] sm:$0xff] %vm278, 0.0
        %329 = vst.msk [vmem:[%s327 + $0x8] sm:$0xff] %vm278, 0.0
        %330 = vst.msk [vmem:[%s327 + $0x10] sm:$0x3] %vm281, 0.0
        %331 = vst.msk [vmem:[#allocation3] sm:$0x1] %vm287, 0.0
        %332 = vst.msk [vmem:[#allocation3 + $0x18] sm:$0x1] %vm287, 0.0
        %333 = vst.msk [vmem:[#allocation3 + $0x30] sm:$0x1] %vm287, 0.0
        %334 = vst.msk [vmem:[#allocation3 + $0x48] sm:$0x1] %vm287, 0.0
        %335 = vst.msk [vmem:[#allocation3 + $0x60] sm:$0x1] %vm287, 0.0
        %336 = vst.msk [vmem:[#allocation3 + $0x78] sm:$0x1] %vm287, 0.0
        %337 = vst.msk [vmem:[#allocation3 + $0x90] sm:$0x1] %vm287, 0.0
        %338 = vst.msk [vmem:[#allocation3 + $0xa8] sm:$0x1] %vm287, 0.0
        %339 = vst.msk [vmem:[#allocation3 + $0xc0] sm:$0x1] %vm287, 0.0
        %340 = vst.msk [vmem:[#allocation3 + $0xd8] sm:$0x1] %vm287, 0.0
        %341 = vst.msk [vmem:[#allocation3 + $0xf0] sm:$0x1] %vm287, 0.0
        %342 = vst.msk [vmem:[#allocation3 + $0x108] sm:$0x1] %vm287, 0.0
        %343 = vst.msk [vmem:[#allocation3 + $0x120] sm:$0x1] %vm287, 0.0
        %344 = vst.msk [vmem:[#allocation3 + $0x138] sm:$0x1] %vm287, 0.0
        %345 = vst.msk [vmem:[#allocation3 + $0x150] sm:$0x1] %vm287, 0.0
        %346 = vst.msk [vmem:[#allocation3 + $0x168] sm:$0x1] %vm287, 0.0
        %347 = vst.msk [vmem:[#allocation3 + $0x180] sm:$0x1] %vm287, 0.0
        %348 = vst.msk [vmem:[#allocation3 + $0x198] sm:$0x1] %vm287, 0.0
        %349 = vst.msk [vmem:[#allocation3 + $0x11] sm:$0x1] %vm287, 0.0
        %350 = vst.msk [vmem:[#allocation3 + $0x29] sm:$0x1] %vm287, 0.0
        %351 = vst.msk [vmem:[#allocation3 + $0x41] sm:$0x1] %vm287, 0.0
        %352 = vst.msk [vmem:[#allocation3 + $0x59] sm:$0x1] %vm287, 0.0
        %353 = vst.msk [vmem:[#allocation3 + $0x71] sm:$0x1] %vm287, 0.0
        %354 = vst.msk [vmem:[#allocation3 + $0x89] sm:$0x1] %vm287, 0.0
        %355 = vst.msk [vmem:[#allocation3 + $0xa1] sm:$0x1] %vm287, 0.0
        %356 = vst.msk [vmem:[#allocation3 + $0xb9] sm:$0x1] %vm287, 0.0
        %357 = vst.msk [vmem:[#allocation3 + $0xd1] sm:$0x1] %vm287, 0.0
        %358 = vst.msk [vmem:[#allocation3 + $0xe9] sm:$0x1] %vm287, 0.0
        %359 = vst.msk [vmem:[#allocation3 + $0x101] sm:$0x1] %vm287, 0.0
        %360 = vst.msk [vmem:[#allocation3 + $0x119] sm:$0x1] %vm287, 0.0
        %361 = vst.msk [vmem:[#allocation3 + $0x131] sm:$0x1] %vm287, 0.0
        %362 = vst.msk [vmem:[#allocation3 + $0x149] sm:$0x1] %vm287, 0.0
        %363 = vst.msk [vmem:[#allocation3 + $0x161] sm:$0x1] %vm287, 0.0
        %364 = vst.msk [vmem:[#allocation3 + $0x179] sm:$0x1] %vm287, 0.0
        %365 = vst.msk [vmem:[#allocation3 + $0x191] sm:$0x1] %vm287, 0.0
        %366 = vst.msk [vmem:[#allocation3 + $0x1a9] sm:$0x1] %vm287, 0.0
        %v367 = vld [vmem:[%s276] sm:$0xff]
        %v368 = vld [vmem:[%s276 + $0x8] sm:$0xff]
        %v369 = vld [vmem:[%s276 + $0x10] sm:$0xff]
        %v370 = vld [vmem:[%s276 + $0x18] sm:$0xff]
        %v371 = vld [vmem:[%s276 + $0x20] sm:$0xff]
        %v372 = vld [vmem:[%s276 + $0x28] sm:$0xff]
        %v373 = vld [vmem:[%s276 + $0x30] sm:$0xff]
        %v374 = vld [vmem:[%s276 + $0x38] sm:$0xff]
        %v375 = vld [vmem:[%s276 + $0x40] sm:$0xff]
        %v376 = vld [vmem:[%s276 + $0x48] sm:$0xff]
        %v377 = vld [vmem:[%s276 + $0x50] sm:$0xff]
        %v378 = vld [vmem:[%s276 + $0x58] sm:$0xff]
        %v379 = vld [vmem:[%s276 + $0x60] sm:$0xff]
        %v380 = vld [vmem:[%s276 + $0x68] sm:$0xff]
        %v381 = vld [vmem:[%s276 + $0x70] sm:$0xff]
        %v382 = vld [vmem:[%s276 + $0x78] sm:$0xff]
        %v383 = vld [vmem:[%s276 + $0x80] sm:$0xff]
        %v384 = vld [vmem:[%s276 + $0x88] sm:$0xff]
        %v385 = vld [vmem:[%s276 + $0x90] sm:$0xff]
        %v386 = vld [vmem:[%s276 + $0x98] sm:$0xff]
        %v387 = vld [vmem:[%s276 + $0xa0] sm:$0xff]
        %v388 = vld [vmem:[%s276 + $0xa8] sm:$0xff]
        %v389 = vld [vmem:[%s276 + $0xb0] sm:$0xff]
        %v390 = vld [vmem:[%s276 + $0xb8] sm:$0xff]
        %v391 = vld [vmem:[%s276 + $0xc0] sm:$0xff]
        %v392 = vld [vmem:[%s276 + $0xc8] sm:$0xff]
        %v393 = vld [vmem:[%s276 + $0xd0] sm:$0xff]
        %v394 = vld [vmem:[%s276 + $0xd8] sm:$0xff]
        %v395 = vld [vmem:[%s276 + $0xe0] sm:$0xff]
        %v396 = vld [vmem:[%s276 + $0xe8] sm:$0xff]
        %v397 = vld [vmem:[%s276 + $0xf0] sm:$0xff]
        %v398 = vld [vmem:[%s276 + $0xf8] sm:$0xff]
        %v399 = vmax.f32 %v367, 0.0
        %v400 = vmax.f32 %v368, 0.0
        %v401 = vmax.f32 %v369, 0.0
        %v402 = vmax.f32 %v370, 0.0
        %v403 = vmax.f32 %v371, 0.0
        %v404 = vmax.f32 %v372, 0.0
        %v405 = vmax.f32 %v373, 0.0
        %v406 = vmax.f32 %v374, 0.0
        %v407 = vmax.f32 %v375, 0.0
        %v408 = vmax.f32 %v376, 0.0
        %v409 = vmax.f32 %v377, 0.0
        %v410 = vmax.f32 %v378, 0.0
        %v411 = vmax.f32 %v379, 0.0
        %v412 = vmax.f32 %v380, 0.0
        %v413 = vmax.f32 %v381, 0.0
        %v414 = vmax.f32 %v382, 0.0
        %v415 = vmax.f32 %v383, 0.0
        %v416 = vmax.f32 %v384, 0.0
        %v417 = vmax.f32 %v385, 0.0
        %v418 = vmax.f32 %v386, 0.0
        %v419 = vmax.f32 %v387, 0.0
        %v420 = vmax.f32 %v388, 0.0
        %v421 = vmax.f32 %v389, 0.0
        %v422 = vmax.f32 %v390, 0.0
        %v423 = vmax.f32 %v391, 0.0
        %v424 = vmax.f32 %v392, 0.0
        %v425 = vmax.f32 %v393, 0.0
        %v426 = vmax.f32 %v394, 0.0
        %v427 = vmax.f32 %v395, 0.0
        %v428 = vmax.f32 %v396, 0.0
        %v429 = vmax.f32 %v397, 0.0
        %v430 = vmax.f32 %v398, 0.0
        %s431 = scalar_lea.vmem [#allocation2], 24
        %432 = vst.msk [vmem:[%s431 + $0x1] sm:$0xff] %vm278, %v399
        %433 = vst.msk [vmem:[%s431 + $0x9] sm:$0xff] %vm278, %v400
        %434 = vst.msk [vmem:[%s431 + $0x19] sm:$0xff] %vm278, %v401
        %435 = vst.msk [vmem:[%s431 + $0x21] sm:$0xff] %vm278, %v402
        %436 = vst.msk [vmem:[%s431 + $0x31] sm:$0xff] %vm278, %v403
        %437 = vst.msk [vmem:[%s431 + $0x39] sm:$0xff] %vm278, %v404
        %438 = vst.msk [vmem:[%s431 + $0x49] sm:$0xff] %vm278, %v405
        %439 = vst.msk [vmem:[%s431 + $0x51] sm:$0xff] %vm278, %v406
        %440 = vst.msk [vmem:[%s431 + $0x61] sm:$0xff] %vm278, %v407
        %441 = vst.msk [vmem:[%s431 + $0x69] sm:$0xff] %vm278, %v408
        %442 = vst.msk [vmem:[%s431 + $0x79] sm:$0xff] %vm278, %v409
        %443 = vst.msk [vmem:[%s431 + $0x81] sm:$0xff] %vm278, %v410
        %444 = vst.msk [vmem:[%s431 + $0x91] sm:$0xff] %vm278, %v411
        %445 = vst.msk [vmem:[%s431 + $0x99] sm:$0xff] %vm278, %v412
        %446 = vst.msk [vmem:[%s431 + $0xa9] sm:$0xff] %vm278, %v413
        %447 = vst.msk [vmem:[%s431 + $0xb1] sm:$0xff] %vm278, %v414
        %448 = vst.msk [vmem:[%s431 + $0xc1] sm:$0xff] %vm278, %v415
        %449 = vst.msk [vmem:[%s431 + $0xc9] sm:$0xff] %vm278, %v416
        %450 = vst.msk [vmem:[%s431 + $0xd9] sm:$0xff] %vm278, %v417
        %451 = vst.msk [vmem:[%s431 + $0xe1] sm:$0xff] %vm278, %v418
        %452 = vst.msk [vmem:[%s431 + $0xf1] sm:$0xff] %vm278, %v419
        %453 = vst.msk [vmem:[%s431 + $0xf9] sm:$0xff] %vm278, %v420
        %454 = vst.msk [vmem:[%s431 + $0x109] sm:$0xff] %vm278, %v421
        %455 = vst.msk [vmem:[%s431 + $0x111] sm:$0xff] %vm278, %v422
        %456 = vst.msk [vmem:[%s431 + $0x121] sm:$0xff] %vm278, %v423
        %457 = vst.msk [vmem:[%s431 + $0x129] sm:$0xff] %vm278, %v424
        %458 = vst.msk [vmem:[%s431 + $0x139] sm:$0xff] %vm278, %v425
        %459 = vst.msk [vmem:[%s431 + $0x141] sm:$0xff] %vm278, %v426
        %460 = vst.msk [vmem:[%s431 + $0x151] sm:$0xff] %vm278, %v427
        %461 = vst.msk [vmem:[%s431 + $0x159] sm:$0xff] %vm278, %v428
        %462 = vst.msk [vmem:[%s431 + $0x169] sm:$0xff] %vm278, %v429
        %463 = vst.msk [vmem:[%s431 + $0x171] sm:$0xff] %vm278, %v430
        %v464 = vld [vmem:[#allocation2] sm:$0xff]
        %v465 = vld [vmem:[#allocation2 + $0x8] sm:$0xff]
        %v466 = vld [vmem:[#allocation2 + $0x18] sm:$0xff]
        %v467 = vld [vmem:[#allocation2 + $0x20] sm:$0xff]
        %v468 = vld [vmem:[#allocation2 + $0x30] sm:$0xff]
        %v469 = vld [vmem:[#allocation2 + $0x38] sm:$0xff]
        %v470 = vld [vmem:[#allocation2 + $0x48] sm:$0xff]
        %v471 = vld [vmem:[#allocation2 + $0x50] sm:$0xff]
        %v472 = vld [vmem:[#allocation2 + $0x60] sm:$0xff]
        %v473 = vld [vmem:[#allocation2 + $0x68] sm:$0xff]
        %v474 = vld [vmem:[#allocation2 + $0x78] sm:$0xff]
        %v475 = vld [vmem:[#allocation2 + $0x80] sm:$0xff]
        %v476 = vld [vmem:[#allocation2 + $0x90] sm:$0xff]
        %v477 = vld [vmem:[#allocation2 + $0x98] sm:$0xff]
        %v478 = vld [vmem:[#allocation2 + $0xa8] sm:$0xff]
        %v479 = vld [vmem:[#allocation2 + $0xb0] sm:$0xff]
        %v480 = vld [vmem:[#allocation2 + $0xc0] sm:$0xff]
        %v481 = vld [vmem:[#allocation2 + $0xc8] sm:$0xff]
        %v482 = vld [vmem:[#allocation2 + $0xd8] sm:$0xff]
        %v483 = vld [vmem:[#allocation2 + $0xe0] sm:$0xff]
        %v484 = vld [vmem:[#allocation2 + $0xf0] sm:$0xff]
        %v485 = vld [vmem:[#allocation2 + $0xf8] sm:$0xff]
        %v486 = vld [vmem:[#allocation2 + $0x108] sm:$0xff]
        %v487 = vld [vmem:[#allocation2 + $0x110] sm:$0xff]
        %v488 = vld [vmem:[#allocation2 + $0x120] sm:$0xff]
        %v489 = vld [vmem:[#allocation2 + $0x128] sm:$0xff]
        %v490 = vld [vmem:[#allocation2 + $0x138] sm:$0xff]
        %v491 = vld [vmem:[#allocation2 + $0x140] sm:$0xff]
        %v492 = vld [vmem:[#allocation2 + $0x150] sm:$0xff]
        %v493 = vld [vmem:[#allocation2 + $0x158] sm:$0xff]
        %v494 = vld [vmem:[#allocation2 + $0x168] sm:$0xff]
        %v495 = vld [vmem:[#allocation2 + $0x170] sm:$0xff]
        %v496 = vpack.c.bf16 %v465, %v464
        %v497 = vpack.c.bf16 %v467, %v466
        %v498 = vpack.c.bf16 %v469, %v468
        %v499 = vpack.c.bf16 %v471, %v470
        %v500 = vpack.c.bf16 %v473, %v472
        %v501 = vpack.c.bf16 %v475, %v474
        %v502 = vpack.c.bf16 %v477, %v476
        %v503 = vpack.c.bf16 %v479, %v478
        %v504 = vpack.c.bf16 %v481, %v480
        %v505 = vpack.c.bf16 %v483, %v482
        %v506 = vpack.c.bf16 %v485, %v484
        %v507 = vpack.c.bf16 %v487, %v486
        %v508 = vpack.c.bf16 %v489, %v488
        %v509 = vpack.c.bf16 %v491, %v490
        %v510 = vpack.c.bf16 %v493, %v492
        %v511 = vpack.c.bf16 %v495, %v494
        %v512 = vld [vmem:[#allocation2 + $0x1] sm:$0xff]
        %v513 = vld [vmem:[#allocation2 + $0x9] sm:$0xff]
        %v514 = vld [vmem:[#allocation2 + $0x19] sm:$0xff]
        %v515 = vld [vmem:[#allocation2 + $0x21] sm:$0xff]
        %v516 = vld [vmem:[#allocation2 + $0x31] sm:$0xff]
        %v517 = vld [vmem:[#allocation2 + $0x39] sm:$0xff]
        %v518 = vld [vmem:[#allocation2 + $0x49] sm:$0xff]
        %v519 = vld [vmem:[#allocation2 + $0x51] sm:$0xff]
        %v520 = vld [vmem:[#allocation2 + $0x61] sm:$0xff]
        %v521 = vld [vmem:[#allocation2 + $0x69] sm:$0xff]
        %v522 = vld [vmem:[#allocation2 + $0x79] sm:$0xff]
        %v523 = vld [vmem:[#allocation2 + $0x81] sm:$0xff]
        %v524 = vld [vmem:[#allocation2 + $0x91] sm:$0xff]
        %v525 = vld [vmem:[#allocation2 + $0x99] sm:$0xff]
        %v526 = vld [vmem:[#allocation2 + $0xa9] sm:$0xff]
        %v527 = vld [vmem:[#allocation2 + $0xb1] sm:$0xff]
        %v528 = vld [vmem:[#allocation2 + $0xc1] sm:$0xff]
        %v529 = vld [vmem:[#allocation2 + $0xc9] sm:$0xff]
        %v530 = vld [vmem:[#allocation2 + $0xd9] sm:$0xff]
        %v531 = vld [vmem:[#allocation2 + $0xe1] sm:$0xff]
        %v532 = vld [vmem:[#allocation2 + $0xf1] sm:$0xff]
        %v533 = vld [vmem:[#allocation2 + $0xf9] sm:$0xff]
        %v534 = vld [vmem:[#allocation2 + $0x109] sm:$0xff]
        %v535 = vld [vmem:[#allocation2 + $0x111] sm:$0xff]
        %v536 = vld [vmem:[#allocation2 + $0x121] sm:$0xff]
        %v537 = vld [vmem:[#allocation2 + $0x129] sm:$0xff]
        %v538 = vld [vmem:[#allocation2 + $0x139] sm:$0xff]
        %v539 = vld [vmem:[#allocation2 + $0x141] sm:$0xff]
        %v540 = vld [vmem:[#allocation2 + $0x151] sm:$0xff]
        %v541 = vld [vmem:[#allocation2 + $0x159] sm:$0xff]
        %v542 = vld [vmem:[#allocation2 + $0x169] sm:$0xff]
        %v543 = vld [vmem:[#allocation2 + $0x171] sm:$0xff]
        %v544 = vpack.c.bf16 %v513, %v512
        %v545 = vpack.c.bf16 %v515, %v514
        %v546 = vpack.c.bf16 %v517, %v516
        %v547 = vpack.c.bf16 %v519, %v518
        %v548 = vpack.c.bf16 %v521, %v520
        %v549 = vpack.c.bf16 %v523, %v522
        %v550 = vpack.c.bf16 %v525, %v524
        %v551 = vpack.c.bf16 %v527, %v526
        %v552 = vpack.c.bf16 %v529, %v528
        %v553 = vpack.c.bf16 %v531, %v530
        %v554 = vpack.c.bf16 %v533, %v532
        %v555 = vpack.c.bf16 %v535, %v534
        %v556 = vpack.c.bf16 %v537, %v536
        %v557 = vpack.c.bf16 %v539, %v538
        %v558 = vpack.c.bf16 %v541, %v540
        %v559 = vpack.c.bf16 %v543, %v542
        %v560 = vld [vmem:[#allocation2 + $0x2] sm:$0xff]
        %v561 = vld [vmem:[#allocation2 + $0xa] sm:$0xff]
        %v562 = vld [vmem:[#allocation2 + $0x1a] sm:$0xff]
        %v563 = vld [vmem:[#allocation2 + $0x22] sm:$0xff]
        %v564 = vld [vmem:[#allocation2 + $0x32] sm:$0xff]
        %v565 = vld [vmem:[#allocation2 + $0x3a] sm:$0xff]
        %v566 = vld [vmem:[#allocation2 + $0x4a] sm:$0xff]
        %v567 = vld [vmem:[#allocation2 + $0x52] sm:$0xff]
        %v568 = vld [vmem:[#allocation2 + $0x62] sm:$0xff]
        %v569 = vld [vmem:[#allocation2 + $0x6a] sm:$0xff]
        %v570 = vld [vmem:[#allocation2 + $0x7a] sm:$0xff]
        %v571 = vld [vmem:[#allocation2 + $0x82] sm:$0xff]
        %v572 = vld [vmem:[#allocation2 + $0x92] sm:$0xff]
        %v573 = vld [vmem:[#allocation2 + $0x9a] sm:$0xff]
        %v574 = vld [vmem:[#allocation2 + $0xaa] sm:$0xff]
        %v575 = vld [vmem:[#allocation2 + $0xb2] sm:$0xff]
        %v576 = vld [vmem:[#allocation2 + $0xc2] sm:$0xff]
        %v577 = vld [vmem:[#allocation2 + $0xca] sm:$0xff]
        %v578 = vld [vmem:[#allocation2 + $0xda] sm:$0xff]
        %v579 = vld [vmem:[#allocation2 + $0xe2] sm:$0xff]
        %v580 = vld [vmem:[#allocation2 + $0xf2] sm:$0xff]
        %v581 = vld [vmem:[#allocation2 + $0xfa] sm:$0xff]
        %v582 = vld [vmem:[#allocation2 + $0x10a] sm:$0xff]
        %v583 = vld [vmem:[#allocation2 + $0x112] sm:$0xff]
        %v584 = vld [vmem:[#allocation2 + $0x122] sm:$0xff]
        %v585 = vld [vmem:[#allocation2 + $0x12a] sm:$0xff]
        %v586 = vld [vmem:[#allocation2 + $0x13a] sm:$0xff]
        %v587 = vld [vmem:[#allocation2 + $0x142] sm:$0xff]
        %v588 = vld [vmem:[#allocation2 + $0x152] sm:$0xff]
        %v589 = vld [vmem:[#allocation2 + $0x15a] sm:$0xff]
        %v590 = vld [vmem:[#allocation2 + $0x16a] sm:$0xff]
        %v591 = vld [vmem:[#allocation2 + $0x172] sm:$0xff]
        %v592 = vpack.c.bf16 %v561, %v560
        %v593 = vpack.c.bf16 %v563, %v562
        %v594 = vpack.c.bf16 %v565, %v564
        %v595 = vpack.c.bf16 %v567, %v566
        %v596 = vpack.c.bf16 %v569, %v568
        %v597 = vpack.c.bf16 %v571, %v570
        %v598 = vpack.c.bf16 %v573, %v572
        %v599 = vpack.c.bf16 %v575, %v574
        %v600 = vpack.c.bf16 %v577, %v576
        %v601 = vpack.c.bf16 %v579, %v578
        %v602 = vpack.c.bf16 %v581, %v580
        %v603 = vpack.c.bf16 %v583, %v582
        %v604 = vpack.c.bf16 %v585, %v584
        %v605 = vpack.c.bf16 %v587, %v586
        %v606 = vpack.c.bf16 %v589, %v588
        %v607 = vpack.c.bf16 %v591, %v590
        %v608 = vld [vmem:[%s431] sm:$0xff]
        %v609 = vld [vmem:[%s431 + $0x8] sm:$0xff]
        %v610 = vld [vmem:[%s431 + $0x18] sm:$0xff]
        %v611 = vld [vmem:[%s431 + $0x20] sm:$0xff]
        %v612 = vld [vmem:[%s431 + $0x30] sm:$0xff]
        %v613 = vld [vmem:[%s431 + $0x38] sm:$0xff]
        %v614 = vld [vmem:[%s431 + $0x48] sm:$0xff]
        %v615 = vld [vmem:[%s431 + $0x50] sm:$0xff]
        %v616 = vld [vmem:[%s431 + $0x60] sm:$0xff]
        %v617 = vld [vmem:[%s431 + $0x68] sm:$0xff]
        %v618 = vld [vmem:[%s431 + $0x78] sm:$0xff]
        %v619 = vld [vmem:[%s431 + $0x80] sm:$0xff]
        %v620 = vld [vmem:[%s431 + $0x90] sm:$0xff]
        %v621 = vld [vmem:[%s431 + $0x98] sm:$0xff]
        %v622 = vld [vmem:[%s431 + $0xa8] sm:$0xff]
        %v623 = vld [vmem:[%s431 + $0xb0] sm:$0xff]
        %v624 = vld [vmem:[%s431 + $0xc0] sm:$0xff]
        %v625 = vld [vmem:[%s431 + $0xc8] sm:$0xff]
        %v626 = vld [vmem:[%s431 + $0xd8] sm:$0xff]
        %v627 = vld [vmem:[%s431 + $0xe0] sm:$0xff]
        %v628 = vld [vmem:[%s431 + $0xf0] sm:$0xff]
        %v629 = vld [vmem:[%s431 + $0xf8] sm:$0xff]
        %v630 = vld [vmem:[%s431 + $0x108] sm:$0xff]
        %v631 = vld [vmem:[%s431 + $0x110] sm:$0xff]
        %v632 = vld [vmem:[%s431 + $0x120] sm:$0xff]
        %v633 = vld [vmem:[%s431 + $0x128] sm:$0xff]
        %v634 = vld [vmem:[%s431 + $0x138] sm:$0xff]
        %v635 = vld [vmem:[%s431 + $0x140] sm:$0xff]
        %v636 = vld [vmem:[%s431 + $0x150] sm:$0xff]
        %v637 = vld [vmem:[%s431 + $0x158] sm:$0xff]
        %v638 = vld [vmem:[%s431 + $0x168] sm:$0xff]
        %v639 = vld [vmem:[%s431 + $0x170] sm:$0xff]
        %v640 = vpack.c.bf16 %v609, %v608
        %v641 = vpack.c.bf16 %v611, %v610
        %v642 = vpack.c.bf16 %v613, %v612
        %v643 = vpack.c.bf16 %v615, %v614
        %v644 = vpack.c.bf16 %v617, %v616
        %v645 = vpack.c.bf16 %v619, %v618
        %v646 = vpack.c.bf16 %v621, %v620
        %v647 = vpack.c.bf16 %v623, %v622
        %v648 = vpack.c.bf16 %v625, %v624
        %v649 = vpack.c.bf16 %v627, %v626
        %v650 = vpack.c.bf16 %v629, %v628
        %v651 = vpack.c.bf16 %v631, %v630
        %v652 = vpack.c.bf16 %v633, %v632
        %v653 = vpack.c.bf16 %v635, %v634
        %v654 = vpack.c.bf16 %v637, %v636
        %v655 = vpack.c.bf16 %v639, %v638
        %v656 = vld [vmem:[%s431 + $0x1] sm:$0xff]
        %v657 = vld [vmem:[%s431 + $0x9] sm:$0xff]
        %v658 = vld [vmem:[%s431 + $0x19] sm:$0xff]
        %v659 = vld [vmem:[%s431 + $0x21] sm:$0xff]
        %v660 = vld [vmem:[%s431 + $0x31] sm:$0xff]
        %v661 = vld [vmem:[%s431 + $0x39] sm:$0xff]
        %v662 = vld [vmem:[%s431 + $0x49] sm:$0xff]
        %v663 = vld [vmem:[%s431 + $0x51] sm:$0xff]
        %v664 = vld [vmem:[%s431 + $0x61] sm:$0xff]
        %v665 = vld [vmem:[%s431 + $0x69] sm:$0xff]
        %v666 = vld [vmem:[%s431 + $0x79] sm:$0xff]
        %v667 = vld [vmem:[%s431 + $0x81] sm:$0xff]
        %v668 = vld [vmem:[%s431 + $0x91] sm:$0xff]
        %v669 = vld [vmem:[%s431 + $0x99] sm:$0xff]
        %v670 = vld [vmem:[%s431 + $0xa9] sm:$0xff]
        %v671 = vld [vmem:[%s431 + $0xb1] sm:$0xff]
        %v672 = vld [vmem:[%s431 + $0xc1] sm:$0xff]
        %v673 = vld [vmem:[%s431 + $0xc9] sm:$0xff]
        %v674 = vld [vmem:[%s431 + $0xd9] sm:$0xff]
        %v675 = vld [vmem:[%s431 + $0xe1] sm:$0xff]
        %v676 = vld [vmem:[%s431 + $0xf1] sm:$0xff]
        %v677 = vld [vmem:[%s431 + $0xf9] sm:$0xff]
        %v678 = vld [vmem:[%s431 + $0x109] sm:$0xff]
        %v679 = vld [vmem:[%s431 + $0x111] sm:$0xff]
        %v680 = vld [vmem:[%s431 + $0x121] sm:$0xff]
        %v681 = vld [vmem:[%s431 + $0x129] sm:$0xff]
        %v682 = vld [vmem:[%s431 + $0x139] sm:$0xff]
        %v683 = vld [vmem:[%s431 + $0x141] sm:$0xff]
        %v684 = vld [vmem:[%s431 + $0x151] sm:$0xff]
        %v685 = vld [vmem:[%s431 + $0x159] sm:$0xff]
        %v686 = vld [vmem:[%s431 + $0x169] sm:$0xff]
        %v687 = vld [vmem:[%s431 + $0x171] sm:$0xff]
        %v688 = vpack.c.bf16 %v657, %v656
        %v689 = vpack.c.bf16 %v659, %v658
        %v690 = vpack.c.bf16 %v661, %v660
        %v691 = vpack.c.bf16 %v663, %v662
        %v692 = vpack.c.bf16 %v665, %v664
        %v693 = vpack.c.bf16 %v667, %v666
        %v694 = vpack.c.bf16 %v669, %v668
        %v695 = vpack.c.bf16 %v671, %v670
        %v696 = vpack.c.bf16 %v673, %v672
        %v697 = vpack.c.bf16 %v675, %v674
        %v698 = vpack.c.bf16 %v677, %v676
        %v699 = vpack.c.bf16 %v679, %v678
        %v700 = vpack.c.bf16 %v681, %v680
        %v701 = vpack.c.bf16 %v683, %v682
        %v702 = vpack.c.bf16 %v685, %v684
        %v703 = vpack.c.bf16 %v687, %v686
        %v704 = vld [vmem:[%s431 + $0x2] sm:$0xff]
        %v705 = vld [vmem:[%s431 + $0xa] sm:$0xff]
        %v706 = vld [vmem:[%s431 + $0x1a] sm:$0xff]
        %v707 = vld [vmem:[%s431 + $0x22] sm:$0xff]
        %v708 = vld [vmem:[%s431 + $0x32] sm:$0xff]
        %v709 = vld [vmem:[%s431 + $0x3a] sm:$0xff]
        %v710 = vld [vmem:[%s431 + $0x4a] sm:$0xff]
        %v711 = vld [vmem:[%s431 + $0x52] sm:$0xff]
        %v712 = vld [vmem:[%s431 + $0x62] sm:$0xff]
        %v713 = vld [vmem:[%s431 + $0x6a] sm:$0xff]
        %v714 = vld [vmem:[%s431 + $0x7a] sm:$0xff]
        %v715 = vld [vmem:[%s431 + $0x82] sm:$0xff]
        %v716 = vld [vmem:[%s431 + $0x92] sm:$0xff]
        %v717 = vld [vmem:[%s431 + $0x9a] sm:$0xff]
        %v718 = vld [vmem:[%s431 + $0xaa] sm:$0xff]
        %v719 = vld [vmem:[%s431 + $0xb2] sm:$0xff]
        %v720 = vld [vmem:[%s431 + $0xc2] sm:$0xff]
        %v721 = vld [vmem:[%s431 + $0xca] sm:$0xff]
        %v722 = vld [vmem:[%s431 + $0xda] sm:$0xff]
        %v723 = vld [vmem:[%s431 + $0xe2] sm:$0xff]
        %v724 = vld [vmem:[%s431 + $0xf2] sm:$0xff]
        %v725 = vld [vmem:[%s431 + $0xfa] sm:$0xff]
        %v726 = vld [vmem:[%s431 + $0x10a] sm:$0xff]
        %v727 = vld [vmem:[%s431 + $0x112] sm:$0xff]
        %v728 = vld [vmem:[%s431 + $0x122] sm:$0xff]
        %v729 = vld [vmem:[%s431 + $0x12a] sm:$0xff]
        %v730 = vld [vmem:[%s431 + $0x13a] sm:$0xff]
        %v731 = vld [vmem:[%s431 + $0x142] sm:$0xff]
        %v732 = vld [vmem:[%s431 + $0x152] sm:$0xff]
        %v733 = vld [vmem:[%s431 + $0x15a] sm:$0xff]
        %v734 = vld [vmem:[%s431 + $0x16a] sm:$0xff]
        %v735 = vld [vmem:[%s431 + $0x172] sm:$0xff]
        %v736 = vpack.c.bf16 %v705, %v704
        %v737 = vpack.c.bf16 %v707, %v706
        %v738 = vpack.c.bf16 %v709, %v708
        %v739 = vpack.c.bf16 %v711, %v710
        %v740 = vpack.c.bf16 %v713, %v712
        %v741 = vpack.c.bf16 %v715, %v714
        %v742 = vpack.c.bf16 %v717, %v716
        %v743 = vpack.c.bf16 %v719, %v718
        %v744 = vpack.c.bf16 %v721, %v720
        %v745 = vpack.c.bf16 %v723, %v722
        %v746 = vpack.c.bf16 %v725, %v724
        %v747 = vpack.c.bf16 %v727, %v726
        %v748 = vpack.c.bf16 %v729, %v728
        %v749 = vpack.c.bf16 %v731, %v730
        %v750 = vpack.c.bf16 %v733, %v732
        %v751 = vpack.c.bf16 %v735, %v734
        %s752 = scalar_lea.vmem [#allocation2], 48
        %v753 = vld [vmem:[%s752] sm:$0xff]
        %v754 = vld [vmem:[%s752 + $0x8] sm:$0xff]
        %v755 = vld [vmem:[%s752 + $0x18] sm:$0xff]
        %v756 = vld [vmem:[%s752 + $0x20] sm:$0xff]
        %v757 = vld [vmem:[%s752 + $0x30] sm:$0xff]
        %v758 = vld [vmem:[%s752 + $0x38] sm:$0xff]
        %v759 = vld [vmem:[%s752 + $0x48] sm:$0xff]
        %v760 = vld [vmem:[%s752 + $0x50] sm:$0xff]
        %v761 = vld [vmem:[%s752 + $0x60] sm:$0xff]
        %v762 = vld [vmem:[%s752 + $0x68] sm:$0xff]
        %v763 = vld [vmem:[%s752 + $0x78] sm:$0xff]
        %v764 = vld [vmem:[%s752 + $0x80] sm:$0xff]
        %v765 = vld [vmem:[%s752 + $0x90] sm:$0xff]
        %v766 = vld [vmem:[%s752 + $0x98] sm:$0xff]
        %v767 = vld [vmem:[%s752 + $0xa8] sm:$0xff]
        %v768 = vld [vmem:[%s752 + $0xb0] sm:$0xff]
        %v769 = vld [vmem:[%s752 + $0xc0] sm:$0xff]
        %v770 = vld [vmem:[%s752 + $0xc8] sm:$0xff]
        %v771 = vld [vmem:[%s752 + $0xd8] sm:$0xff]
        %v772 = vld [vmem:[%s752 + $0xe0] sm:$0xff]
        %v773 = vld [vmem:[%s752 + $0xf0] sm:$0xff]
        %v774 = vld [vmem:[%s752 + $0xf8] sm:$0xff]
        %v775 = vld [vmem:[%s752 + $0x108] sm:$0xff]
        %v776 = vld [vmem:[%s752 + $0x110] sm:$0xff]
        %v777 = vld [vmem:[%s752 + $0x120] sm:$0xff]
        %v778 = vld [vmem:[%s752 + $0x128] sm:$0xff]
        %v779 = vld [vmem:[%s752 + $0x138] sm:$0xff]
        %v780 = vld [vmem:[%s752 + $0x140] sm:$0xff]
        %v781 = vld [vmem:[%s752 + $0x150] sm:$0xff]
        %v782 = vld [vmem:[%s752 + $0x158] sm:$0xff]
        %v783 = vld [vmem:[%s752 + $0x168] sm:$0xff]
        %v784 = vld [vmem:[%s752 + $0x170] sm:$0xff]
        %v785 = vpack.c.bf16 %v754, %v753
        %v786 = vpack.c.bf16 %v756, %v755
        %v787 = vpack.c.bf16 %v758, %v757
        %v788 = vpack.c.bf16 %v760, %v759
        %v789 = vpack.c.bf16 %v762, %v761
        %v790 = vpack.c.bf16 %v764, %v763
        %v791 = vpack.c.bf16 %v766, %v765
        %v792 = vpack.c.bf16 %v768, %v767
        %v793 = vpack.c.bf16 %v770, %v769
        %v794 = vpack.c.bf16 %v772, %v771
        %v795 = vpack.c.bf16 %v774, %v773
        %v796 = vpack.c.bf16 %v776, %v775
        %v797 = vpack.c.bf16 %v778, %v777
        %v798 = vpack.c.bf16 %v780, %v779
        %v799 = vpack.c.bf16 %v782, %v781
        %v800 = vpack.c.bf16 %v784, %v783
        %v801 = vld [vmem:[%s752 + $0x1] sm:$0xff]
        %v802 = vld [vmem:[%s752 + $0x9] sm:$0xff]
        %v803 = vld [vmem:[%s752 + $0x19] sm:$0xff]
        %v804 = vld [vmem:[%s752 + $0x21] sm:$0xff]
        %v805 = vld [vmem:[%s752 + $0x31] sm:$0xff]
        %v806 = vld [vmem:[%s752 + $0x39] sm:$0xff]
        %v807 = vld [vmem:[%s752 + $0x49] sm:$0xff]
        %v808 = vld [vmem:[%s752 + $0x51] sm:$0xff]
        %v809 = vld [vmem:[%s752 + $0x61] sm:$0xff]
        %v810 = vld [vmem:[%s752 + $0x69] sm:$0xff]
        %v811 = vld [vmem:[%s752 + $0x79] sm:$0xff]
        %v812 = vld [vmem:[%s752 + $0x81] sm:$0xff]
        %v813 = vld [vmem:[%s752 + $0x91] sm:$0xff]
        %v814 = vld [vmem:[%s752 + $0x99] sm:$0xff]
        %v815 = vld [vmem:[%s752 + $0xa9] sm:$0xff]
        %v816 = vld [vmem:[%s752 + $0xb1] sm:$0xff]
        %v817 = vld [vmem:[%s752 + $0xc1] sm:$0xff]
        %v818 = vld [vmem:[%s752 + $0xc9] sm:$0xff]
        %v819 = vld [vmem:[%s752 + $0xd9] sm:$0xff]
        %v820 = vld [vmem:[%s752 + $0xe1] sm:$0xff]
        %v821 = vld [vmem:[%s752 + $0xf1] sm:$0xff]
        %v822 = vld [vmem:[%s752 + $0xf9] sm:$0xff]
        %v823 = vld [vmem:[%s752 + $0x109] sm:$0xff]
        %v824 = vld [vmem:[%s752 + $0x111] sm:$0xff]
        %v825 = vld [vmem:[%s752 + $0x121] sm:$0xff]
        %v826 = vld [vmem:[%s752 + $0x129] sm:$0xff]
        %v827 = vld [vmem:[%s752 + $0x139] sm:$0xff]
        %v828 = vld [vmem:[%s752 + $0x141] sm:$0xff]
        %v829 = vld [vmem:[%s752 + $0x151] sm:$0xff]
        %v830 = vld [vmem:[%s752 + $0x159] sm:$0xff]
        %v831 = vld [vmem:[%s752 + $0x169] sm:$0xff]
        %v832 = vld [vmem:[%s752 + $0x171] sm:$0xff]
        %v833 = vpack.c.bf16 %v802, %v801
        %v834 = vpack.c.bf16 %v804, %v803
        %v835 = vpack.c.bf16 %v806, %v805
        %v836 = vpack.c.bf16 %v808, %v807
        %v837 = vpack.c.bf16 %v810, %v809
        %v838 = vpack.c.bf16 %v812, %v811
        %v839 = vpack.c.bf16 %v814, %v813
        %v840 = vpack.c.bf16 %v816, %v815
        %v841 = vpack.c.bf16 %v818, %v817
        %v842 = vpack.c.bf16 %v820, %v819
        %v843 = vpack.c.bf16 %v822, %v821
        %v844 = vpack.c.bf16 %v824, %v823
        %v845 = vpack.c.bf16 %v826, %v825
        %v846 = vpack.c.bf16 %v828, %v827
        %v847 = vpack.c.bf16 %v830, %v829
        %v848 = vpack.c.bf16 %v832, %v831
        %v849 = vld [vmem:[%s752 + $0x2] sm:$0xff]
        %v850 = vld [vmem:[%s752 + $0xa] sm:$0xff]
        %v851 = vld [vmem:[%s752 + $0x1a] sm:$0xff]
        %v852 = vld [vmem:[%s752 + $0x22] sm:$0xff]
        %v853 = vld [vmem:[%s752 + $0x32] sm:$0xff]
        %v854 = vld [vmem:[%s752 + $0x3a] sm:$0xff]
        %v855 = vld [vmem:[%s752 + $0x4a] sm:$0xff]
        %v856 = vld [vmem:[%s752 + $0x52] sm:$0xff]
        %v857 = vld [vmem:[%s752 + $0x62] sm:$0xff]
        %v858 = vld [vmem:[%s752 + $0x6a] sm:$0xff]
        %v859 = vld [vmem:[%s752 + $0x7a] sm:$0xff]
        %v860 = vld [vmem:[%s752 + $0x82] sm:$0xff]
        %v861 = vld [vmem:[%s752 + $0x92] sm:$0xff]
        %v862 = vld [vmem:[%s752 + $0x9a] sm:$0xff]
        %v863 = vld [vmem:[%s752 + $0xaa] sm:$0xff]
        %v864 = vld [vmem:[%s752 + $0xb2] sm:$0xff]
        %v865 = vld [vmem:[%s752 + $0xc2] sm:$0xff]
        %v866 = vld [vmem:[%s752 + $0xca] sm:$0xff]
        %v867 = vld [vmem:[%s752 + $0xda] sm:$0xff]
        %v868 = vld [vmem:[%s752 + $0xe2] sm:$0xff]
        %v869 = vld [vmem:[%s752 + $0xf2] sm:$0xff]
        %v870 = vld [vmem:[%s752 + $0xfa] sm:$0xff]
        %v871 = vld [vmem:[%s752 + $0x10a] sm:$0xff]
        %v872 = vld [vmem:[%s752 + $0x112] sm:$0xff]
        %v873 = vld [vmem:[%s752 + $0x122] sm:$0xff]
        %v874 = vld [vmem:[%s752 + $0x12a] sm:$0xff]
        %v875 = vld [vmem:[%s752 + $0x13a] sm:$0xff]
        %v876 = vld [vmem:[%s752 + $0x142] sm:$0xff]
        %v877 = vld [vmem:[%s752 + $0x152] sm:$0xff]
        %v878 = vld [vmem:[%s752 + $0x15a] sm:$0xff]
        %v879 = vld [vmem:[%s752 + $0x16a] sm:$0xff]
        %v880 = vld [vmem:[%s752 + $0x172] sm:$0xff]
        %v881 = vpack.c.bf16 %v850, %v849
        %v882 = vpack.c.bf16 %v852, %v851
        %v883 = vpack.c.bf16 %v854, %v853
        %v884 = vpack.c.bf16 %v856, %v855
        %v885 = vpack.c.bf16 %v858, %v857
        %v886 = vpack.c.bf16 %v860, %v859
        %v887 = vpack.c.bf16 %v862, %v861
        %v888 = vpack.c.bf16 %v864, %v863
        %v889 = vpack.c.bf16 %v866, %v865
        %v890 = vpack.c.bf16 %v868, %v867
        %v891 = vpack.c.bf16 %v870, %v869
        %v892 = vpack.c.bf16 %v872, %v871
        %v893 = vpack.c.bf16 %v874, %v873
        %v894 = vpack.c.bf16 %v876, %v875
        %v895 = vpack.c.bf16 %v878, %v877
        %v896 = vpack.c.bf16 %v880, %v879
        %913 = vrot.lane.b32.xlu0 %v544, 4
        %v914 = vpop.permute.xlu0 %913
        %915 = vrot.lane.b32.xlu0 %v545, 4
        %v916 = vpop.permute.xlu0 %915
        %917 = vrot.lane.b32.xlu0 %v546, 4
        %v918 = vpop.permute.xlu0 %917
        %919 = vrot.lane.b32.xlu0 %v547, 4
        %v920 = vpop.permute.xlu0 %919
        %921 = vrot.lane.b32.xlu0 %v548, 4
        %v922 = vpop.permute.xlu0 %921
        %923 = vrot.lane.b32.xlu0 %v549, 4
        %v924 = vpop.permute.xlu0 %923
        %925 = vrot.lane.b32.xlu0 %v550, 4
        %v926 = vpop.permute.xlu0 %925
        %927 = vrot.lane.b32.xlu0 %v551, 4
        %v928 = vpop.permute.xlu0 %927
        %929 = vrot.lane.b32.xlu0 %v552, 4
        %v930 = vpop.permute.xlu0 %929
        %931 = vrot.lane.b32.xlu0 %v553, 4
        %v932 = vpop.permute.xlu0 %931
        %933 = vrot.lane.b32.xlu0 %v554, 4
        %v934 = vpop.permute.xlu0 %933
        %935 = vrot.lane.b32.xlu0 %v555, 4
        %v936 = vpop.permute.xlu0 %935
        %937 = vrot.lane.b32.xlu0 %v556, 4
        %v938 = vpop.permute.xlu0 %937
        %939 = vrot.lane.b32.xlu0 %v557, 4
        %v940 = vpop.permute.xlu0 %939
        %941 = vrot.lane.b32.xlu0 %v558, 4
        %v942 = vpop.permute.xlu0 %941
        %943 = vrot.lane.b32.xlu0 %v559, 4
        %v944 = vpop.permute.xlu0 %943
        %961 = vrot.lane.b32.xlu0 %v592, 8
        %v962 = vpop.permute.xlu0 %961
        %963 = vrot.lane.b32.xlu0 %v593, 8
        %v964 = vpop.permute.xlu0 %963
        %965 = vrot.lane.b32.xlu0 %v594, 8
        %v966 = vpop.permute.xlu0 %965
        %967 = vrot.lane.b32.xlu0 %v595, 8
        %v968 = vpop.permute.xlu0 %967
        %969 = vrot.lane.b32.xlu0 %v596, 8
        %v970 = vpop.permute.xlu0 %969
        %971 = vrot.lane.b32.xlu0 %v597, 8
        %v972 = vpop.permute.xlu0 %971
        %973 = vrot.lane.b32.xlu0 %v598, 8
        %v974 = vpop.permute.xlu0 %973
        %975 = vrot.lane.b32.xlu0 %v599, 8
        %v976 = vpop.permute.xlu0 %975
        %977 = vrot.lane.b32.xlu0 %v600, 8
        %v978 = vpop.permute.xlu0 %977
        %979 = vrot.lane.b32.xlu0 %v601, 8
        %v980 = vpop.permute.xlu0 %979
        %981 = vrot.lane.b32.xlu0 %v602, 8
        %v982 = vpop.permute.xlu0 %981
        %983 = vrot.lane.b32.xlu0 %v603, 8
        %v984 = vpop.permute.xlu0 %983
        %985 = vrot.lane.b32.xlu0 %v604, 8
        %v986 = vpop.permute.xlu0 %985
        %987 = vrot.lane.b32.xlu0 %v605, 8
        %v988 = vpop.permute.xlu0 %987
        %989 = vrot.lane.b32.xlu0 %v606, 8
        %v990 = vpop.permute.xlu0 %989
        %991 = vrot.lane.b32.xlu0 %v607, 8
        %v992 = vpop.permute.xlu0 %991
        %1009 = vrot.lane.b32.xlu0 %v640, 12
        %v1010 = vpop.permute.xlu0 %1009
        %1011 = vrot.lane.b32.xlu0 %v641, 12
        %v1012 = vpop.permute.xlu0 %1011
        %1013 = vrot.lane.b32.xlu0 %v642, 12
        %v1014 = vpop.permute.xlu0 %1013
        %1015 = vrot.lane.b32.xlu0 %v643, 12
        %v1016 = vpop.permute.xlu0 %1015
        %1017 = vrot.lane.b32.xlu0 %v644, 12
        %v1018 = vpop.permute.xlu0 %1017
        %1019 = vrot.lane.b32.xlu0 %v645, 12
        %v1020 = vpop.permute.xlu0 %1019
        %1021 = vrot.lane.b32.xlu0 %v646, 12
        %v1022 = vpop.permute.xlu0 %1021
        %1023 = vrot.lane.b32.xlu0 %v647, 12
        %v1024 = vpop.permute.xlu0 %1023
        %1025 = vrot.lane.b32.xlu0 %v648, 12
        %v1026 = vpop.permute.xlu0 %1025
        %1027 = vrot.lane.b32.xlu0 %v649, 12
        %v1028 = vpop.permute.xlu0 %1027
        %1029 = vrot.lane.b32.xlu0 %v650, 12
        %v1030 = vpop.permute.xlu0 %1029
        %1031 = vrot.lane.b32.xlu0 %v651, 12
        %v1032 = vpop.permute.xlu0 %1031
        %1033 = vrot.lane.b32.xlu0 %v652, 12
        %v1034 = vpop.permute.xlu0 %1033
        %1035 = vrot.lane.b32.xlu0 %v653, 12
        %v1036 = vpop.permute.xlu0 %1035
        %1037 = vrot.lane.b32.xlu0 %v654, 12
        %v1038 = vpop.permute.xlu0 %1037
        %1039 = vrot.lane.b32.xlu0 %v655, 12
        %v1040 = vpop.permute.xlu0 %1039
        %1057 = vrot.lane.b32.xlu0 %v688, 16
        %v1058 = vpop.permute.xlu0 %1057
        %1059 = vrot.lane.b32.xlu0 %v689, 16
        %v1060 = vpop.permute.xlu0 %1059
        %1061 = vrot.lane.b32.xlu0 %v690, 16
        %v1062 = vpop.permute.xlu0 %1061
        %1063 = vrot.lane.b32.xlu0 %v691, 16
        %v1064 = vpop.permute.xlu0 %1063
        %1065 = vrot.lane.b32.xlu0 %v692, 16
        %v1066 = vpop.permute.xlu0 %1065
        %1067 = vrot.lane.b32.xlu0 %v693, 16
        %v1068 = vpop.permute.xlu0 %1067
        %1069 = vrot.lane.b32.xlu0 %v694, 16
        %v1070 = vpop.permute.xlu0 %1069
        %1071 = vrot.lane.b32.xlu0 %v695, 16
        %v1072 = vpop.permute.xlu0 %1071
        %1073 = vrot.lane.b32.xlu0 %v696, 16
        %v1074 = vpop.permute.xlu0 %1073
        %1075 = vrot.lane.b32.xlu0 %v697, 16
        %v1076 = vpop.permute.xlu0 %1075
        %1077 = vrot.lane.b32.xlu0 %v698, 16
        %v1078 = vpop.permute.xlu0 %1077
        %1079 = vrot.lane.b32.xlu0 %v699, 16
        %v1080 = vpop.permute.xlu0 %1079
        %1081 = vrot.lane.b32.xlu0 %v700, 16
        %v1082 = vpop.permute.xlu0 %1081
        %1083 = vrot.lane.b32.xlu0 %v701, 16
        %v1084 = vpop.permute.xlu0 %1083
        %1085 = vrot.lane.b32.xlu0 %v702, 16
        %v1086 = vpop.permute.xlu0 %1085
        %1087 = vrot.lane.b32.xlu0 %v703, 16
        %v1088 = vpop.permute.xlu0 %1087
        %1105 = vrot.lane.b32.xlu0 %v736, 20
        %v1106 = vpop.permute.xlu0 %1105
        %1107 = vrot.lane.b32.xlu0 %v737, 20
        %v1108 = vpop.permute.xlu0 %1107
        %1109 = vrot.lane.b32.xlu0 %v738, 20
        %v1110 = vpop.permute.xlu0 %1109
        %1111 = vrot.lane.b32.xlu0 %v739, 20
        %v1112 = vpop.permute.xlu0 %1111
        %1113 = vrot.lane.b32.xlu0 %v740, 20
        %v1114 = vpop.permute.xlu0 %1113
        %1115 = vrot.lane.b32.xlu0 %v741, 20
        %v1116 = vpop.permute.xlu0 %1115
        %1117 = vrot.lane.b32.xlu0 %v742, 20
        %v1118 = vpop.permute.xlu0 %1117
        %1119 = vrot.lane.b32.xlu0 %v743, 20
        %v1120 = vpop.permute.xlu0 %1119
        %1121 = vrot.lane.b32.xlu0 %v744, 20
        %v1122 = vpop.permute.xlu0 %1121
        %1123 = vrot.lane.b32.xlu0 %v745, 20
        %v1124 = vpop.permute.xlu0 %1123
        %1125 = vrot.lane.b32.xlu0 %v746, 20
        %v1126 = vpop.permute.xlu0 %1125
        %1127 = vrot.lane.b32.xlu0 %v747, 20
        %v1128 = vpop.permute.xlu0 %1127
        %1129 = vrot.lane.b32.xlu0 %v748, 20
        %v1130 = vpop.permute.xlu0 %1129
        %1131 = vrot.lane.b32.xlu0 %v749, 20
        %v1132 = vpop.permute.xlu0 %1131
        %1133 = vrot.lane.b32.xlu0 %v750, 20
        %v1134 = vpop.permute.xlu0 %1133
        %1135 = vrot.lane.b32.xlu0 %v751, 20
        %v1136 = vpop.permute.xlu0 %1135
        %1153 = vrot.lane.b32.xlu0 %v785, 24
        %v1154 = vpop.permute.xlu0 %1153
        %1155 = vrot.lane.b32.xlu0 %v786, 24
        %v1156 = vpop.permute.xlu0 %1155
        %1157 = vrot.lane.b32.xlu0 %v787, 24
        %v1158 = vpop.permute.xlu0 %1157
        %1159 = vrot.lane.b32.xlu0 %v788, 24
        %v1160 = vpop.permute.xlu0 %1159
        %1161 = vrot.lane.b32.xlu0 %v789, 24
        %v1162 = vpop.permute.xlu0 %1161
        %1163 = vrot.lane.b32.xlu0 %v790, 24
        %v1164 = vpop.permute.xlu0 %1163
        %1165 = vrot.lane.b32.xlu0 %v791, 24
        %v1166 = vpop.permute.xlu0 %1165
        %1167 = vrot.lane.b32.xlu0 %v792, 24
        %v1168 = vpop.permute.xlu0 %1167
        %1169 = vrot.lane.b32.xlu0 %v793, 24
        %v1170 = vpop.permute.xlu0 %1169
        %1171 = vrot.lane.b32.xlu0 %v794, 24
        %v1172 = vpop.permute.xlu0 %1171
        %1173 = vrot.lane.b32.xlu0 %v795, 24
        %v1174 = vpop.permute.xlu0 %1173
        %1175 = vrot.lane.b32.xlu0 %v796, 24
        %v1176 = vpop.permute.xlu0 %1175
        %1177 = vrot.lane.b32.xlu0 %v797, 24
        %v1178 = vpop.permute.xlu0 %1177
        %1179 = vrot.lane.b32.xlu0 %v798, 24
        %v1180 = vpop.permute.xlu0 %1179
        %1181 = vrot.lane.b32.xlu0 %v799, 24
        %v1182 = vpop.permute.xlu0 %1181
        %1183 = vrot.lane.b32.xlu0 %v800, 24
        %v1184 = vpop.permute.xlu0 %1183
        %1201 = vrot.lane.b32.xlu0 %v833, 28
        %v1202 = vpop.permute.xlu0 %1201
        %1203 = vrot.lane.b32.xlu0 %v834, 28
        %v1204 = vpop.permute.xlu0 %1203
        %1205 = vrot.lane.b32.xlu0 %v835, 28
        %v1206 = vpop.permute.xlu0 %1205
        %1207 = vrot.lane.b32.xlu0 %v836, 28
        %v1208 = vpop.permute.xlu0 %1207
        %1209 = vrot.lane.b32.xlu0 %v837, 28
        %v1210 = vpop.permute.xlu0 %1209
        %1211 = vrot.lane.b32.xlu0 %v838, 28
        %v1212 = vpop.permute.xlu0 %1211
        %1213 = vrot.lane.b32.xlu0 %v839, 28
        %v1214 = vpop.permute.xlu0 %1213
        %1215 = vrot.lane.b32.xlu0 %v840, 28
        %v1216 = vpop.permute.xlu0 %1215
        %1217 = vrot.lane.b32.xlu0 %v841, 28
        %v1218 = vpop.permute.xlu0 %1217
        %1219 = vrot.lane.b32.xlu0 %v842, 28
        %v1220 = vpop.permute.xlu0 %1219
        %1221 = vrot.lane.b32.xlu0 %v843, 28
        %v1222 = vpop.permute.xlu0 %1221
        %1223 = vrot.lane.b32.xlu0 %v844, 28
        %v1224 = vpop.permute.xlu0 %1223
        %1225 = vrot.lane.b32.xlu0 %v845, 28
        %v1226 = vpop.permute.xlu0 %1225
        %1227 = vrot.lane.b32.xlu0 %v846, 28
        %v1228 = vpop.permute.xlu0 %1227
        %1229 = vrot.lane.b32.xlu0 %v847, 28
        %v1230 = vpop.permute.xlu0 %1229
        %1231 = vrot.lane.b32.xlu0 %v848, 28
        %v1232 = vpop.permute.xlu0 %1231
        %1249 = vrot.lane.b32.xlu0 %v881, 32
        %v1250 = vpop.permute.xlu0 %1249
        %1251 = vrot.lane.b32.xlu0 %v882, 32
        %v1252 = vpop.permute.xlu0 %1251
        %1253 = vrot.lane.b32.xlu0 %v883, 32
        %v1254 = vpop.permute.xlu0 %1253
        %1255 = vrot.lane.b32.xlu0 %v884, 32
        %v1256 = vpop.permute.xlu0 %1255
        %1257 = vrot.lane.b32.xlu0 %v885, 32
        %v1258 = vpop.permute.xlu0 %1257
        %1259 = vrot.lane.b32.xlu0 %v886, 32
        %v1260 = vpop.permute.xlu0 %1259
        %1261 = vrot.lane.b32.xlu0 %v887, 32
        %v1262 = vpop.permute.xlu0 %1261
        %1263 = vrot.lane.b32.xlu0 %v888, 32
        %v1264 = vpop.permute.xlu0 %1263
        %1265 = vrot.lane.b32.xlu0 %v889, 32
        %v1266 = vpop.permute.xlu0 %1265
        %1267 = vrot.lane.b32.xlu0 %v890, 32
        %v1268 = vpop.permute.xlu0 %1267
        %1269 = vrot.lane.b32.xlu0 %v891, 32
        %v1270 = vpop.permute.xlu0 %1269
        %1271 = vrot.lane.b32.xlu0 %v892, 32
        %v1272 = vpop.permute.xlu0 %1271
        %1273 = vrot.lane.b32.xlu0 %v893, 32
        %v1274 = vpop.permute.xlu0 %1273
        %1275 = vrot.lane.b32.xlu0 %v894, 32
        %v1276 = vpop.permute.xlu0 %1275
        %1277 = vrot.lane.b32.xlu0 %v895, 32
        %v1278 = vpop.permute.xlu0 %1277
        %1279 = vrot.lane.b32.xlu0 %v896, 32
        %v1280 = vpop.permute.xlu0 %1279
        %v1283 = vsel %vm278, %v496, %v914
        %v1286 = vsel %vm278, %v497, %v916
        %v1289 = vsel %vm278, %v498, %v918
        %v1292 = vsel %vm278, %v499, %v920
        %v1295 = vsel %vm278, %v500, %v922
        %v1298 = vsel %vm278, %v501, %v924
        %v1301 = vsel %vm278, %v502, %v926
        %v1304 = vsel %vm278, %v503, %v928
        %v1307 = vsel %vm278, %v504, %v930
        %v1310 = vsel %vm278, %v505, %v932
        %v1313 = vsel %vm278, %v506, %v934
        %v1316 = vsel %vm278, %v507, %v936
        %v1319 = vsel %vm278, %v508, %v938
        %v1322 = vsel %vm278, %v509, %v940
        %v1325 = vsel %vm278, %v510, %v942
        %v1328 = vsel %vm278, %v511, %v944
        %vm1329 = vcmask 64512
        %v1331 = vsel %vm1329, %v1283, %v962
        %v1333 = vsel %vm1329, %v1286, %v964
        %v1335 = vsel %vm1329, %v1289, %v966
        %v1337 = vsel %vm1329, %v1292, %v968
        %v1339 = vsel %vm1329, %v1295, %v970
        %v1341 = vsel %vm1329, %v1298, %v972
        %v1343 = vsel %vm1329, %v1301, %v974
        %v1345 = vsel %vm1329, %v1304, %v976
        %v1347 = vsel %vm1329, %v1307, %v978
        %v1349 = vsel %vm1329, %v1310, %v980
        %v1351 = vsel %vm1329, %v1313, %v982
        %v1353 = vsel %vm1329, %v1316, %v984
        %v1355 = vsel %vm1329, %v1319, %v986
        %v1357 = vsel %vm1329, %v1322, %v988
        %v1359 = vsel %vm1329, %v1325, %v990
        %v1361 = vsel %vm1329, %v1328, %v992
        %vm1362 = vcmask 97280
        %v1364 = vsel %vm1362, %v1331, %v1010
        %v1366 = vsel %vm1362, %v1333, %v1012
        %v1368 = vsel %vm1362, %v1335, %v1014
        %v1370 = vsel %vm1362, %v1337, %v1016
        %v1372 = vsel %vm1362, %v1339, %v1018
        %v1374 = vsel %vm1362, %v1341, %v1020
        %v1376 = vsel %vm1362, %v1343, %v1022
        %v1378 = vsel %vm1362, %v1345, %v1024
        %v1380 = vsel %vm1362, %v1347, %v1026
        %v1382 = vsel %vm1362, %v1349, %v1028
        %v1384 = vsel %vm1362, %v1351, %v1030
        %v1386 = vsel %vm1362, %v1353, %v1032
        %v1388 = vsel %vm1362, %v1355, %v1034
        %v1390 = vsel %vm1362, %v1357, %v1036
        %v1392 = vsel %vm1362, %v1359, %v1038
        %v1394 = vsel %vm1362, %v1361, %v1040
        %vm1395 = vcmask 130048
        %v1397 = vsel %vm1395, %v1364, %v1058
        %v1399 = vsel %vm1395, %v1366, %v1060
        %v1401 = vsel %vm1395, %v1368, %v1062
        %v1403 = vsel %vm1395, %v1370, %v1064
        %v1405 = vsel %vm1395, %v1372, %v1066
        %v1407 = vsel %vm1395, %v1374, %v1068
        %v1409 = vsel %vm1395, %v1376, %v1070
        %v1411 = vsel %vm1395, %v1378, %v1072
        %v1413 = vsel %vm1395, %v1380, %v1074
        %v1415 = vsel %vm1395, %v1382, %v1076
        %v1417 = vsel %vm1395, %v1384, %v1078
        %v1419 = vsel %vm1395, %v1386, %v1080
        %v1421 = vsel %vm1395, %v1388, %v1082
        %v1423 = vsel %vm1395, %v1390, %v1084
        %v1425 = vsel %vm1395, %v1392, %v1086
        %v1427 = vsel %vm1395, %v1394, %v1088
        %vm1428 = vcmask 162816
        %v1430 = vsel %vm1428, %v1397, %v1106
        %v1432 = vsel %vm1428, %v1399, %v1108
        %v1434 = vsel %vm1428, %v1401, %v1110
        %v1436 = vsel %vm1428, %v1403, %v1112
        %v1438 = vsel %vm1428, %v1405, %v1114
        %v1440 = vsel %vm1428, %v1407, %v1116
        %v1442 = vsel %vm1428, %v1409, %v1118
        %v1444 = vsel %vm1428, %v1411, %v1120
        %v1446 = vsel %vm1428, %v1413, %v1122
        %v1448 = vsel %vm1428, %v1415, %v1124
        %v1450 = vsel %vm1428, %v1417, %v1126
        %v1452 = vsel %vm1428, %v1419, %v1128
        %v1454 = vsel %vm1428, %v1421, %v1130
        %v1456 = vsel %vm1428, %v1423, %v1132
        %v1458 = vsel %vm1428, %v1425, %v1134
        %v1460 = vsel %vm1428, %v1427, %v1136
        %vm1461 = vcmask 195584
        %v1463 = vsel %vm1461, %v1430, %v1154
        %v1465 = vsel %vm1461, %v1432, %v1156
        %v1467 = vsel %vm1461, %v1434, %v1158
        %v1469 = vsel %vm1461, %v1436, %v1160
        %v1471 = vsel %vm1461, %v1438, %v1162
        %v1473 = vsel %vm1461, %v1440, %v1164
        %v1475 = vsel %vm1461, %v1442, %v1166
        %v1477 = vsel %vm1461, %v1444, %v1168
        %v1479 = vsel %vm1461, %v1446, %v1170
        %v1481 = vsel %vm1461, %v1448, %v1172
        %v1483 = vsel %vm1461, %v1450, %v1174
        %v1485 = vsel %vm1461, %v1452, %v1176
        %v1487 = vsel %vm1461, %v1454, %v1178
        %v1489 = vsel %vm1461, %v1456, %v1180
        %v1491 = vsel %vm1461, %v1458, %v1182
        %v1493 = vsel %vm1461, %v1460, %v1184
        %vm1494 = vcmask 228352
        %v1496 = vsel %vm1494, %v1463, %v1202
        %v1498 = vsel %vm1494, %v1465, %v1204
        %v1500 = vsel %vm1494, %v1467, %v1206
        %v1502 = vsel %vm1494, %v1469, %v1208
        %v1504 = vsel %vm1494, %v1471, %v1210
        %v1506 = vsel %vm1494, %v1473, %v1212
        %v1508 = vsel %vm1494, %v1475, %v1214
        %v1510 = vsel %vm1494, %v1477, %v1216
        %v1512 = vsel %vm1494, %v1479, %v1218
        %v1514 = vsel %vm1494, %v1481, %v1220
        %v1516 = vsel %vm1494, %v1483, %v1222
        %v1518 = vsel %vm1494, %v1485, %v1224
        %v1520 = vsel %vm1494, %v1487, %v1226
        %v1522 = vsel %vm1494, %v1489, %v1228
        %v1524 = vsel %vm1494, %v1491, %v1230
        %v1526 = vsel %vm1494, %v1493, %v1232
        %vm1527 = vcmask 261120
        %v1529 = vsel %vm1527, %v1496, %v1250
        %v1531 = vsel %vm1527, %v1498, %v1252
        %v1533 = vsel %vm1527, %v1500, %v1254
        %v1535 = vsel %vm1527, %v1502, %v1256
        %v1537 = vsel %vm1527, %v1504, %v1258
        %v1539 = vsel %vm1527, %v1506, %v1260
        %v1541 = vsel %vm1527, %v1508, %v1262
        %v1543 = vsel %vm1527, %v1510, %v1264
        %v1545 = vsel %vm1527, %v1512, %v1266
        %v1547 = vsel %vm1527, %v1514, %v1268
        %v1549 = vsel %vm1527, %v1516, %v1270
        %v1551 = vsel %vm1527, %v1518, %v1272
        %v1553 = vsel %vm1527, %v1520, %v1274
        %v1555 = vsel %vm1527, %v1522, %v1276
        %v1557 = vsel %vm1527, %v1524, %v1278
        %v1559 = vsel %vm1527, %v1526, %v1280
        %v1560 = vld [vmem:[%s1] sm:$0xf]
        %v1561 = vld [vmem:[%s1 + $0x4] sm:$0xf]
        %v1562 = vld [vmem:[%s1 + $0x8] sm:$0xf]
        %v1563 = vld [vmem:[%s1 + $0xc] sm:$0xf]
        %v1564 = vld [vmem:[%s1 + $0x10] sm:$0x3]
        %v1565 = vld [vmem:[%s2] sm:$0x1]
        %v1567 = vlaneseq
        %v1568 = vshrl.u32 %v1567, 7
        %v1569 = vsub.s32 0, %v1568
        %v1570 = vrot.slane %v1565, %v1569
        %v1577 = vunpack.c.l.b16 %v1560
        %v1578 = vunpack.c.l.b16 %v1561
        %v1579 = vunpack.c.l.b16 %v1562
        %v1580 = vunpack.c.l.b16 %v1563
        %v1581 = vunpack.c.l.b16 %v1564
        %v1582 = vpack.c.b16 %v1578, %v1577
        %v1583 = vpack.c.b16 %v1580, %v1579
        %v1584 = vpack.c.b16 %v1581, %v1581
        %vm1587 = vcmask 293888
        %v1588 = vsel %vm1587, %v1529, 0
        %v1590 = vsel %vm1587, %v1531, 0
        %v1592 = vsel %vm1587, %v1533, 0
        %v1594 = vsel %vm1587, %v1535, 0
        %v1596 = vsel %vm1587, %v1537, 0
        %v1598 = vsel %vm1587, %v1539, 0
        %v1600 = vsel %vm1587, %v1541, 0
        %v1602 = vsel %vm1587, %v1543, 0
        %v1604 = vsel %vm1587, %v1545, 0
        %v1606 = vsel %vm1587, %v1547, 0
        %v1608 = vsel %vm1587, %v1549, 0
        %v1610 = vsel %vm1587, %v1551, 0
        %v1612 = vsel %vm1587, %v1553, 0
        %v1614 = vsel %vm1587, %v1555, 0
        %v1616 = vsel %vm1587, %v1557, 0
        %v1618 = vsel %vm1587, %v1559, 0
        %vm1620 = vcmask 1041408
        %v1622 = vsel %vm1620, %v1584, 0
        %1624 = vmatprep.subr.bf16.mxu0 0
        %1625 = vmatpush1.bf16.msra.mxu0 %v1582
        %1626 = vmatprep.subr.bf16.mxu0 0
        %1627 = vmatpush1.bf16.msra.mxu0 %v1583
        %1628 = vmatprep.subr.bf16.mxu0 0
        %1629 = vmatpush1.bf16.msra.mxu0 %v1622
        %1630 = vmatprep.subr.bf16.mxu0 0
        %1631 = vmatpush1.bf16.msra.mxu0 0
        %1632 = vmatprep.subr.bf16.mxu0 0
        %1633 = vmatpush1.bf16.msra.mxu0 0
        %1634 = vmatprep.subr.bf16.mxu0 0
        %1635 = vmatpush1.bf16.msra.mxu0 0
        %1636 = vmatprep.subr.bf16.mxu0 0
        %1637 = vmatpush1.bf16.msra.mxu0 0
        %1638 = vmatprep.subr.bf16.mxu0 0
        %1639 = vmatpush1.bf16.msra.mxu0 0
        %1640 = vmatprep.subr.bf16.mxu0 0
        %1641 = vmatpush1.bf16.msra.mxu0 0
        %1642 = vmatprep.subr.bf16.mxu0 0
        %1643 = vmatpush1.bf16.msra.mxu0 0
        %1644 = vmatprep.subr.bf16.mxu0 0
        %1645 = vmatpush1.bf16.msra.mxu0 0
        %1646 = vmatprep.subr.bf16.mxu0 0
        %1647 = vmatpush1.bf16.msra.mxu0 0
        %1648 = vmatprep.subr.bf16.mxu0 0
        %1649 = vmatpush1.bf16.msra.mxu0 0
        %1650 = vmatprep.subr.bf16.mxu0 0
        %1651 = vmatpush1.bf16.msra.mxu0 0
        %1652 = vmatprep.subr.bf16.mxu0 0
        %1653 = vmatpush1.bf16.msra.mxu0 0
        %1654 = vmatprep.subr.bf16.mxu0 0
        %1655 = vmatpush1.bf16.msra.mxu0 0
        %1656 = vmatprep.mubr.bf16.mxu0 0
        %1657 = vmatmul.mubr.bf16.gmra.mrb[0].mxu0 %v1588
        %v1658 = vpop.f32.mrb[0].mxu0
        %v1659 = vadd.f32 %v1570, %v1658
        %v1660 = vpop.f32.mrb[0].mxu0
        %v1661 = vpop.f32.mrb[0].mxu0
        %v1662 = vadd.f32 %v1570, %v1661
        %v1663 = vpop.f32.mrb[0].mxu0
        %1664 = vmatprep.mubr.bf16.mxu0 0
        %1665 = vmatmul.mubr.bf16.gmra.mrb[0].mxu0 %v1590
        %v1666 = vpop.f32.mrb[0].mxu0
        %v1667 = vadd.f32 %v1570, %v1666
        %v1668 = vpop.f32.mrb[0].mxu0
        %v1669 = vpop.f32.mrb[0].mxu0
        %v1670 = vadd.f32 %v1570, %v1669
        %v1671 = vpop.f32.mrb[0].mxu0
        %1672 = vmatprep.mubr.bf16.mxu0 0
        %1673 = vmatmul.mubr.bf16.gmra.mrb[0].mxu0 %v1592
        %v1674 = vpop.f32.mrb[0].mxu0
        %v1675 = vadd.f32 %v1570, %v1674
        %v1676 = vpop.f32.mrb[0].mxu0
        %v1677 = vpop.f32.mrb[0].mxu0
        %v1678 = vadd.f32 %v1570, %v1677
        %v1679 = vpop.f32.mrb[0].mxu0
        %1680 = vmatprep.mubr.bf16.mxu0 0
        %1681 = vmatmul.mubr.bf16.gmra.mrb[0].mxu0 %v1594
        %v1682 = vpop.f32.mrb[0].mxu0
        %v1683 = vadd.f32 %v1570, %v1682
        %v1684 = vpop.f32.mrb[0].mxu0
        %v1685 = vpop.f32.mrb[0].mxu0
        %v1686 = vadd.f32 %v1570, %v1685
        %v1687 = vpop.f32.mrb[0].mxu0
        %1688 = vmatprep.mubr.bf16.mxu0 0
        %1689 = vmatmul.mubr.bf16.gmra.mrb[0].mxu0 %v1596
        %v1690 = vpop.f32.mrb[0].mxu0
        %v1691 = vadd.f32 %v1570, %v1690
        %v1692 = vpop.f32.mrb[0].mxu0
        %v1693 = vpop.f32.mrb[0].mxu0
        %v1694 = vadd.f32 %v1570, %v1693
        %v1695 = vpop.f32.mrb[0].mxu0
        %1696 = vmatprep.mubr.bf16.mxu0 0
        %1697 = vmatmul.mubr.bf16.gmra.mrb[0].mxu0 %v1598
        %v1698 = vpop.f32.mrb[0].mxu0
        %v1699 = vadd.f32 %v1570, %v1698
        %v1700 = vpop.f32.mrb[0].mxu0
        %v1701 = vpop.f32.mrb[0].mxu0
        %v1702 = vadd.f32 %v1570, %v1701
        %v1703 = vpop.f32.mrb[0].mxu0
        %1704 = vmatprep.mubr.bf16.mxu0 0
        %1705 = vmatmul.mubr.bf16.gmra.mrb[0].mxu0 %v1600
        %v1706 = vpop.f32.mrb[0].mxu0
        %v1707 = vadd.f32 %v1570, %v1706
        %v1708 = vpop.f32.mrb[0].mxu0
        %v1709 = vpop.f32.mrb[0].mxu0
        %v1710 = vadd.f32 %v1570, %v1709
        %v1711 = vpop.f32.mrb[0].mxu0
        %1712 = vmatprep.mubr.bf16.mxu0 0
        %1713 = vmatmul.mubr.bf16.gmra.mrb[0].mxu0 %v1602
        %v1714 = vpop.f32.mrb[0].mxu0
        %v1715 = vadd.f32 %v1570, %v1714
        %v1716 = vpop.f32.mrb[0].mxu0
        %v1717 = vpop.f32.mrb[0].mxu0
        %v1718 = vadd.f32 %v1570, %v1717
        %v1719 = vpop.f32.mrb[0].mxu0
        %1720 = vmatprep.mubr.bf16.mxu0 0
        %1721 = vmatmul.mubr.bf16.gmra.mrb[0].mxu0 %v1604
        %v1722 = vpop.f32.mrb[0].mxu0
        %v1723 = vadd.f32 %v1570, %v1722
        %v1724 = vpop.f32.mrb[0].mxu0
        %v1725 = vpop.f32.mrb[0].mxu0
        %v1726 = vadd.f32 %v1570, %v1725
        %v1727 = vpop.f32.mrb[0].mxu0
        %1728 = vmatprep.mubr.bf16.mxu0 0
        %1729 = vmatmul.mubr.bf16.gmra.mrb[0].mxu0 %v1606
        %v1730 = vpop.f32.mrb[0].mxu0
        %v1731 = vadd.f32 %v1570, %v1730
        %v1732 = vpop.f32.mrb[0].mxu0
        %v1733 = vpop.f32.mrb[0].mxu0
        %v1734 = vadd.f32 %v1570, %v1733
        %v1735 = vpop.f32.mrb[0].mxu0
        %1736 = vmatprep.mubr.bf16.mxu0 0
        %1737 = vmatmul.mubr.bf16.gmra.mrb[0].mxu0 %v1608
        %v1738 = vpop.f32.mrb[0].mxu0
        %v1739 = vadd.f32 %v1570, %v1738
        %v1740 = vpop.f32.mrb[0].mxu0
        %v1741 = vpop.f32.mrb[0].mxu0
        %v1742 = vadd.f32 %v1570, %v1741
        %v1743 = vpop.f32.mrb[0].mxu0
        %1744 = vmatprep.mubr.bf16.mxu0 0
        %1745 = vmatmul.mubr.bf16.gmra.mrb[0].mxu0 %v1610
        %v1746 = vpop.f32.mrb[0].mxu0
        %v1747 = vadd.f32 %v1570, %v1746
        %v1748 = vpop.f32.mrb[0].mxu0
        %v1749 = vpop.f32.mrb[0].mxu0
        %v1750 = vadd.f32 %v1570, %v1749
        %v1751 = vpop.f32.mrb[0].mxu0
        %1752 = vmatprep.mubr.bf16.mxu0 0
        %1753 = vmatmul.mubr.bf16.gmra.mrb[0].mxu0 %v1612
        %v1754 = vpop.f32.mrb[0].mxu0
        %v1755 = vadd.f32 %v1570, %v1754
        %v1756 = vpop.f32.mrb[0].mxu0
        %v1757 = vpop.f32.mrb[0].mxu0
        %v1758 = vadd.f32 %v1570, %v1757
        %v1759 = vpop.f32.mrb[0].mxu0
        %1760 = vmatprep.mubr.bf16.mxu0 0
        %1761 = vmatmul.mubr.bf16.gmra.mrb[0].mxu0 %v1614
        %v1762 = vpop.f32.mrb[0].mxu0
        %v1763 = vadd.f32 %v1570, %v1762
        %v1764 = vpop.f32.mrb[0].mxu0
        %v1765 = vpop.f32.mrb[0].mxu0
        %v1766 = vadd.f32 %v1570, %v1765
        %v1767 = vpop.f32.mrb[0].mxu0
        %1768 = vmatprep.mubr.bf16.mxu0 0
        %1769 = vmatmul.mubr.bf16.gmra.mrb[0].mxu0 %v1616
        %v1770 = vpop.f32.mrb[0].mxu0
        %v1771 = vadd.f32 %v1570, %v1770
        %v1772 = vpop.f32.mrb[0].mxu0
        %v1773 = vpop.f32.mrb[0].mxu0
        %v1774 = vadd.f32 %v1570, %v1773
        %v1775 = vpop.f32.mrb[0].mxu0
        %1776 = vmatprep.mubr.bf16.mxu0 0
        %1777 = vmatmul.mubr.bf16.gmra.mrb[0].mxu0 %v1618
        %v1778 = vpop.f32.mrb[0].mxu0
        %v1779 = vadd.f32 %v1570, %v1778
        %v1780 = vpop.f32.mrb[0].mxu0
        %v1781 = vpop.f32.mrb[0].mxu0
        %v1782 = vadd.f32 %v1570, %v1781
        %v1783 = vpop.f32.mrb[0].mxu0
        %1784 = vdwg.mxu0
        %v1785 = vmax.f32 %v1659, 0.0
        %v1786 = vmax.f32 %v1662, 0.0
        %v1787 = vmax.f32 %v1667, 0.0
        %v1788 = vmax.f32 %v1670, 0.0
        %v1789 = vmax.f32 %v1675, 0.0
        %v1790 = vmax.f32 %v1678, 0.0
        %v1791 = vmax.f32 %v1683, 0.0
        %v1792 = vmax.f32 %v1686, 0.0
        %v1793 = vmax.f32 %v1691, 0.0
        %v1794 = vmax.f32 %v1694, 0.0
        %v1795 = vmax.f32 %v1699, 0.0
        %v1796 = vmax.f32 %v1702, 0.0
        %v1797 = vmax.f32 %v1707, 0.0
        %v1798 = vmax.f32 %v1710, 0.0
        %v1799 = vmax.f32 %v1715, 0.0
        %v1800 = vmax.f32 %v1718, 0.0
        %v1801 = vmax.f32 %v1723, 0.0
        %v1802 = vmax.f32 %v1726, 0.0
        %v1803 = vmax.f32 %v1731, 0.0
        %v1804 = vmax.f32 %v1734, 0.0
        %v1805 = vmax.f32 %v1739, 0.0
        %v1806 = vmax.f32 %v1742, 0.0
        %v1807 = vmax.f32 %v1747, 0.0
        %v1808 = vmax.f32 %v1750, 0.0
        %v1809 = vmax.f32 %v1755, 0.0
        %v1810 = vmax.f32 %v1758, 0.0
        %v1811 = vmax.f32 %v1763, 0.0
        %v1812 = vmax.f32 %v1766, 0.0
        %v1813 = vmax.f32 %v1771, 0.0
        %v1814 = vmax.f32 %v1774, 0.0
        %v1815 = vmax.f32 %v1779, 0.0
        %v1816 = vmax.f32 %v1782, 0.0
        %s1817 = scalar_lea.vmem [#allocation3], 24
        %1818 = vst.msk [vmem:[%s1817 + $0x1] sm:$0xff] %vm278, %v1785
        %1819 = vst.msk [vmem:[%s1817 + $0x9] sm:$0xff] %vm278, %v1786
        %1820 = vst.msk [vmem:[%s1817 + $0x19] sm:$0xff] %vm278, %v1787
        %1821 = vst.msk [vmem:[%s1817 + $0x21] sm:$0xff] %vm278, %v1788
        %1822 = vst.msk [vmem:[%s1817 + $0x31] sm:$0xff] %vm278, %v1789
        %1823 = vst.msk [vmem:[%s1817 + $0x39] sm:$0xff] %vm278, %v1790
        %1824 = vst.msk [vmem:[%s1817 + $0x49] sm:$0xff] %vm278, %v1791
        %1825 = vst.msk [vmem:[%s1817 + $0x51] sm:$0xff] %vm278, %v1792
        %1826 = vst.msk [vmem:[%s1817 + $0x61] sm:$0xff] %vm278, %v1793
        %1827 = vst.msk [vmem:[%s1817 + $0x69] sm:$0xff] %vm278, %v1794
        %1828 = vst.msk [vmem:[%s1817 + $0x79] sm:$0xff] %vm278, %v1795
        %1829 = vst.msk [vmem:[%s1817 + $0x81] sm:$0xff] %vm278, %v1796
        %1830 = vst.msk [vmem:[%s1817 + $0x91] sm:$0xff] %vm278, %v1797
        %1831 = vst.msk [vmem:[%s1817 + $0x99] sm:$0xff] %vm278, %v1798
        %1832 = vst.msk [vmem:[%s1817 + $0xa9] sm:$0xff] %vm278, %v1799
        %1833 = vst.msk [vmem:[%s1817 + $0xb1] sm:$0xff] %vm278, %v1800
        %1834 = vst.msk [vmem:[%s1817 + $0xc1] sm:$0xff] %vm278, %v1801
        %1835 = vst.msk [vmem:[%s1817 + $0xc9] sm:$0xff] %vm278, %v1802
        %1836 = vst.msk [vmem:[%s1817 + $0xd9] sm:$0xff] %vm278, %v1803
        %1837 = vst.msk [vmem:[%s1817 + $0xe1] sm:$0xff] %vm278, %v1804
        %1838 = vst.msk [vmem:[%s1817 + $0xf1] sm:$0xff] %vm278, %v1805
        %1839 = vst.msk [vmem:[%s1817 + $0xf9] sm:$0xff] %vm278, %v1806
        %1840 = vst.msk [vmem:[%s1817 + $0x109] sm:$0xff] %vm278, %v1807
        %1841 = vst.msk [vmem:[%s1817 + $0x111] sm:$0xff] %vm278, %v1808
        %1842 = vst.msk [vmem:[%s1817 + $0x121] sm:$0xff] %vm278, %v1809
        %1843 = vst.msk [vmem:[%s1817 + $0x129] sm:$0xff] %vm278, %v1810
        %1844 = vst.msk [vmem:[%s1817 + $0x139] sm:$0xff] %vm278, %v1811
        %1845 = vst.msk [vmem:[%s1817 + $0x141] sm:$0xff] %vm278, %v1812
        %1846 = vst.msk [vmem:[%s1817 + $0x151] sm:$0xff] %vm278, %v1813
        %1847 = vst.msk [vmem:[%s1817 + $0x159] sm:$0xff] %vm278, %v1814
        %1848 = vst.msk [vmem:[%s1817 + $0x169] sm:$0xff] %vm278, %v1815
        %1849 = vst.msk [vmem:[%s1817 + $0x171] sm:$0xff] %vm278, %v1816
        %v1850 = vld [vmem:[#allocation3] sm:$0xff]
        %v1851 = vld [vmem:[#allocation3 + $0x8] sm:$0xff]
        %v1852 = vld [vmem:[#allocation3 + $0x18] sm:$0xff]
        %v1853 = vld [vmem:[#allocation3 + $0x20] sm:$0xff]
        %v1854 = vld [vmem:[#allocation3 + $0x30] sm:$0xff]
        %v1855 = vld [vmem:[#allocation3 + $0x38] sm:$0xff]
        %v1856 = vld [vmem:[#allocation3 + $0x48] sm:$0xff]
        %v1857 = vld [vmem:[#allocation3 + $0x50] sm:$0xff]
        %v1858 = vld [vmem:[#allocation3 + $0x60] sm:$0xff]
        %v1859 = vld [vmem:[#allocation3 + $0x68] sm:$0xff]
        %v1860 = vld [vmem:[#allocation3 + $0x78] sm:$0xff]
        %v1861 = vld [vmem:[#allocation3 + $0x80] sm:$0xff]
        %v1862 = vld [vmem:[#allocation3 + $0x90] sm:$0xff]
        %v1863 = vld [vmem:[#allocation3 + $0x98] sm:$0xff]
        %v1864 = vld [vmem:[#allocation3 + $0xa8] sm:$0xff]
        %v1865 = vld [vmem:[#allocation3 + $0xb0] sm:$0xff]
        %v1866 = vld [vmem:[#allocation3 + $0xc0] sm:$0xff]
        %v1867 = vld [vmem:[#allocation3 + $0xc8] sm:$0xff]
        %v1868 = vld [vmem:[#allocation3 + $0xd8] sm:$0xff]
        %v1869 = vld [vmem:[#allocation3 + $0xe0] sm:$0xff]
        %v1870 = vld [vmem:[#allocation3 + $0xf0] sm:$0xff]
        %v1871 = vld [vmem:[#allocation3 + $0xf8] sm:$0xff]
        %v1872 = vld [vmem:[#allocation3 + $0x108] sm:$0xff]
        %v1873 = vld [vmem:[#allocation3 + $0x110] sm:$0xff]
        %v1874 = vld [vmem:[#allocation3 + $0x120] sm:$0xff]
        %v1875 = vld [vmem:[#allocation3 + $0x128] sm:$0xff]
        %v1876 = vld [vmem:[#allocation3 + $0x138] sm:$0xff]
        %v1877 = vld [vmem:[#allocation3 + $0x140] sm:$0xff]
        %v1878 = vld [vmem:[#allocation3 + $0x150] sm:$0xff]
        %v1879 = vld [vmem:[#allocation3 + $0x158] sm:$0xff]
        %v1880 = vld [vmem:[#allocation3 + $0x168] sm:$0xff]
        %v1881 = vld [vmem:[#allocation3 + $0x170] sm:$0xff]
        %v1882 = vpack.c.bf16 %v1851, %v1850
        %v1883 = vpack.c.bf16 %v1853, %v1852
        %v1884 = vpack.c.bf16 %v1855, %v1854
        %v1885 = vpack.c.bf16 %v1857, %v1856
        %v1886 = vpack.c.bf16 %v1859, %v1858
        %v1887 = vpack.c.bf16 %v1861, %v1860
        %v1888 = vpack.c.bf16 %v1863, %v1862
        %v1889 = vpack.c.bf16 %v1865, %v1864
        %v1890 = vpack.c.bf16 %v1867, %v1866
        %v1891 = vpack.c.bf16 %v1869, %v1868
        %v1892 = vpack.c.bf16 %v1871, %v1870
        %v1893 = vpack.c.bf16 %v1873, %v1872
        %v1894 = vpack.c.bf16 %v1875, %v1874
        %v1895 = vpack.c.bf16 %v1877, %v1876
        %v1896 = vpack.c.bf16 %v1879, %v1878
        %v1897 = vpack.c.bf16 %v1881, %v1880
        %v1898 = vld [vmem:[#allocation3 + $0x1] sm:$0xff]
        %v1899 = vld [vmem:[#allocation3 + $0x9] sm:$0xff]
        %v1900 = vld [vmem:[#allocation3 + $0x19] sm:$0xff]
        %v1901 = vld [vmem:[#allocation3 + $0x21] sm:$0xff]
        %v1902 = vld [vmem:[#allocation3 + $0x31] sm:$0xff]
        %v1903 = vld [vmem:[#allocation3 + $0x39] sm:$0xff]
        %v1904 = vld [vmem:[#allocation3 + $0x49] sm:$0xff]
        %v1905 = vld [vmem:[#allocation3 + $0x51] sm:$0xff]
        %v1906 = vld [vmem:[#allocation3 + $0x61] sm:$0xff]
        %v1907 = vld [vmem:[#allocation3 + $0x69] sm:$0xff]
        %v1908 = vld [vmem:[#allocation3 + $0x79] sm:$0xff]
        %v1909 = vld [vmem:[#allocation3 + $0x81] sm:$0xff]
        %v1910 = vld [vmem:[#allocation3 + $0x91] sm:$0xff]
        %v1911 = vld [vmem:[#allocation3 + $0x99] sm:$0xff]
        %v1912 = vld [vmem:[#allocation3 + $0xa9] sm:$0xff]
        %v1913 = vld [vmem:[#allocation3 + $0xb1] sm:$0xff]
        %v1914 = vld [vmem:[#allocation3 + $0xc1] sm:$0xff]
        %v1915 = vld [vmem:[#allocation3 + $0xc9] sm:$0xff]
        %v1916 = vld [vmem:[#allocation3 + $0xd9] sm:$0xff]
        %v1917 = vld [vmem:[#allocation3 + $0xe1] sm:$0xff]
        %v1918 = vld [vmem:[#allocation3 + $0xf1] sm:$0xff]
        %v1919 = vld [vmem:[#allocation3 + $0xf9] sm:$0xff]
        %v1920 = vld [vmem:[#allocation3 + $0x109] sm:$0xff]
        %v1921 = vld [vmem:[#allocation3 + $0x111] sm:$0xff]
        %v1922 = vld [vmem:[#allocation3 + $0x121] sm:$0xff]
        %v1923 = vld [vmem:[#allocation3 + $0x129] sm:$0xff]
        %v1924 = vld [vmem:[#allocation3 + $0x139] sm:$0xff]
        %v1925 = vld [vmem:[#allocation3 + $0x141] sm:$0xff]
        %v1926 = vld [vmem:[#allocation3 + $0x151] sm:$0xff]
        %v1927 = vld [vmem:[#allocation3 + $0x159] sm:$0xff]
        %v1928 = vld [vmem:[#allocation3 + $0x169] sm:$0xff]
        %v1929 = vld [vmem:[#allocation3 + $0x171] sm:$0xff]
        %v1930 = vpack.c.bf16 %v1899, %v1898
        %v1931 = vpack.c.bf16 %v1901, %v1900
        %v1932 = vpack.c.bf16 %v1903, %v1902
        %v1933 = vpack.c.bf16 %v1905, %v1904
        %v1934 = vpack.c.bf16 %v1907, %v1906
        %v1935 = vpack.c.bf16 %v1909, %v1908
        %v1936 = vpack.c.bf16 %v1911, %v1910
        %v1937 = vpack.c.bf16 %v1913, %v1912
        %v1938 = vpack.c.bf16 %v1915, %v1914
        %v1939 = vpack.c.bf16 %v1917, %v1916
        %v1940 = vpack.c.bf16 %v1919, %v1918
        %v1941 = vpack.c.bf16 %v1921, %v1920
        %v1942 = vpack.c.bf16 %v1923, %v1922
        %v1943 = vpack.c.bf16 %v1925, %v1924
        %v1944 = vpack.c.bf16 %v1927, %v1926
        %v1945 = vpack.c.bf16 %v1929, %v1928
        %v1946 = vld [vmem:[#allocation3 + $0x2] sm:$0xff]
        %v1947 = vld [vmem:[#allocation3 + $0xa] sm:$0xff]
        %v1948 = vld [vmem:[#allocation3 + $0x1a] sm:$0xff]
        %v1949 = vld [vmem:[#allocation3 + $0x22] sm:$0xff]
        %v1950 = vld [vmem:[#allocation3 + $0x32] sm:$0xff]
        %v1951 = vld [vmem:[#allocation3 + $0x3a] sm:$0xff]
        %v1952 = vld [vmem:[#allocation3 + $0x4a] sm:$0xff]
        %v1953 = vld [vmem:[#allocation3 + $0x52] sm:$0xff]
        %v1954 = vld [vmem:[#allocation3 + $0x62] sm:$0xff]
        %v1955 = vld [vmem:[#allocation3 + $0x6a] sm:$0xff]
        %v1956 = vld [vmem:[#allocation3 + $0x7a] sm:$0xff]
        %v1957 = vld [vmem:[#allocation3 + $0x82] sm:$0xff]
        %v1958 = vld [vmem:[#allocation3 + $0x92] sm:$0xff]
        %v1959 = vld [vmem:[#allocation3 + $0x9a] sm:$0xff]
        %v1960 = vld [vmem:[#allocation3 + $0xaa] sm:$0xff]
        %v1961 = vld [vmem:[#allocation3 + $0xb2] sm:$0xff]
        %v1962 = vld [vmem:[#allocation3 + $0xc2] sm:$0xff]
        %v1963 = vld [vmem:[#allocation3 + $0xca] sm:$0xff]
        %v1964 = vld [vmem:[#allocation3 + $0xda] sm:$0xff]
        %v1965 = vld [vmem:[#allocation3 + $0xe2] sm:$0xff]
        %v1966 = vld [vmem:[#allocation3 + $0xf2] sm:$0xff]
        %v1967 = vld [vmem:[#allocation3 + $0xfa] sm:$0xff]
        %v1968 = vld [vmem:[#allocation3 + $0x10a] sm:$0xff]
        %v1969 = vld [vmem:[#allocation3 + $0x112] sm:$0xff]
        %v1970 = vld [vmem:[#allocation3 + $0x122] sm:$0xff]
        %v1971 = vld [vmem:[#allocation3 + $0x12a] sm:$0xff]
        %v1972 = vld [vmem:[#allocation3 + $0x13a] sm:$0xff]
        %v1973 = vld [vmem:[#allocation3 + $0x142] sm:$0xff]
        %v1974 = vld [vmem:[#allocation3 + $0x152] sm:$0xff]
        %v1975 = vld [vmem:[#allocation3 + $0x15a] sm:$0xff]
        %v1976 = vld [vmem:[#allocation3 + $0x16a] sm:$0xff]
        %v1977 = vld [vmem:[#allocation3 + $0x172] sm:$0xff]
        %v1978 = vpack.c.bf16 %v1947, %v1946
        %v1979 = vpack.c.bf16 %v1949, %v1948
        %v1980 = vpack.c.bf16 %v1951, %v1950
        %v1981 = vpack.c.bf16 %v1953, %v1952
        %v1982 = vpack.c.bf16 %v1955, %v1954
        %v1983 = vpack.c.bf16 %v1957, %v1956
        %v1984 = vpack.c.bf16 %v1959, %v1958
        %v1985 = vpack.c.bf16 %v1961, %v1960
        %v1986 = vpack.c.bf16 %v1963, %v1962
        %v1987 = vpack.c.bf16 %v1965, %v1964
        %v1988 = vpack.c.bf16 %v1967, %v1966
        %v1989 = vpack.c.bf16 %v1969, %v1968
        %v1990 = vpack.c.bf16 %v1971, %v1970
        %v1991 = vpack.c.bf16 %v1973, %v1972
        %v1992 = vpack.c.bf16 %v1975, %v1974
        %v1993 = vpack.c.bf16 %v1977, %v1976
        %v1994 = vld [vmem:[%s1817] sm:$0xff]
        %v1995 = vld [vmem:[%s1817 + $0x8] sm:$0xff]
        %v1996 = vld [vmem:[%s1817 + $0x18] sm:$0xff]
        %v1997 = vld [vmem:[%s1817 + $0x20] sm:$0xff]
        %v1998 = vld [vmem:[%s1817 + $0x30] sm:$0xff]
        %v1999 = vld [vmem:[%s1817 + $0x38] sm:$0xff]
        %v2000 = vld [vmem:[%s1817 + $0x48] sm:$0xff]
        %v2001 = vld [vmem:[%s1817 + $0x50] sm:$0xff]
        %v2002 = vld [vmem:[%s1817 + $0x60] sm:$0xff]
        %v2003 = vld [vmem:[%s1817 + $0x68] sm:$0xff]
        %v2004 = vld [vmem:[%s1817 + $0x78] sm:$0xff]
        %v2005 = vld [vmem:[%s1817 + $0x80] sm:$0xff]
        %v2006 = vld [vmem:[%s1817 + $0x90] sm:$0xff]
        %v2007 = vld [vmem:[%s1817 + $0x98] sm:$0xff]
        %v2008 = vld [vmem:[%s1817 + $0xa8] sm:$0xff]
        %v2009 = vld [vmem:[%s1817 + $0xb0] sm:$0xff]
        %v2010 = vld [vmem:[%s1817 + $0xc0] sm:$0xff]
        %v2011 = vld [vmem:[%s1817 + $0xc8] sm:$0xff]
        %v2012 = vld [vmem:[%s1817 + $0xd8] sm:$0xff]
        %v2013 = vld [vmem:[%s1817 + $0xe0] sm:$0xff]
        %v2014 = vld [vmem:[%s1817 + $0xf0] sm:$0xff]
        %v2015 = vld [vmem:[%s1817 + $0xf8] sm:$0xff]
        %v2016 = vld [vmem:[%s1817 + $0x108] sm:$0xff]
        %v2017 = vld [vmem:[%s1817 + $0x110] sm:$0xff]
        %v2018 = vld [vmem:[%s1817 + $0x120] sm:$0xff]
        %v2019 = vld [vmem:[%s1817 + $0x128] sm:$0xff]
        %v2020 = vld [vmem:[%s1817 + $0x138] sm:$0xff]
        %v2021 = vld [vmem:[%s1817 + $0x140] sm:$0xff]
        %v2022 = vld [vmem:[%s1817 + $0x150] sm:$0xff]
        %v2023 = vld [vmem:[%s1817 + $0x158] sm:$0xff]
        %v2024 = vld [vmem:[%s1817 + $0x168] sm:$0xff]
        %v2025 = vld [vmem:[%s1817 + $0x170] sm:$0xff]
        %v2026 = vpack.c.bf16 %v1995, %v1994
        %v2027 = vpack.c.bf16 %v1997, %v1996
        %v2028 = vpack.c.bf16 %v1999, %v1998
        %v2029 = vpack.c.bf16 %v2001, %v2000
        %v2030 = vpack.c.bf16 %v2003, %v2002
        %v2031 = vpack.c.bf16 %v2005, %v2004
        %v2032 = vpack.c.bf16 %v2007, %v2006
        %v2033 = vpack.c.bf16 %v2009, %v2008
        %v2034 = vpack.c.bf16 %v2011, %v2010
        %v2035 = vpack.c.bf16 %v2013, %v2012
        %v2036 = vpack.c.bf16 %v2015, %v2014
        %v2037 = vpack.c.bf16 %v2017, %v2016
        %v2038 = vpack.c.bf16 %v2019, %v2018
        %v2039 = vpack.c.bf16 %v2021, %v2020
        %v2040 = vpack.c.bf16 %v2023, %v2022
        %v2041 = vpack.c.bf16 %v2025, %v2024
        %v2042 = vld [vmem:[%s1817 + $0x1] sm:$0xff]
        %v2043 = vld [vmem:[%s1817 + $0x9] sm:$0xff]
        %v2044 = vld [vmem:[%s1817 + $0x19] sm:$0xff]
        %v2045 = vld [vmem:[%s1817 + $0x21] sm:$0xff]
        %v2046 = vld [vmem:[%s1817 + $0x31] sm:$0xff]
        %v2047 = vld [vmem:[%s1817 + $0x39] sm:$0xff]
        %v2048 = vld [vmem:[%s1817 + $0x49] sm:$0xff]
        %v2049 = vld [vmem:[%s1817 + $0x51] sm:$0xff]
        %v2050 = vld [vmem:[%s1817 + $0x61] sm:$0xff]
        %v2051 = vld [vmem:[%s1817 + $0x69] sm:$0xff]
        %v2052 = vld [vmem:[%s1817 + $0x79] sm:$0xff]
        %v2053 = vld [vmem:[%s1817 + $0x81] sm:$0xff]
        %v2054 = vld [vmem:[%s1817 + $0x91] sm:$0xff]
        %v2055 = vld [vmem:[%s1817 + $0x99] sm:$0xff]
        %v2056 = vld [vmem:[%s1817 + $0xa9] sm:$0xff]
        %v2057 = vld [vmem:[%s1817 + $0xb1] sm:$0xff]
        %v2058 = vld [vmem:[%s1817 + $0xc1] sm:$0xff]
        %v2059 = vld [vmem:[%s1817 + $0xc9] sm:$0xff]
        %v2060 = vld [vmem:[%s1817 + $0xd9] sm:$0xff]
        %v2061 = vld [vmem:[%s1817 + $0xe1] sm:$0xff]
        %v2062 = vld [vmem:[%s1817 + $0xf1] sm:$0xff]
        %v2063 = vld [vmem:[%s1817 + $0xf9] sm:$0xff]
        %v2064 = vld [vmem:[%s1817 + $0x109] sm:$0xff]
        %v2065 = vld [vmem:[%s1817 + $0x111] sm:$0xff]
        %v2066 = vld [vmem:[%s1817 + $0x121] sm:$0xff]
        %v2067 = vld [vmem:[%s1817 + $0x129] sm:$0xff]
        %v2068 = vld [vmem:[%s1817 + $0x139] sm:$0xff]
        %v2069 = vld [vmem:[%s1817 + $0x141] sm:$0xff]
        %v2070 = vld [vmem:[%s1817 + $0x151] sm:$0xff]
        %v2071 = vld [vmem:[%s1817 + $0x159] sm:$0xff]
        %v2072 = vld [vmem:[%s1817 + $0x169] sm:$0xff]
        %v2073 = vld [vmem:[%s1817 + $0x171] sm:$0xff]
        %v2074 = vpack.c.bf16 %v2043, %v2042
        %v2075 = vpack.c.bf16 %v2045, %v2044
        %v2076 = vpack.c.bf16 %v2047, %v2046
        %v2077 = vpack.c.bf16 %v2049, %v2048
        %v2078 = vpack.c.bf16 %v2051, %v2050
        %v2079 = vpack.c.bf16 %v2053, %v2052
        %v2080 = vpack.c.bf16 %v2055, %v2054
        %v2081 = vpack.c.bf16 %v2057, %v2056
        %v2082 = vpack.c.bf16 %v2059, %v2058
        %v2083 = vpack.c.bf16 %v2061, %v2060
        %v2084 = vpack.c.bf16 %v2063, %v2062
        %v2085 = vpack.c.bf16 %v2065, %v2064
        %v2086 = vpack.c.bf16 %v2067, %v2066
        %v2087 = vpack.c.bf16 %v2069, %v2068
        %v2088 = vpack.c.bf16 %v2071, %v2070
        %v2089 = vpack.c.bf16 %v2073, %v2072
        %v2090 = vld [vmem:[%s1817 + $0x2] sm:$0xff]
        %v2091 = vld [vmem:[%s1817 + $0xa] sm:$0xff]
        %v2092 = vld [vmem:[%s1817 + $0x1a] sm:$0xff]
        %v2093 = vld [vmem:[%s1817 + $0x22] sm:$0xff]
        %v2094 = vld [vmem:[%s1817 + $0x32] sm:$0xff]
        %v2095 = vld [vmem:[%s1817 + $0x3a] sm:$0xff]
        %v2096 = vld [vmem:[%s1817 + $0x4a] sm:$0xff]
        %v2097 = vld [vmem:[%s1817 + $0x52] sm:$0xff]
        %v2098 = vld [vmem:[%s1817 + $0x62] sm:$0xff]
        %v2099 = vld [vmem:[%s1817 + $0x6a] sm:$0xff]
        %v2100 = vld [vmem:[%s1817 + $0x7a] sm:$0xff]
        %v2101 = vld [vmem:[%s1817 + $0x82] sm:$0xff]
        %v2102 = vld [vmem:[%s1817 + $0x92] sm:$0xff]
        %v2103 = vld [vmem:[%s1817 + $0x9a] sm:$0xff]
        %v2104 = vld [vmem:[%s1817 + $0xaa] sm:$0xff]
        %v2105 = vld [vmem:[%s1817 + $0xb2] sm:$0xff]
        %v2106 = vld [vmem:[%s1817 + $0xc2] sm:$0xff]
        %v2107 = vld [vmem:[%s1817 + $0xca] sm:$0xff]
        %v2108 = vld [vmem:[%s1817 + $0xda] sm:$0xff]
        %v2109 = vld [vmem:[%s1817 + $0xe2] sm:$0xff]
        %v2110 = vld [vmem:[%s1817 + $0xf2] sm:$0xff]
        %v2111 = vld [vmem:[%s1817 + $0xfa] sm:$0xff]
        %v2112 = vld [vmem:[%s1817 + $0x10a] sm:$0xff]
        %v2113 = vld [vmem:[%s1817 + $0x112] sm:$0xff]
        %v2114 = vld [vmem:[%s1817 + $0x122] sm:$0xff]
        %v2115 = vld [vmem:[%s1817 + $0x12a] sm:$0xff]
        %v2116 = vld [vmem:[%s1817 + $0x13a] sm:$0xff]
        %v2117 = vld [vmem:[%s1817 + $0x142] sm:$0xff]
        %v2118 = vld [vmem:[%s1817 + $0x152] sm:$0xff]
        %v2119 = vld [vmem:[%s1817 + $0x15a] sm:$0xff]
        %v2120 = vld [vmem:[%s1817 + $0x16a] sm:$0xff]
        %v2121 = vld [vmem:[%s1817 + $0x172] sm:$0xff]
        %v2122 = vpack.c.bf16 %v2091, %v2090
        %v2123 = vpack.c.bf16 %v2093, %v2092
        %v2124 = vpack.c.bf16 %v2095, %v2094
        %v2125 = vpack.c.bf16 %v2097, %v2096
        %v2126 = vpack.c.bf16 %v2099, %v2098
        %v2127 = vpack.c.bf16 %v2101, %v2100
        %v2128 = vpack.c.bf16 %v2103, %v2102
        %v2129 = vpack.c.bf16 %v2105, %v2104
        %v2130 = vpack.c.bf16 %v2107, %v2106
        %v2131 = vpack.c.bf16 %v2109, %v2108
        %v2132 = vpack.c.bf16 %v2111, %v2110
        %v2133 = vpack.c.bf16 %v2113, %v2112
        %v2134 = vpack.c.bf16 %v2115, %v2114
        %v2135 = vpack.c.bf16 %v2117, %v2116
        %v2136 = vpack.c.bf16 %v2119, %v2118
        %v2137 = vpack.c.bf16 %v2121, %v2120
        %s2138 = scalar_lea.vmem [#allocation3], 48
        %v2139 = vld [vmem:[%s2138] sm:$0xff]
        %v2140 = vld [vmem:[%s2138 + $0x8] sm:$0xff]
        %v2141 = vld [vmem:[%s2138 + $0x18] sm:$0xff]
        %v2142 = vld [vmem:[%s2138 + $0x20] sm:$0xff]
        %v2143 = vld [vmem:[%s2138 + $0x30] sm:$0xff]
        %v2144 = vld [vmem:[%s2138 + $0x38] sm:$0xff]
        %v2145 = vld [vmem:[%s2138 + $0x48] sm:$0xff]
        %v2146 = vld [vmem:[%s2138 + $0x50] sm:$0xff]
        %v2147 = vld [vmem:[%s2138 + $0x60] sm:$0xff]
        %v2148 = vld [vmem:[%s2138 + $0x68] sm:$0xff]
        %v2149 = vld [vmem:[%s2138 + $0x78] sm:$0xff]
        %v2150 = vld [vmem:[%s2138 + $0x80] sm:$0xff]
        %v2151 = vld [vmem:[%s2138 + $0x90] sm:$0xff]
        %v2152 = vld [vmem:[%s2138 + $0x98] sm:$0xff]
        %v2153 = vld [vmem:[%s2138 + $0xa8] sm:$0xff]
        %v2154 = vld [vmem:[%s2138 + $0xb0] sm:$0xff]
        %v2155 = vld [vmem:[%s2138 + $0xc0] sm:$0xff]
        %v2156 = vld [vmem:[%s2138 + $0xc8] sm:$0xff]
        %v2157 = vld [vmem:[%s2138 + $0xd8] sm:$0xff]
        %v2158 = vld [vmem:[%s2138 + $0xe0] sm:$0xff]
        %v2159 = vld [vmem:[%s2138 + $0xf0] sm:$0xff]
        %v2160 = vld [vmem:[%s2138 + $0xf8] sm:$0xff]
        %v2161 = vld [vmem:[%s2138 + $0x108] sm:$0xff]
        %v2162 = vld [vmem:[%s2138 + $0x110] sm:$0xff]
        %v2163 = vld [vmem:[%s2138 + $0x120] sm:$0xff]
        %v2164 = vld [vmem:[%s2138 + $0x128] sm:$0xff]
        %v2165 = vld [vmem:[%s2138 + $0x138] sm:$0xff]
        %v2166 = vld [vmem:[%s2138 + $0x140] sm:$0xff]
        %v2167 = vld [vmem:[%s2138 + $0x150] sm:$0xff]
        %v2168 = vld [vmem:[%s2138 + $0x158] sm:$0xff]
        %v2169 = vld [vmem:[%s2138 + $0x168] sm:$0xff]
        %v2170 = vld [vmem:[%s2138 + $0x170] sm:$0xff]
        %v2171 = vpack.c.bf16 %v2140, %v2139
        %v2172 = vpack.c.bf16 %v2142, %v2141
        %v2173 = vpack.c.bf16 %v2144, %v2143
        %v2174 = vpack.c.bf16 %v2146, %v2145
        %v2175 = vpack.c.bf16 %v2148, %v2147
        %v2176 = vpack.c.bf16 %v2150, %v2149
        %v2177 = vpack.c.bf16 %v2152, %v2151
        %v2178 = vpack.c.bf16 %v2154, %v2153
        %v2179 = vpack.c.bf16 %v2156, %v2155
        %v2180 = vpack.c.bf16 %v2158, %v2157
        %v2181 = vpack.c.bf16 %v2160, %v2159
        %v2182 = vpack.c.bf16 %v2162, %v2161
        %v2183 = vpack.c.bf16 %v2164, %v2163
        %v2184 = vpack.c.bf16 %v2166, %v2165
        %v2185 = vpack.c.bf16 %v2168, %v2167
        %v2186 = vpack.c.bf16 %v2170, %v2169
        %v2187 = vld [vmem:[%s2138 + $0x1] sm:$0xff]
        %v2188 = vld [vmem:[%s2138 + $0x9] sm:$0xff]
        %v2189 = vld [vmem:[%s2138 + $0x19] sm:$0xff]
        %v2190 = vld [vmem:[%s2138 + $0x21] sm:$0xff]
        %v2191 = vld [vmem:[%s2138 + $0x31] sm:$0xff]
        %v2192 = vld [vmem:[%s2138 + $0x39] sm:$0xff]
        %v2193 = vld [vmem:[%s2138 + $0x49] sm:$0xff]
        %v2194 = vld [vmem:[%s2138 + $0x51] sm:$0xff]
        %v2195 = vld [vmem:[%s2138 + $0x61] sm:$0xff]
        %v2196 = vld [vmem:[%s2138 + $0x69] sm:$0xff]
        %v2197 = vld [vmem:[%s2138 + $0x79] sm:$0xff]
        %v2198 = vld [vmem:[%s2138 + $0x81] sm:$0xff]
        %v2199 = vld [vmem:[%s2138 + $0x91] sm:$0xff]
        %v2200 = vld [vmem:[%s2138 + $0x99] sm:$0xff]
        %v2201 = vld [vmem:[%s2138 + $0xa9] sm:$0xff]
        %v2202 = vld [vmem:[%s2138 + $0xb1] sm:$0xff]
        %v2203 = vld [vmem:[%s2138 + $0xc1] sm:$0xff]
        %v2204 = vld [vmem:[%s2138 + $0xc9] sm:$0xff]
        %v2205 = vld [vmem:[%s2138 + $0xd9] sm:$0xff]
        %v2206 = vld [vmem:[%s2138 + $0xe1] sm:$0xff]
        %v2207 = vld [vmem:[%s2138 + $0xf1] sm:$0xff]
        %v2208 = vld [vmem:[%s2138 + $0xf9] sm:$0xff]
        %v2209 = vld [vmem:[%s2138 + $0x109] sm:$0xff]
        %v2210 = vld [vmem:[%s2138 + $0x111] sm:$0xff]
        %v2211 = vld [vmem:[%s2138 + $0x121] sm:$0xff]
        %v2212 = vld [vmem:[%s2138 + $0x129] sm:$0xff]
        %v2213 = vld [vmem:[%s2138 + $0x139] sm:$0xff]
        %v2214 = vld [vmem:[%s2138 + $0x141] sm:$0xff]
        %v2215 = vld [vmem:[%s2138 + $0x151] sm:$0xff]
        %v2216 = vld [vmem:[%s2138 + $0x159] sm:$0xff]
        %v2217 = vld [vmem:[%s2138 + $0x169] sm:$0xff]
        %v2218 = vld [vmem:[%s2138 + $0x171] sm:$0xff]
        %v2219 = vpack.c.bf16 %v2188, %v2187
        %v2220 = vpack.c.bf16 %v2190, %v2189
        %v2221 = vpack.c.bf16 %v2192, %v2191
        %v2222 = vpack.c.bf16 %v2194, %v2193
        %v2223 = vpack.c.bf16 %v2196, %v2195
        %v2224 = vpack.c.bf16 %v2198, %v2197
        %v2225 = vpack.c.bf16 %v2200, %v2199
        %v2226 = vpack.c.bf16 %v2202, %v2201
        %v2227 = vpack.c.bf16 %v2204, %v2203
        %v2228 = vpack.c.bf16 %v2206, %v2205
        %v2229 = vpack.c.bf16 %v2208, %v2207
        %v2230 = vpack.c.bf16 %v2210, %v2209
        %v2231 = vpack.c.bf16 %v2212, %v2211
        %v2232 = vpack.c.bf16 %v2214, %v2213
        %v2233 = vpack.c.bf16 %v2216, %v2215
        %v2234 = vpack.c.bf16 %v2218, %v2217
        %v2235 = vld [vmem:[%s2138 + $0x2] sm:$0xff]
        %v2236 = vld [vmem:[%s2138 + $0xa] sm:$0xff]
        %v2237 = vld [vmem:[%s2138 + $0x1a] sm:$0xff]
        %v2238 = vld [vmem:[%s2138 + $0x22] sm:$0xff]
        %v2239 = vld [vmem:[%s2138 + $0x32] sm:$0xff]
        %v2240 = vld [vmem:[%s2138 + $0x3a] sm:$0xff]
        %v2241 = vld [vmem:[%s2138 + $0x4a] sm:$0xff]
        %v2242 = vld [vmem:[%s2138 + $0x52] sm:$0xff]
        %v2243 = vld [vmem:[%s2138 + $0x62] sm:$0xff]
        %v2244 = vld [vmem:[%s2138 + $0x6a] sm:$0xff]
        %v2245 = vld [vmem:[%s2138 + $0x7a] sm:$0xff]
        %v2246 = vld [vmem:[%s2138 + $0x82] sm:$0xff]
        %v2247 = vld [vmem:[%s2138 + $0x92] sm:$0xff]
        %v2248 = vld [vmem:[%s2138 + $0x9a] sm:$0xff]
        %v2249 = vld [vmem:[%s2138 + $0xaa] sm:$0xff]
        %v2250 = vld [vmem:[%s2138 + $0xb2] sm:$0xff]
        %v2251 = vld [vmem:[%s2138 + $0xc2] sm:$0xff]
        %v2252 = vld [vmem:[%s2138 + $0xca] sm:$0xff]
        %v2253 = vld [vmem:[%s2138 + $0xda] sm:$0xff]
        %v2254 = vld [vmem:[%s2138 + $0xe2] sm:$0xff]
        %v2255 = vld [vmem:[%s2138 + $0xf2] sm:$0xff]
        %v2256 = vld [vmem:[%s2138 + $0xfa] sm:$0xff]
        %v2257 = vld [vmem:[%s2138 + $0x10a] sm:$0xff]
        %v2258 = vld [vmem:[%s2138 + $0x112] sm:$0xff]
        %v2259 = vld [vmem:[%s2138 + $0x122] sm:$0xff]
        %v2260 = vld [vmem:[%s2138 + $0x12a] sm:$0xff]
        %v2261 = vld [vmem:[%s2138 + $0x13a] sm:$0xff]
        %v2262 = vld [vmem:[%s2138 + $0x142] sm:$0xff]
        %v2263 = vld [vmem:[%s2138 + $0x152] sm:$0xff]
        %v2264 = vld [vmem:[%s2138 + $0x15a] sm:$0xff]
        %v2265 = vld [vmem:[%s2138 + $0x16a] sm:$0xff]
        %v2266 = vld [vmem:[%s2138 + $0x172] sm:$0xff]
        %v2267 = vpack.c.bf16 %v2236, %v2235
        %v2268 = vpack.c.bf16 %v2238, %v2237
        %v2269 = vpack.c.bf16 %v2240, %v2239
        %v2270 = vpack.c.bf16 %v2242, %v2241
        %v2271 = vpack.c.bf16 %v2244, %v2243
        %v2272 = vpack.c.bf16 %v2246, %v2245
        %v2273 = vpack.c.bf16 %v2248, %v2247
        %v2274 = vpack.c.bf16 %v2250, %v2249
        %v2275 = vpack.c.bf16 %v2252, %v2251
        %v2276 = vpack.c.bf16 %v2254, %v2253
        %v2277 = vpack.c.bf16 %v2256, %v2255
        %v2278 = vpack.c.bf16 %v2258, %v2257
        %v2279 = vpack.c.bf16 %v2260, %v2259
        %v2280 = vpack.c.bf16 %v2262, %v2261
        %v2281 = vpack.c.bf16 %v2264, %v2263
        %v2282 = vpack.c.bf16 %v2266, %v2265
        %2299 = vrot.lane.b32.xlu0 %v1930, 4
        %v2300 = vpop.permute.xlu0 %2299
        %2301 = vrot.lane.b32.xlu0 %v1931, 4
        %v2302 = vpop.permute.xlu0 %2301
        %2303 = vrot.lane.b32.xlu0 %v1932, 4
        %v2304 = vpop.permute.xlu0 %2303
        %2305 = vrot.lane.b32.xlu0 %v1933, 4
        %v2306 = vpop.permute.xlu0 %2305
        %2307 = vrot.lane.b32.xlu0 %v1934, 4
        %v2308 = vpop.permute.xlu0 %2307
        %2309 = vrot.lane.b32.xlu0 %v1935, 4
        %v2310 = vpop.permute.xlu0 %2309
        %2311 = vrot.lane.b32.xlu0 %v1936, 4
        %v2312 = vpop.permute.xlu0 %2311
        %2313 = vrot.lane.b32.xlu0 %v1937, 4
        %v2314 = vpop.permute.xlu0 %2313
        %2315 = vrot.lane.b32.xlu0 %v1938, 4
        %v2316 = vpop.permute.xlu0 %2315
        %2317 = vrot.lane.b32.xlu0 %v1939, 4
        %v2318 = vpop.permute.xlu0 %2317
        %2319 = vrot.lane.b32.xlu0 %v1940, 4
        %v2320 = vpop.permute.xlu0 %2319
        %2321 = vrot.lane.b32.xlu0 %v1941, 4
        %v2322 = vpop.permute.xlu0 %2321
        %2323 = vrot.lane.b32.xlu0 %v1942, 4
        %v2324 = vpop.permute.xlu0 %2323
        %2325 = vrot.lane.b32.xlu0 %v1943, 4
        %v2326 = vpop.permute.xlu0 %2325
        %2327 = vrot.lane.b32.xlu0 %v1944, 4
        %v2328 = vpop.permute.xlu0 %2327
        %2329 = vrot.lane.b32.xlu0 %v1945, 4
        %v2330 = vpop.permute.xlu0 %2329
        %2347 = vrot.lane.b32.xlu0 %v1978, 8
        %v2348 = vpop.permute.xlu0 %2347
        %2349 = vrot.lane.b32.xlu0 %v1979, 8
        %v2350 = vpop.permute.xlu0 %2349
        %2351 = vrot.lane.b32.xlu0 %v1980, 8
        %v2352 = vpop.permute.xlu0 %2351
        %2353 = vrot.lane.b32.xlu0 %v1981, 8
        %v2354 = vpop.permute.xlu0 %2353
        %2355 = vrot.lane.b32.xlu0 %v1982, 8
        %v2356 = vpop.permute.xlu0 %2355
        %2357 = vrot.lane.b32.xlu0 %v1983, 8
        %v2358 = vpop.permute.xlu0 %2357
        %2359 = vrot.lane.b32.xlu0 %v1984, 8
        %v2360 = vpop.permute.xlu0 %2359
        %2361 = vrot.lane.b32.xlu0 %v1985, 8
        %v2362 = vpop.permute.xlu0 %2361
        %2363 = vrot.lane.b32.xlu0 %v1986, 8
        %v2364 = vpop.permute.xlu0 %2363
        %2365 = vrot.lane.b32.xlu0 %v1987, 8
        %v2366 = vpop.permute.xlu0 %2365
        %2367 = vrot.lane.b32.xlu0 %v1988, 8
        %v2368 = vpop.permute.xlu0 %2367
        %2369 = vrot.lane.b32.xlu0 %v1989, 8
        %v2370 = vpop.permute.xlu0 %2369
        %2371 = vrot.lane.b32.xlu0 %v1990, 8
        %v2372 = vpop.permute.xlu0 %2371
        %2373 = vrot.lane.b32.xlu0 %v1991, 8
        %v2374 = vpop.permute.xlu0 %2373
        %2375 = vrot.lane.b32.xlu0 %v1992, 8
        %v2376 = vpop.permute.xlu0 %2375
        %2377 = vrot.lane.b32.xlu0 %v1993, 8
        %v2378 = vpop.permute.xlu0 %2377
        %2395 = vrot.lane.b32.xlu0 %v2026, 12
        %v2396 = vpop.permute.xlu0 %2395
        %2397 = vrot.lane.b32.xlu0 %v2027, 12
        %v2398 = vpop.permute.xlu0 %2397
        %2399 = vrot.lane.b32.xlu0 %v2028, 12
        %v2400 = vpop.permute.xlu0 %2399
        %2401 = vrot.lane.b32.xlu0 %v2029, 12
        %v2402 = vpop.permute.xlu0 %2401
        %2403 = vrot.lane.b32.xlu0 %v2030, 12
        %v2404 = vpop.permute.xlu0 %2403
        %2405 = vrot.lane.b32.xlu0 %v2031, 12
        %v2406 = vpop.permute.xlu0 %2405
        %2407 = vrot.lane.b32.xlu0 %v2032, 12
        %v2408 = vpop.permute.xlu0 %2407
        %2409 = vrot.lane.b32.xlu0 %v2033, 12
        %v2410 = vpop.permute.xlu0 %2409
        %2411 = vrot.lane.b32.xlu0 %v2034, 12
        %v2412 = vpop.permute.xlu0 %2411
        %2413 = vrot.lane.b32.xlu0 %v2035, 12
        %v2414 = vpop.permute.xlu0 %2413
        %2415 = vrot.lane.b32.xlu0 %v2036, 12
        %v2416 = vpop.permute.xlu0 %2415
        %2417 = vrot.lane.b32.xlu0 %v2037, 12
        %v2418 = vpop.permute.xlu0 %2417
        %2419 = vrot.lane.b32.xlu0 %v2038, 12
        %v2420 = vpop.permute.xlu0 %2419
        %2421 = vrot.lane.b32.xlu0 %v2039, 12
        %v2422 = vpop.permute.xlu0 %2421
        %2423 = vrot.lane.b32.xlu0 %v2040, 12
        %v2424 = vpop.permute.xlu0 %2423
        %2425 = vrot.lane.b32.xlu0 %v2041, 12
        %v2426 = vpop.permute.xlu0 %2425
        %2443 = vrot.lane.b32.xlu0 %v2074, 16
        %v2444 = vpop.permute.xlu0 %2443
        %2445 = vrot.lane.b32.xlu0 %v2075, 16
        %v2446 = vpop.permute.xlu0 %2445
        %2447 = vrot.lane.b32.xlu0 %v2076, 16
        %v2448 = vpop.permute.xlu0 %2447
        %2449 = vrot.lane.b32.xlu0 %v2077, 16
        %v2450 = vpop.permute.xlu0 %2449
        %2451 = vrot.lane.b32.xlu0 %v2078, 16
        %v2452 = vpop.permute.xlu0 %2451
        %2453 = vrot.lane.b32.xlu0 %v2079, 16
        %v2454 = vpop.permute.xlu0 %2453
        %2455 = vrot.lane.b32.xlu0 %v2080, 16
        %v2456 = vpop.permute.xlu0 %2455
        %2457 = vrot.lane.b32.xlu0 %v2081, 16
        %v2458 = vpop.permute.xlu0 %2457
        %2459 = vrot.lane.b32.xlu0 %v2082, 16
        %v2460 = vpop.permute.xlu0 %2459
        %2461 = vrot.lane.b32.xlu0 %v2083, 16
        %v2462 = vpop.permute.xlu0 %2461
        %2463 = vrot.lane.b32.xlu0 %v2084, 16
        %v2464 = vpop.permute.xlu0 %2463
        %2465 = vrot.lane.b32.xlu0 %v2085, 16
        %v2466 = vpop.permute.xlu0 %2465
        %2467 = vrot.lane.b32.xlu0 %v2086, 16
        %v2468 = vpop.permute.xlu0 %2467
        %2469 = vrot.lane.b32.xlu0 %v2087, 16
        %v2470 = vpop.permute.xlu0 %2469
        %2471 = vrot.lane.b32.xlu0 %v2088, 16
        %v2472 = vpop.permute.xlu0 %2471
        %2473 = vrot.lane.b32.xlu0 %v2089, 16
        %v2474 = vpop.permute.xlu0 %2473
        %2491 = vrot.lane.b32.xlu0 %v2122, 20
        %v2492 = vpop.permute.xlu0 %2491
        %2493 = vrot.lane.b32.xlu0 %v2123, 20
        %v2494 = vpop.permute.xlu0 %2493
        %2495 = vrot.lane.b32.xlu0 %v2124, 20
        %v2496 = vpop.permute.xlu0 %2495
        %2497 = vrot.lane.b32.xlu0 %v2125, 20
        %v2498 = vpop.permute.xlu0 %2497
        %2499 = vrot.lane.b32.xlu0 %v2126, 20
        %v2500 = vpop.permute.xlu0 %2499
        %2501 = vrot.lane.b32.xlu0 %v2127, 20
        %v2502 = vpop.permute.xlu0 %2501
        %2503 = vrot.lane.b32.xlu0 %v2128, 20
        %v2504 = vpop.permute.xlu0 %2503
        %2505 = vrot.lane.b32.xlu0 %v2129, 20
        %v2506 = vpop.permute.xlu0 %2505
        %2507 = vrot.lane.b32.xlu0 %v2130, 20
        %v2508 = vpop.permute.xlu0 %2507
        %2509 = vrot.lane.b32.xlu0 %v2131, 20
        %v2510 = vpop.permute.xlu0 %2509
        %2511 = vrot.lane.b32.xlu0 %v2132, 20
        %v2512 = vpop.permute.xlu0 %2511
        %2513 = vrot.lane.b32.xlu0 %v2133, 20
        %v2514 = vpop.permute.xlu0 %2513
        %2515 = vrot.lane.b32.xlu0 %v2134, 20
        %v2516 = vpop.permute.xlu0 %2515
        %2517 = vrot.lane.b32.xlu0 %v2135, 20
        %v2518 = vpop.permute.xlu0 %2517
        %2519 = vrot.lane.b32.xlu0 %v2136, 20
        %v2520 = vpop.permute.xlu0 %2519
        %2521 = vrot.lane.b32.xlu0 %v2137, 20
        %v2522 = vpop.permute.xlu0 %2521
        %2539 = vrot.lane.b32.xlu0 %v2171, 24
        %v2540 = vpop.permute.xlu0 %2539
        %2541 = vrot.lane.b32.xlu0 %v2172, 24
        %v2542 = vpop.permute.xlu0 %2541
        %2543 = vrot.lane.b32.xlu0 %v2173, 24
        %v2544 = vpop.permute.xlu0 %2543
        %2545 = vrot.lane.b32.xlu0 %v2174, 24
        %v2546 = vpop.permute.xlu0 %2545
        %2547 = vrot.lane.b32.xlu0 %v2175, 24
        %v2548 = vpop.permute.xlu0 %2547
        %2549 = vrot.lane.b32.xlu0 %v2176, 24
        %v2550 = vpop.permute.xlu0 %2549
        %2551 = vrot.lane.b32.xlu0 %v2177, 24
        %v2552 = vpop.permute.xlu0 %2551
        %2553 = vrot.lane.b32.xlu0 %v2178, 24
        %v2554 = vpop.permute.xlu0 %2553
        %2555 = vrot.lane.b32.xlu0 %v2179, 24
        %v2556 = vpop.permute.xlu0 %2555
        %2557 = vrot.lane.b32.xlu0 %v2180, 24
        %v2558 = vpop.permute.xlu0 %2557
        %2559 = vrot.lane.b32.xlu0 %v2181, 24
        %v2560 = vpop.permute.xlu0 %2559
        %2561 = vrot.lane.b32.xlu0 %v2182, 24
        %v2562 = vpop.permute.xlu0 %2561
        %2563 = vrot.lane.b32.xlu0 %v2183, 24
        %v2564 = vpop.permute.xlu0 %2563
        %2565 = vrot.lane.b32.xlu0 %v2184, 24
        %v2566 = vpop.permute.xlu0 %2565
        %2567 = vrot.lane.b32.xlu0 %v2185, 24
        %v2568 = vpop.permute.xlu0 %2567
        %2569 = vrot.lane.b32.xlu0 %v2186, 24
        %v2570 = vpop.permute.xlu0 %2569
        %2587 = vrot.lane.b32.xlu0 %v2219, 28
        %v2588 = vpop.permute.xlu0 %2587
        %2589 = vrot.lane.b32.xlu0 %v2220, 28
        %v2590 = vpop.permute.xlu0 %2589
        %2591 = vrot.lane.b32.xlu0 %v2221, 28
        %v2592 = vpop.permute.xlu0 %2591
        %2593 = vrot.lane.b32.xlu0 %v2222, 28
        %v2594 = vpop.permute.xlu0 %2593
        %2595 = vrot.lane.b32.xlu0 %v2223, 28
        %v2596 = vpop.permute.xlu0 %2595
        %2597 = vrot.lane.b32.xlu0 %v2224, 28
        %v2598 = vpop.permute.xlu0 %2597
        %2599 = vrot.lane.b32.xlu0 %v2225, 28
        %v2600 = vpop.permute.xlu0 %2599
        %2601 = vrot.lane.b32.xlu0 %v2226, 28
        %v2602 = vpop.permute.xlu0 %2601
        %2603 = vrot.lane.b32.xlu0 %v2227, 28
        %v2604 = vpop.permute.xlu0 %2603
        %2605 = vrot.lane.b32.xlu0 %v2228, 28
        %v2606 = vpop.permute.xlu0 %2605
        %2607 = vrot.lane.b32.xlu0 %v2229, 28
        %v2608 = vpop.permute.xlu0 %2607
        %2609 = vrot.lane.b32.xlu0 %v2230, 28
        %v2610 = vpop.permute.xlu0 %2609
        %2611 = vrot.lane.b32.xlu0 %v2231, 28
        %v2612 = vpop.permute.xlu0 %2611
        %2613 = vrot.lane.b32.xlu0 %v2232, 28
        %v2614 = vpop.permute.xlu0 %2613
        %2615 = vrot.lane.b32.xlu0 %v2233, 28
        %v2616 = vpop.permute.xlu0 %2615
        %2617 = vrot.lane.b32.xlu0 %v2234, 28
        %v2618 = vpop.permute.xlu0 %2617
        %2635 = vrot.lane.b32.xlu0 %v2267, 32
        %v2636 = vpop.permute.xlu0 %2635
        %2637 = vrot.lane.b32.xlu0 %v2268, 32
        %v2638 = vpop.permute.xlu0 %2637
        %2639 = vrot.lane.b32.xlu0 %v2269, 32
        %v2640 = vpop.permute.xlu0 %2639
        %2641 = vrot.lane.b32.xlu0 %v2270, 32
        %v2642 = vpop.permute.xlu0 %2641
        %2643 = vrot.lane.b32.xlu0 %v2271, 32
        %v2644 = vpop.permute.xlu0 %2643
        %2645 = vrot.lane.b32.xlu0 %v2272, 32
        %v2646 = vpop.permute.xlu0 %2645
        %2647 = vrot.lane.b32.xlu0 %v2273, 32
        %v2648 = vpop.permute.xlu0 %2647
        %2649 = vrot.lane.b32.xlu0 %v2274, 32
        %v2650 = vpop.permute.xlu0 %2649
        %2651 = vrot.lane.b32.xlu0 %v2275, 32
        %v2652 = vpop.permute.xlu0 %2651
        %2653 = vrot.lane.b32.xlu0 %v2276, 32
        %v2654 = vpop.permute.xlu0 %2653
        %2655 = vrot.lane.b32.xlu0 %v2277, 32
        %v2656 = vpop.permute.xlu0 %2655
        %2657 = vrot.lane.b32.xlu0 %v2278, 32
        %v2658 = vpop.permute.xlu0 %2657
        %2659 = vrot.lane.b32.xlu0 %v2279, 32
        %v2660 = vpop.permute.xlu0 %2659
        %2661 = vrot.lane.b32.xlu0 %v2280, 32
        %v2662 = vpop.permute.xlu0 %2661
        %2663 = vrot.lane.b32.xlu0 %v2281, 32
        %v2664 = vpop.permute.xlu0 %2663
        %2665 = vrot.lane.b32.xlu0 %v2282, 32
        %v2666 = vpop.permute.xlu0 %2665
        %v2669 = vsel %vm278, %v1882, %v2300
        %v2672 = vsel %vm278, %v1883, %v2302
        %v2675 = vsel %vm278, %v1884, %v2304
        %v2678 = vsel %vm278, %v1885, %v2306
        %v2681 = vsel %vm278, %v1886, %v2308
        %v2684 = vsel %vm278, %v1887, %v2310
        %v2687 = vsel %vm278, %v1888, %v2312
        %v2690 = vsel %vm278, %v1889, %v2314
        %v2693 = vsel %vm278, %v1890, %v2316
        %v2696 = vsel %vm278, %v1891, %v2318
        %v2699 = vsel %vm278, %v1892, %v2320
        %v2702 = vsel %vm278, %v1893, %v2322
        %v2705 = vsel %vm278, %v1894, %v2324
        %v2708 = vsel %vm278, %v1895, %v2326
        %v2711 = vsel %vm278, %v1896, %v2328
        %v2714 = vsel %vm278, %v1897, %v2330
        %v2716 = vsel %vm1329, %v2669, %v2348
        %v2718 = vsel %vm1329, %v2672, %v2350
        %v2720 = vsel %vm1329, %v2675, %v2352
        %v2722 = vsel %vm1329, %v2678, %v2354
        %v2724 = vsel %vm1329, %v2681, %v2356
        %v2726 = vsel %vm1329, %v2684, %v2358
        %v2728 = vsel %vm1329, %v2687, %v2360
        %v2730 = vsel %vm1329, %v2690, %v2362
        %v2732 = vsel %vm1329, %v2693, %v2364
        %v2734 = vsel %vm1329, %v2696, %v2366
        %v2736 = vsel %vm1329, %v2699, %v2368
        %v2738 = vsel %vm1329, %v2702, %v2370
        %v2740 = vsel %vm1329, %v2705, %v2372
        %v2742 = vsel %vm1329, %v2708, %v2374
        %v2744 = vsel %vm1329, %v2711, %v2376
        %v2746 = vsel %vm1329, %v2714, %v2378
        %v2748 = vsel %vm1362, %v2716, %v2396
        %v2750 = vsel %vm1362, %v2718, %v2398
        %v2752 = vsel %vm1362, %v2720, %v2400
        %v2754 = vsel %vm1362, %v2722, %v2402
        %v2756 = vsel %vm1362, %v2724, %v2404
        %v2758 = vsel %vm1362, %v2726, %v2406
        %v2760 = vsel %vm1362, %v2728, %v2408
        %v2762 = vsel %vm1362, %v2730, %v2410
        %v2764 = vsel %vm1362, %v2732, %v2412
        %v2766 = vsel %vm1362, %v2734, %v2414
        %v2768 = vsel %vm1362, %v2736, %v2416
        %v2770 = vsel %vm1362, %v2738, %v2418
        %v2772 = vsel %vm1362, %v2740, %v2420
        %v2774 = vsel %vm1362, %v2742, %v2422
        %v2776 = vsel %vm1362, %v2744, %v2424
        %v2778 = vsel %vm1362, %v2746, %v2426
        %v2780 = vsel %vm1395, %v2748, %v2444
        %v2782 = vsel %vm1395, %v2750, %v2446
        %v2784 = vsel %vm1395, %v2752, %v2448
        %v2786 = vsel %vm1395, %v2754, %v2450
        %v2788 = vsel %vm1395, %v2756, %v2452
        %v2790 = vsel %vm1395, %v2758, %v2454
        %v2792 = vsel %vm1395, %v2760, %v2456
        %v2794 = vsel %vm1395, %v2762, %v2458
        %v2796 = vsel %vm1395, %v2764, %v2460
        %v2798 = vsel %vm1395, %v2766, %v2462
        %v2800 = vsel %vm1395, %v2768, %v2464
        %v2802 = vsel %vm1395, %v2770, %v2466
        %v2804 = vsel %vm1395, %v2772, %v2468
        %v2806 = vsel %vm1395, %v2774, %v2470
        %v2808 = vsel %vm1395, %v2776, %v2472
        %v2810 = vsel %vm1395, %v2778, %v2474
        %v2812 = vsel %vm1428, %v2780, %v2492
        %v2814 = vsel %vm1428, %v2782, %v2494
        %v2816 = vsel %vm1428, %v2784, %v2496
        %v2818 = vsel %vm1428, %v2786, %v2498
        %v2820 = vsel %vm1428, %v2788, %v2500
        %v2822 = vsel %vm1428, %v2790, %v2502
        %v2824 = vsel %vm1428, %v2792, %v2504
        %v2826 = vsel %vm1428, %v2794, %v2506
        %v2828 = vsel %vm1428, %v2796, %v2508
        %v2830 = vsel %vm1428, %v2798, %v2510
        %v2832 = vsel %vm1428, %v2800, %v2512
        %v2834 = vsel %vm1428, %v2802, %v2514
        %v2836 = vsel %vm1428, %v2804, %v2516
        %v2838 = vsel %vm1428, %v2806, %v2518
        %v2840 = vsel %vm1428, %v2808, %v2520
        %v2842 = vsel %vm1428, %v2810, %v2522
        %v2844 = vsel %vm1461, %v2812, %v2540
        %v2846 = vsel %vm1461, %v2814, %v2542
        %v2848 = vsel %vm1461, %v2816, %v2544
        %v2850 = vsel %vm1461, %v2818, %v2546
        %v2852 = vsel %vm1461, %v2820, %v2548
        %v2854 = vsel %vm1461, %v2822, %v2550
        %v2856 = vsel %vm1461, %v2824, %v2552
        %v2858 = vsel %vm1461, %v2826, %v2554
        %v2860 = vsel %vm1461, %v2828, %v2556
        %v2862 = vsel %vm1461, %v2830, %v2558
        %v2864 = vsel %vm1461, %v2832, %v2560
        %v2866 = vsel %vm1461, %v2834, %v2562
        %v2868 = vsel %vm1461, %v2836, %v2564
        %v2870 = vsel %vm1461, %v2838, %v2566
        %v2872 = vsel %vm1461, %v2840, %v2568
        %v2874 = vsel %vm1461, %v2842, %v2570
        %v2876 = vsel %vm1494, %v2844, %v2588
        %v2878 = vsel %vm1494, %v2846, %v2590
        %v2880 = vsel %vm1494, %v2848, %v2592
        %v2882 = vsel %vm1494, %v2850, %v2594
        %v2884 = vsel %vm1494, %v2852, %v2596
        %v2886 = vsel %vm1494, %v2854, %v2598
        %v2888 = vsel %vm1494, %v2856, %v2600
        %v2890 = vsel %vm1494, %v2858, %v2602
        %v2892 = vsel %vm1494, %v2860, %v2604
        %v2894 = vsel %vm1494, %v2862, %v2606
        %v2896 = vsel %vm1494, %v2864, %v2608
        %v2898 = vsel %vm1494, %v2866, %v2610
        %v2900 = vsel %vm1494, %v2868, %v2612
        %v2902 = vsel %vm1494, %v2870, %v2614
        %v2904 = vsel %vm1494, %v2872, %v2616
        %v2906 = vsel %vm1494, %v2874, %v2618
        %v2908 = vsel %vm1527, %v2876, %v2636
        %v2910 = vsel %vm1527, %v2878, %v2638
        %v2912 = vsel %vm1527, %v2880, %v2640
        %v2914 = vsel %vm1527, %v2882, %v2642
        %v2916 = vsel %vm1527, %v2884, %v2644
        %v2918 = vsel %vm1527, %v2886, %v2646
        %v2920 = vsel %vm1527, %v2888, %v2648
        %v2922 = vsel %vm1527, %v2890, %v2650
        %v2924 = vsel %vm1527, %v2892, %v2652
        %v2926 = vsel %vm1527, %v2894, %v2654
        %v2928 = vsel %vm1527, %v2896, %v2656
        %v2930 = vsel %vm1527, %v2898, %v2658
        %v2932 = vsel %vm1527, %v2900, %v2660
        %v2934 = vsel %vm1527, %v2902, %v2662
        %v2936 = vsel %vm1527, %v2904, %v2664
        %v2938 = vsel %vm1527, %v2906, %v2666
        %v2939 = vld [vmem:[%s3] sm:$0xf]
        %v2940 = vld [vmem:[%s3 + $0x4] sm:$0xf]
        %v2941 = vld [vmem:[%s3 + $0x8] sm:$0xf]
        %v2942 = vld [vmem:[%s3 + $0xc] sm:$0xf]
        %v2943 = vld [vmem:[%s3 + $0x10] sm:$0x3]
        %v2944 = vld [vmem:[%s4] sm:$0x1]
        %v2946 = vlaneseq
        %v2947 = vshrl.u32 %v2946, 7
        %v2948 = vsub.s32 0, %v2947
        %v2949 = vrot.slane %v2944, %v2948
        %v2956 = vunpack.c.l.b16 %v2939
        %v2957 = vunpack.c.l.b16 %v2940
        %v2958 = vunpack.c.l.b16 %v2941
        %v2959 = vunpack.c.l.b16 %v2942
        %v2960 = vunpack.c.l.b16 %v2943
        %v2961 = vpack.c.b16 %v2957, %v2956
        %v2962 = vpack.c.b16 %v2959, %v2958
        %v2963 = vpack.c.b16 %v2960, %v2960
        %v2966 = vsel %vm1587, %v2908, 0
        %v2968 = vsel %vm1587, %v2910, 0
        %v2970 = vsel %vm1587, %v2912, 0
        %v2972 = vsel %vm1587, %v2914, 0
        %v2974 = vsel %vm1587, %v2916, 0
        %v2976 = vsel %vm1587, %v2918, 0
        %v2978 = vsel %vm1587, %v2920, 0
        %v2980 = vsel %vm1587, %v2922, 0
        %v2982 = vsel %vm1587, %v2924, 0
        %v2984 = vsel %vm1587, %v2926, 0
        %v2986 = vsel %vm1587, %v2928, 0
        %v2988 = vsel %vm1587, %v2930, 0
        %v2990 = vsel %vm1587, %v2932, 0
        %v2992 = vsel %vm1587, %v2934, 0
        %v2994 = vsel %vm1587, %v2936, 0
        %v2996 = vsel %vm1587, %v2938, 0
        %v2999 = vsel %vm1620, %v2963, 0
        %3001 = vmatprep.subr.bf16.mxu0 0
        %3002 = vmatpush1.bf16.msra.mxu0 %v2961
        %3003 = vmatprep.subr.bf16.mxu0 0
        %3004 = vmatpush1.bf16.msra.mxu0 %v2962
        %3005 = vmatprep.subr.bf16.mxu0 0
        %3006 = vmatpush1.bf16.msra.mxu0 %v2999
        %3007 = vmatprep.subr.bf16.mxu0 0
        %3008 = vmatpush1.bf16.msra.mxu0 0
        %3009 = vmatprep.subr.bf16.mxu0 0
        %3010 = vmatpush1.bf16.msra.mxu0 0
        %3011 = vmatprep.subr.bf16.mxu0 0
        %3012 = vmatpush1.bf16.msra.mxu0 0
        %3013 = vmatprep.subr.bf16.mxu0 0
        %3014 = vmatpush1.bf16.msra.mxu0 0
        %3015 = vmatprep.subr.bf16.mxu0 0
        %3016 = vmatpush1.bf16.msra.mxu0 0
        %3017 = vmatprep.subr.bf16.mxu0 0
        %3018 = vmatpush1.bf16.msra.mxu0 0
        %3019 = vmatprep.subr.bf16.mxu0 0
        %3020 = vmatpush1.bf16.msra.mxu0 0
        %3021 = vmatprep.subr.bf16.mxu0 0
        %3022 = vmatpush1.bf16.msra.mxu0 0
        %3023 = vmatprep.subr.bf16.mxu0 0
        %3024 = vmatpush1.bf16.msra.mxu0 0
        %3025 = vmatprep.subr.bf16.mxu0 0
        %3026 = vmatpush1.bf16.msra.mxu0 0
        %3027 = vmatprep.subr.bf16.mxu0 0
        %3028 = vmatpush1.bf16.msra.mxu0 0
        %3029 = vmatprep.subr.bf16.mxu0 0
        %3030 = vmatpush1.bf16.msra.mxu0 0
        %3031 = vmatprep.subr.bf16.mxu0 0
        %3032 = vmatpush1.bf16.msra.mxu0 0
        %3033 = vmatprep.mubr.bf16.mxu0 0
        %3034 = vmatmul.mubr.bf16.gmra.mrb[0].mxu0 %v2966
        %v3035 = vpop.f32.mrb[0].mxu0
        %v3036 = vadd.f32 %v2949, %v3035
        %v3037 = vpop.f32.mrb[0].mxu0
        %v3038 = vpop.f32.mrb[0].mxu0
        %v3039 = vadd.f32 %v2949, %v3038
        %v3040 = vpop.f32.mrb[0].mxu0
        %3041 = vmatprep.mubr.bf16.mxu0 0
        %3042 = vmatmul.mubr.bf16.gmra.mrb[0].mxu0 %v2968
        %v3043 = vpop.f32.mrb[0].mxu0
        %v3044 = vadd.f32 %v2949, %v3043
        %v3045 = vpop.f32.mrb[0].mxu0
        %v3046 = vpop.f32.mrb[0].mxu0
        %v3047 = vadd.f32 %v2949, %v3046
        %v3048 = vpop.f32.mrb[0].mxu0
        %3049 = vmatprep.mubr.bf16.mxu0 0
        %3050 = vmatmul.mubr.bf16.gmra.mrb[0].mxu0 %v2970
        %v3051 = vpop.f32.mrb[0].mxu0
        %v3052 = vadd.f32 %v2949, %v3051
        %v3053 = vpop.f32.mrb[0].mxu0
        %v3054 = vpop.f32.mrb[0].mxu0
        %v3055 = vadd.f32 %v2949, %v3054
        %v3056 = vpop.f32.mrb[0].mxu0
        %3057 = vmatprep.mubr.bf16.mxu0 0
        %3058 = vmatmul.mubr.bf16.gmra.mrb[0].mxu0 %v2972
        %v3059 = vpop.f32.mrb[0].mxu0
        %v3060 = vadd.f32 %v2949, %v3059
        %v3061 = vpop.f32.mrb[0].mxu0
        %v3062 = vpop.f32.mrb[0].mxu0
        %v3063 = vadd.f32 %v2949, %v3062
        %v3064 = vpop.f32.mrb[0].mxu0
        %3065 = vmatprep.mubr.bf16.mxu0 0
        %3066 = vmatmul.mubr.bf16.gmra.mrb[0].mxu0 %v2974
        %v3067 = vpop.f32.mrb[0].mxu0
        %v3068 = vadd.f32 %v2949, %v3067
        %v3069 = vpop.f32.mrb[0].mxu0
        %v3070 = vpop.f32.mrb[0].mxu0
        %v3071 = vadd.f32 %v2949, %v3070
        %v3072 = vpop.f32.mrb[0].mxu0
        %3073 = vmatprep.mubr.bf16.mxu0 0
        %3074 = vmatmul.mubr.bf16.gmra.mrb[0].mxu0 %v2976
        %v3075 = vpop.f32.mrb[0].mxu0
        %v3076 = vadd.f32 %v2949, %v3075
        %v3077 = vpop.f32.mrb[0].mxu0
        %v3078 = vpop.f32.mrb[0].mxu0
        %v3079 = vadd.f32 %v2949, %v3078
        %v3080 = vpop.f32.mrb[0].mxu0
        %3081 = vmatprep.mubr.bf16.mxu0 0
        %3082 = vmatmul.mubr.bf16.gmra.mrb[0].mxu0 %v2978
        %v3083 = vpop.f32.mrb[0].mxu0
        %v3084 = vadd.f32 %v2949, %v3083
        %v3085 = vpop.f32.mrb[0].mxu0
        %v3086 = vpop.f32.mrb[0].mxu0
        %v3087 = vadd.f32 %v2949, %v3086
        %v3088 = vpop.f32.mrb[0].mxu0
        %3089 = vmatprep.mubr.bf16.mxu0 0
        %3090 = vmatmul.mubr.bf16.gmra.mrb[0].mxu0 %v2980
        %v3091 = vpop.f32.mrb[0].mxu0
        %v3092 = vadd.f32 %v2949, %v3091
        %v3093 = vpop.f32.mrb[0].mxu0
        %v3094 = vpop.f32.mrb[0].mxu0
        %v3095 = vadd.f32 %v2949, %v3094
        %v3096 = vpop.f32.mrb[0].mxu0
        %3097 = vmatprep.mubr.bf16.mxu0 0
        %3098 = vmatmul.mubr.bf16.gmra.mrb[0].mxu0 %v2982
        %v3099 = vpop.f32.mrb[0].mxu0
        %v3100 = vadd.f32 %v2949, %v3099
        %v3101 = vpop.f32.mrb[0].mxu0
        %v3102 = vpop.f32.mrb[0].mxu0
        %v3103 = vadd.f32 %v2949, %v3102
        %v3104 = vpop.f32.mrb[0].mxu0
        %3105 = vmatprep.mubr.bf16.mxu0 0
        %3106 = vmatmul.mubr.bf16.gmra.mrb[0].mxu0 %v2984
        %v3107 = vpop.f32.mrb[0].mxu0
        %v3108 = vadd.f32 %v2949, %v3107
        %v3109 = vpop.f32.mrb[0].mxu0
        %v3110 = vpop.f32.mrb[0].mxu0
        %v3111 = vadd.f32 %v2949, %v3110
        %v3112 = vpop.f32.mrb[0].mxu0
        %3113 = vmatprep.mubr.bf16.mxu0 0
        %3114 = vmatmul.mubr.bf16.gmra.mrb[0].mxu0 %v2986
        %v3115 = vpop.f32.mrb[0].mxu0
        %v3116 = vadd.f32 %v2949, %v3115
        %v3117 = vpop.f32.mrb[0].mxu0
        %v3118 = vpop.f32.mrb[0].mxu0
        %v3119 = vadd.f32 %v2949, %v3118
        %v3120 = vpop.f32.mrb[0].mxu0
        %3121 = vmatprep.mubr.bf16.mxu0 0
        %3122 = vmatmul.mubr.bf16.gmra.mrb[0].mxu0 %v2988
        %v3123 = vpop.f32.mrb[0].mxu0
        %v3124 = vadd.f32 %v2949, %v3123
        %v3125 = vpop.f32.mrb[0].mxu0
        %v3126 = vpop.f32.mrb[0].mxu0
        %v3127 = vadd.f32 %v2949, %v3126
        %v3128 = vpop.f32.mrb[0].mxu0
        %3129 = vmatprep.mubr.bf16.mxu0 0
        %3130 = vmatmul.mubr.bf16.gmra.mrb[0].mxu0 %v2990
        %v3131 = vpop.f32.mrb[0].mxu0
        %v3132 = vadd.f32 %v2949, %v3131
        %v3133 = vpop.f32.mrb[0].mxu0
        %v3134 = vpop.f32.mrb[0].mxu0
        %v3135 = vadd.f32 %v2949, %v3134
        %v3136 = vpop.f32.mrb[0].mxu0
        %3137 = vmatprep.mubr.bf16.mxu0 0
        %3138 = vmatmul.mubr.bf16.gmra.mrb[0].mxu0 %v2992
        %v3139 = vpop.f32.mrb[0].mxu0
        %v3140 = vadd.f32 %v2949, %v3139
        %v3141 = vpop.f32.mrb[0].mxu0
        %v3142 = vpop.f32.mrb[0].mxu0
        %v3143 = vadd.f32 %v2949, %v3142
        %v3144 = vpop.f32.mrb[0].mxu0
        %3145 = vmatprep.mubr.bf16.mxu0 0
        %3146 = vmatmul.mubr.bf16.gmra.mrb[0].mxu0 %v2994
        %v3147 = vpop.f32.mrb[0].mxu0
        %v3148 = vadd.f32 %v2949, %v3147
        %v3149 = vpop.f32.mrb[0].mxu0
        %v3150 = vpop.f32.mrb[0].mxu0
        %v3151 = vadd.f32 %v2949, %v3150
        %v3152 = vpop.f32.mrb[0].mxu0
        %3153 = vmatprep.mubr.bf16.mxu0 0
        %3154 = vmatmul.mubr.bf16.gmra.mrb[0].mxu0 %v2996
        %v3155 = vpop.f32.mrb[0].mxu0
        %v3156 = vadd.f32 %v2949, %v3155
        %v3157 = vpop.f32.mrb[0].mxu0
        %v3158 = vpop.f32.mrb[0].mxu0
        %v3159 = vadd.f32 %v2949, %v3158
        %v3160 = vpop.f32.mrb[0].mxu0
        %3161 = vdwg.mxu0
        %v3162 = vpack.c.bf16 %v368, %v367
        %v3163 = vpack.c.bf16 %v370, %v369
        %v3164 = vpack.c.bf16 %v372, %v371
        %v3165 = vpack.c.bf16 %v374, %v373
        %v3166 = vpack.c.bf16 %v376, %v375
        %v3167 = vpack.c.bf16 %v378, %v377
        %v3168 = vpack.c.bf16 %v380, %v379
        %v3169 = vpack.c.bf16 %v382, %v381
        %v3170 = vpack.c.bf16 %v384, %v383
        %v3171 = vpack.c.bf16 %v386, %v385
        %v3172 = vpack.c.bf16 %v388, %v387
        %v3173 = vpack.c.bf16 %v390, %v389
        %v3174 = vpack.c.bf16 %v392, %v391
        %v3175 = vpack.c.bf16 %v394, %v393
        %v3176 = vpack.c.bf16 %v396, %v395
        %v3177 = vpack.c.bf16 %v398, %v397
        %v3178 = vld [vmem:[%s5] sm:$0x3]
        %v3179 = vld [vmem:[%s6] sm:$0x1]
        %v3181 = vlaneseq
        %v3182 = vshrl.u32 %v3181, 7
        %v3183 = vsub.s32 0, %v3182
        %v3184 = vrot.slane %v3179, %v3183
        %v3187 = vsel %vm278, %v3162, 0
        %v3190 = vsel %vm278, %v3163, 0
        %v3193 = vsel %vm278, %v3164, 0
        %v3196 = vsel %vm278, %v3165, 0
        %v3199 = vsel %vm278, %v3166, 0
        %v3202 = vsel %vm278, %v3167, 0
        %v3205 = vsel %vm278, %v3168, 0
        %v3208 = vsel %vm278, %v3169, 0
        %v3211 = vsel %vm278, %v3170, 0
        %v3214 = vsel %vm278, %v3171, 0
        %v3217 = vsel %vm278, %v3172, 0
        %v3220 = vsel %vm278, %v3173, 0
        %v3223 = vsel %vm278, %v3174, 0
        %v3226 = vsel %vm278, %v3175, 0
        %v3229 = vsel %vm278, %v3176, 0
        %v3232 = vsel %vm278, %v3177, 0
        %v3235 = vsel %vm1620, %v3178, 0
        %3237 = vmatprep.subr.bf16.mxu0 0
        %3238 = vmatpush1.bf16.msra.mxu0 %v3235
        %3239 = vmatprep.subr.bf16.mxu0 0
        %3240 = vmatpush1.bf16.msra.mxu0 0
        %3241 = vmatprep.subr.bf16.mxu0 0
        %3242 = vmatpush1.bf16.msra.mxu0 0
        %3243 = vmatprep.subr.bf16.mxu0 0
        %3244 = vmatpush1.bf16.msra.mxu0 0
        %3245 = vmatprep.subr.bf16.mxu0 0
        %3246 = vmatpush1.bf16.msra.mxu0 0
        %3247 = vmatprep.subr.bf16.mxu0 0
        %3248 = vmatpush1.bf16.msra.mxu0 0
        %3249 = vmatprep.subr.bf16.mxu0 0
        %3250 = vmatpush1.bf16.msra.mxu0 0
        %3251 = vmatprep.subr.bf16.mxu0 0
        %3252 = vmatpush1.bf16.msra.mxu0 0
        %3253 = vmatprep.subr.bf16.mxu0 0
        %3254 = vmatpush1.bf16.msra.mxu0 0
        %3255 = vmatprep.subr.bf16.mxu0 0
        %3256 = vmatpush1.bf16.msra.mxu0 0
        %3257 = vmatprep.subr.bf16.mxu0 0
        %3258 = vmatpush1.bf16.msra.mxu0 0
        %3259 = vmatprep.subr.bf16.mxu0 0
        %3260 = vmatpush1.bf16.msra.mxu0 0
        %3261 = vmatprep.subr.bf16.mxu0 0
        %3262 = vmatpush1.bf16.msra.mxu0 0
        %3263 = vmatprep.subr.bf16.mxu0 0
        %3264 = vmatpush1.bf16.msra.mxu0 0
        %3265 = vmatprep.subr.bf16.mxu0 0
        %3266 = vmatpush1.bf16.msra.mxu0 0
        %3267 = vmatprep.subr.bf16.mxu0 0
        %3268 = vmatpush1.bf16.msra.mxu0 0
        %3269 = vmatprep.mubr.bf16.mxu0 0
        %3270 = vmatmul.mubr.bf16.gmra.mrb[0].mxu0 %v3187
        %v3271 = vpop.f32.mrb[0].mxu0
        %v3272 = vadd.f32 %v3184, %v3271
        %v3273 = vpop.f32.mrb[0].mxu0
        %v3274 = vpop.f32.mrb[0].mxu0
        %v3275 = vadd.f32 %v3184, %v3274
        %v3276 = vpop.f32.mrb[0].mxu0
        %3277 = vmatprep.mubr.bf16.mxu0 0
        %3278 = vmatmul.mubr.bf16.gmra.mrb[0].mxu0 %v3190
        %v3279 = vpop.f32.mrb[0].mxu0
        %v3280 = vadd.f32 %v3184, %v3279
        %v3281 = vpop.f32.mrb[0].mxu0
        %v3282 = vpop.f32.mrb[0].mxu0
        %v3283 = vadd.f32 %v3184, %v3282
        %v3284 = vpop.f32.mrb[0].mxu0
        %3285 = vmatprep.mubr.bf16.mxu0 0
        %3286 = vmatmul.mubr.bf16.gmra.mrb[0].mxu0 %v3193
        %v3287 = vpop.f32.mrb[0].mxu0
        %v3288 = vadd.f32 %v3184, %v3287
        %v3289 = vpop.f32.mrb[0].mxu0
        %v3290 = vpop.f32.mrb[0].mxu0
        %v3291 = vadd.f32 %v3184, %v3290
        %v3292 = vpop.f32.mrb[0].mxu0
        %3293 = vmatprep.mubr.bf16.mxu0 0
        %3294 = vmatmul.mubr.bf16.gmra.mrb[0].mxu0 %v3196
        %v3295 = vpop.f32.mrb[0].mxu0
        %v3296 = vadd.f32 %v3184, %v3295
        %v3297 = vpop.f32.mrb[0].mxu0
        %v3298 = vpop.f32.mrb[0].mxu0
        %v3299 = vadd.f32 %v3184, %v3298
        %v3300 = vpop.f32.mrb[0].mxu0
        %3301 = vmatprep.mubr.bf16.mxu0 0
        %3302 = vmatmul.mubr.bf16.gmra.mrb[0].mxu0 %v3199
        %v3303 = vpop.f32.mrb[0].mxu0
        %v3304 = vadd.f32 %v3184, %v3303
        %v3305 = vpop.f32.mrb[0].mxu0
        %v3306 = vpop.f32.mrb[0].mxu0
        %v3307 = vadd.f32 %v3184, %v3306
        %v3308 = vpop.f32.mrb[0].mxu0
        %3309 = vmatprep.mubr.bf16.mxu0 0
        %3310 = vmatmul.mubr.bf16.gmra.mrb[0].mxu0 %v3202
        %v3311 = vpop.f32.mrb[0].mxu0
        %v3312 = vadd.f32 %v3184, %v3311
        %v3313 = vpop.f32.mrb[0].mxu0
        %v3314 = vpop.f32.mrb[0].mxu0
        %v3315 = vadd.f32 %v3184, %v3314
        %v3316 = vpop.f32.mrb[0].mxu0
        %3317 = vmatprep.mubr.bf16.mxu0 0
        %3318 = vmatmul.mubr.bf16.gmra.mrb[0].mxu0 %v3205
        %v3319 = vpop.f32.mrb[0].mxu0
        %v3320 = vadd.f32 %v3184, %v3319
        %v3321 = vpop.f32.mrb[0].mxu0
        %v3322 = vpop.f32.mrb[0].mxu0
        %v3323 = vadd.f32 %v3184, %v3322
        %v3324 = vpop.f32.mrb[0].mxu0
        %3325 = vmatprep.mubr.bf16.mxu0 0
        %3326 = vmatmul.mubr.bf16.gmra.mrb[0].mxu0 %v3208
        %v3327 = vpop.f32.mrb[0].mxu0
        %v3328 = vadd.f32 %v3184, %v3327
        %v3329 = vpop.f32.mrb[0].mxu0
        %v3330 = vpop.f32.mrb[0].mxu0
        %v3331 = vadd.f32 %v3184, %v3330
        %v3332 = vpop.f32.mrb[0].mxu0
        %3333 = vmatprep.mubr.bf16.mxu0 0
        %3334 = vmatmul.mubr.bf16.gmra.mrb[0].mxu0 %v3211
        %v3335 = vpop.f32.mrb[0].mxu0
        %v3336 = vadd.f32 %v3184, %v3335
        %v3337 = vpop.f32.mrb[0].mxu0
        %v3338 = vpop.f32.mrb[0].mxu0
        %v3339 = vadd.f32 %v3184, %v3338
        %v3340 = vpop.f32.mrb[0].mxu0
        %3341 = vmatprep.mubr.bf16.mxu0 0
        %3342 = vmatmul.mubr.bf16.gmra.mrb[0].mxu0 %v3214
        %v3343 = vpop.f32.mrb[0].mxu0
        %v3344 = vadd.f32 %v3184, %v3343
        %v3345 = vpop.f32.mrb[0].mxu0
        %v3346 = vpop.f32.mrb[0].mxu0
        %v3347 = vadd.f32 %v3184, %v3346
        %v3348 = vpop.f32.mrb[0].mxu0
        %3349 = vmatprep.mubr.bf16.mxu0 0
        %3350 = vmatmul.mubr.bf16.gmra.mrb[0].mxu0 %v3217
        %v3351 = vpop.f32.mrb[0].mxu0
        %v3352 = vadd.f32 %v3184, %v3351
        %v3353 = vpop.f32.mrb[0].mxu0
        %v3354 = vpop.f32.mrb[0].mxu0
        %v3355 = vadd.f32 %v3184, %v3354
        %v3356 = vpop.f32.mrb[0].mxu0
        %3357 = vmatprep.mubr.bf16.mxu0 0
        %3358 = vmatmul.mubr.bf16.gmra.mrb[0].mxu0 %v3220
        %v3359 = vpop.f32.mrb[0].mxu0
        %v3360 = vadd.f32 %v3184, %v3359
        %v3361 = vpop.f32.mrb[0].mxu0
        %v3362 = vpop.f32.mrb[0].mxu0
        %v3363 = vadd.f32 %v3184, %v3362
        %v3364 = vpop.f32.mrb[0].mxu0
        %3365 = vmatprep.mubr.bf16.mxu0 0
        %3366 = vmatmul.mubr.bf16.gmra.mrb[0].mxu0 %v3223
        %v3367 = vpop.f32.mrb[0].mxu0
        %v3368 = vadd.f32 %v3184, %v3367
        %v3369 = vpop.f32.mrb[0].mxu0
        %v3370 = vpop.f32.mrb[0].mxu0
        %v3371 = vadd.f32 %v3184, %v3370
        %v3372 = vpop.f32.mrb[0].mxu0
        %3373 = vmatprep.mubr.bf16.mxu0 0
        %3374 = vmatmul.mubr.bf16.gmra.mrb[0].mxu0 %v3226
        %v3375 = vpop.f32.mrb[0].mxu0
        %v3376 = vadd.f32 %v3184, %v3375
        %v3377 = vpop.f32.mrb[0].mxu0
        %v3378 = vpop.f32.mrb[0].mxu0
        %v3379 = vadd.f32 %v3184, %v3378
        %v3380 = vpop.f32.mrb[0].mxu0
        %3381 = vmatprep.mubr.bf16.mxu0 0
        %3382 = vmatmul.mubr.bf16.gmra.mrb[0].mxu0 %v3229
        %v3383 = vpop.f32.mrb[0].mxu0
        %v3384 = vadd.f32 %v3184, %v3383
        %v3385 = vpop.f32.mrb[0].mxu0
        %v3386 = vpop.f32.mrb[0].mxu0
        %v3387 = vadd.f32 %v3184, %v3386
        %v3388 = vpop.f32.mrb[0].mxu0
        %3389 = vmatprep.mubr.bf16.mxu0 0
        %3390 = vmatmul.mubr.bf16.gmra.mrb[0].mxu0 %v3232
        %v3391 = vpop.f32.mrb[0].mxu0
        %v3392 = vadd.f32 %v3184, %v3391
        %v3393 = vpop.f32.mrb[0].mxu0
        %v3394 = vpop.f32.mrb[0].mxu0
        %v3395 = vadd.f32 %v3184, %v3394
        %v3396 = vpop.f32.mrb[0].mxu0
        %3397 = vdwg.mxu0
        %v3398 = vadd.f32 %v3036, %v3272
        %v3399 = vadd.f32 %v3039, %v3275
        %v3400 = vadd.f32 %v3044, %v3280
        %v3401 = vadd.f32 %v3047, %v3283
        %v3402 = vadd.f32 %v3052, %v3288
        %v3403 = vadd.f32 %v3055, %v3291
        %v3404 = vadd.f32 %v3060, %v3296
        %v3405 = vadd.f32 %v3063, %v3299
        %v3406 = vadd.f32 %v3068, %v3304
        %v3407 = vadd.f32 %v3071, %v3307
        %v3408 = vadd.f32 %v3076, %v3312
        %v3409 = vadd.f32 %v3079, %v3315
        %v3410 = vadd.f32 %v3084, %v3320
        %v3411 = vadd.f32 %v3087, %v3323
        %v3412 = vadd.f32 %v3092, %v3328
        %v3413 = vadd.f32 %v3095, %v3331
        %v3414 = vadd.f32 %v3100, %v3336
        %v3415 = vadd.f32 %v3103, %v3339
        %v3416 = vadd.f32 %v3108, %v3344
        %v3417 = vadd.f32 %v3111, %v3347
        %v3418 = vadd.f32 %v3116, %v3352
        %v3419 = vadd.f32 %v3119, %v3355
        %v3420 = vadd.f32 %v3124, %v3360
        %v3421 = vadd.f32 %v3127, %v3363
        %v3422 = vadd.f32 %v3132, %v3368
        %v3423 = vadd.f32 %v3135, %v3371
        %v3424 = vadd.f32 %v3140, %v3376
        %v3425 = vadd.f32 %v3143, %v3379
        %v3426 = vadd.f32 %v3148, %v3384
        %v3427 = vadd.f32 %v3151, %v3387
        %v3428 = vadd.f32 %v3156, %v3392
        %v3429 = vadd.f32 %v3159, %v3395
        %v3430 = vadd.f32 %v3398, %v3400
        %v3431 = vadd.f32 %v3399, %v3401
        %v3432 = vadd.f32 %v3402, %v3404
        %v3433 = vadd.f32 %v3403, %v3405
        %v3434 = vadd.f32 %v3406, %v3408
        %v3435 = vadd.f32 %v3407, %v3409
        %v3436 = vadd.f32 %v3410, %v3412
        %v3437 = vadd.f32 %v3411, %v3413
        %v3438 = vadd.f32 %v3414, %v3416
        %v3439 = vadd.f32 %v3415, %v3417
        %v3440 = vadd.f32 %v3418, %v3420
        %v3441 = vadd.f32 %v3419, %v3421
        %v3442 = vadd.f32 %v3422, %v3424
        %v3443 = vadd.f32 %v3423, %v3425
        %v3444 = vadd.f32 %v3426, %v3428
        %v3445 = vadd.f32 %v3427, %v3429
        %3446 = vst.msk [vmem:[#allocation4] sm:$0xff] %vm1329, %v3430
        %3447 = vst.msk [vmem:[#allocation4 + $0x8] sm:$0xff] %vm1329, %v3431
        %3448 = vst.msk [vmem:[#allocation4 + $0x10] sm:$0xff] %vm1329, %v3432
        %3449 = vst.msk [vmem:[#allocation4 + $0x18] sm:$0xff] %vm1329, %v3433
        %3450 = vst.msk [vmem:[#allocation4 + $0x20] sm:$0xff] %vm1329, %v3434
        %3451 = vst.msk [vmem:[#allocation4 + $0x28] sm:$0xff] %vm1329, %v3435
        %3452 = vst.msk [vmem:[#allocation4 + $0x30] sm:$0xff] %vm1329, %v3436
        %3453 = vst.msk [vmem:[#allocation4 + $0x38] sm:$0xff] %vm1329, %v3437
        %3454 = vst.msk [vmem:[#allocation4 + $0x40] sm:$0xff] %vm1329, %v3438
        %3455 = vst.msk [vmem:[#allocation4 + $0x48] sm:$0xff] %vm1329, %v3439
        %3456 = vst.msk [vmem:[#allocation4 + $0x50] sm:$0xff] %vm1329, %v3440
        %3457 = vst.msk [vmem:[#allocation4 + $0x58] sm:$0xff] %vm1329, %v3441
        %3458 = vst.msk [vmem:[#allocation4 + $0x60] sm:$0xff] %vm1329, %v3442
        %3459 = vst.msk [vmem:[#allocation4 + $0x68] sm:$0xff] %vm1329, %v3443
        %3460 = vst.msk [vmem:[#allocation4 + $0x70] sm:$0xff] %vm1329, %v3444
        %3461 = vst.msk [vmem:[#allocation4 + $0x78] sm:$0xff] %vm1329, %v3445
        %v3462 = vld [vmem:[#allocation4] sm:$0x1]
        %v3463 = vld [vmem:[#allocation4 + $0x10] sm:$0x1]
        %v3464 = vld [vmem:[#allocation4 + $0x20] sm:$0x1]
        %v3465 = vld [vmem:[#allocation4 + $0x30] sm:$0x1]
        %v3466 = vld [vmem:[#allocation4 + $0x40] sm:$0x1]
        %v3467 = vld [vmem:[#allocation4 + $0x50] sm:$0x1]
        %v3468 = vld [vmem:[#allocation4 + $0x60] sm:$0x1]
        %v3469 = vld [vmem:[#allocation4 + $0x70] sm:$0x1]
        %v3470 = vld [vmem:[#allocation4 + $0x1] sm:$0x1]
        %v3471 = vld [vmem:[#allocation4 + $0x11] sm:$0x1]
        %v3472 = vld [vmem:[#allocation4 + $0x21] sm:$0x1]
        %v3473 = vld [vmem:[#allocation4 + $0x31] sm:$0x1]
        %v3474 = vld [vmem:[#allocation4 + $0x41] sm:$0x1]
        %v3475 = vld [vmem:[#allocation4 + $0x51] sm:$0x1]
        %v3476 = vld [vmem:[#allocation4 + $0x61] sm:$0x1]
        %v3477 = vld [vmem:[#allocation4 + $0x71] sm:$0x1]
        %v3478 = vadd.f32 %v3462, %v3470
        %v3479 = vadd.f32 %v3463, %v3471
        %v3480 = vadd.f32 %v3464, %v3472
        %v3481 = vadd.f32 %v3465, %v3473
        %v3482 = vadd.f32 %v3466, %v3474
        %v3483 = vadd.f32 %v3467, %v3475
        %v3484 = vadd.f32 %v3468, %v3476
        %v3485 = vadd.f32 %v3469, %v3477
        %v3486 = vld [vmem:[#allocation4 + $0x2] sm:$0x1]
        %v3487 = vld [vmem:[#allocation4 + $0x12] sm:$0x1]
        %v3488 = vld [vmem:[#allocation4 + $0x22] sm:$0x1]
        %v3489 = vld [vmem:[#allocation4 + $0x32] sm:$0x1]
        %v3490 = vld [vmem:[#allocation4 + $0x42] sm:$0x1]
        %v3491 = vld [vmem:[#allocation4 + $0x52] sm:$0x1]
        %v3492 = vld [vmem:[#allocation4 + $0x62] sm:$0x1]
        %v3493 = vld [vmem:[#allocation4 + $0x72] sm:$0x1]
        %v3494 = vld [vmem:[#allocation4 + $0x3] sm:$0x1]
        %v3495 = vld [vmem:[#allocation4 + $0x13] sm:$0x1]
        %v3496 = vld [vmem:[#allocation4 + $0x23] sm:$0x1]
        %v3497 = vld [vmem:[#allocation4 + $0x33] sm:$0x1]
        %v3498 = vld [vmem:[#allocation4 + $0x43] sm:$0x1]
        %v3499 = vld [vmem:[#allocation4 + $0x53] sm:$0x1]
        %v3500 = vld [vmem:[#allocation4 + $0x63] sm:$0x1]
        %v3501 = vld [vmem:[#allocation4 + $0x73] sm:$0x1]
        %v3502 = vadd.f32 %v3486, %v3494
        %v3503 = vadd.f32 %v3487, %v3495
        %v3504 = vadd.f32 %v3488, %v3496
        %v3505 = vadd.f32 %v3489, %v3497
        %v3506 = vadd.f32 %v3490, %v3498
        %v3507 = vadd.f32 %v3491, %v3499
        %v3508 = vadd.f32 %v3492, %v3500
        %v3509 = vadd.f32 %v3493, %v3501
        %v3510 = vld [vmem:[#allocation4 + $0x4] sm:$0x1]
        %v3511 = vld [vmem:[#allocation4 + $0x14] sm:$0x1]
        %v3512 = vld [vmem:[#allocation4 + $0x24] sm:$0x1]
        %v3513 = vld [vmem:[#allocation4 + $0x34] sm:$0x1]
        %v3514 = vld [vmem:[#allocation4 + $0x44] sm:$0x1]
        %v3515 = vld [vmem:[#allocation4 + $0x54] sm:$0x1]
        %v3516 = vld [vmem:[#allocation4 + $0x64] sm:$0x1]
        %v3517 = vld [vmem:[#allocation4 + $0x74] sm:$0x1]
        %v3518 = vld [vmem:[#allocation4 + $0x5] sm:$0x1]
        %v3519 = vld [vmem:[#allocation4 + $0x15] sm:$0x1]
        %v3520 = vld [vmem:[#allocation4 + $0x25] sm:$0x1]
        %v3521 = vld [vmem:[#allocation4 + $0x35] sm:$0x1]
        %v3522 = vld [vmem:[#allocation4 + $0x45] sm:$0x1]
        %v3523 = vld [vmem:[#allocation4 + $0x55] sm:$0x1]
        %v3524 = vld [vmem:[#allocation4 + $0x65] sm:$0x1]
        %v3525 = vld [vmem:[#allocation4 + $0x75] sm:$0x1]
        %v3526 = vadd.f32 %v3510, %v3518
        %v3527 = vadd.f32 %v3511, %v3519
        %v3528 = vadd.f32 %v3512, %v3520
        %v3529 = vadd.f32 %v3513, %v3521
        %v3530 = vadd.f32 %v3514, %v3522
        %v3531 = vadd.f32 %v3515, %v3523
        %v3532 = vadd.f32 %v3516, %v3524
        %v3533 = vadd.f32 %v3517, %v3525
        %v3534 = vld [vmem:[#allocation4 + $0x6] sm:$0x1]
        %v3535 = vld [vmem:[#allocation4 + $0x16] sm:$0x1]
        %v3536 = vld [vmem:[#allocation4 + $0x26] sm:$0x1]
        %v3537 = vld [vmem:[#allocation4 + $0x36] sm:$0x1]
        %v3538 = vld [vmem:[#allocation4 + $0x46] sm:$0x1]
        %v3539 = vld [vmem:[#allocation4 + $0x56] sm:$0x1]
        %v3540 = vld [vmem:[#allocation4 + $0x66] sm:$0x1]
        %v3541 = vld [vmem:[#allocation4 + $0x76] sm:$0x1]
        %v3542 = vld [vmem:[#allocation4 + $0x7] sm:$0x1]
        %v3543 = vld [vmem:[#allocation4 + $0x17] sm:$0x1]
        %v3544 = vld [vmem:[#allocation4 + $0x27] sm:$0x1]
        %v3545 = vld [vmem:[#allocation4 + $0x37] sm:$0x1]
        %v3546 = vld [vmem:[#allocation4 + $0x47] sm:$0x1]
        %v3547 = vld [vmem:[#allocation4 + $0x57] sm:$0x1]
        %v3548 = vld [vmem:[#allocation4 + $0x67] sm:$0x1]
        %v3549 = vld [vmem:[#allocation4 + $0x77] sm:$0x1]
        %v3550 = vadd.f32 %v3534, %v3542
        %v3551 = vadd.f32 %v3535, %v3543
        %v3552 = vadd.f32 %v3536, %v3544
        %v3553 = vadd.f32 %v3537, %v3545
        %v3554 = vadd.f32 %v3538, %v3546
        %v3555 = vadd.f32 %v3539, %v3547
        %v3556 = vadd.f32 %v3540, %v3548
        %v3557 = vadd.f32 %v3541, %v3549
        %v3558 = vld [vmem:[#allocation4 + $0x8] sm:$0x1]
        %v3559 = vld [vmem:[#allocation4 + $0x18] sm:$0x1]
        %v3560 = vld [vmem:[#allocation4 + $0x28] sm:$0x1]
        %v3561 = vld [vmem:[#allocation4 + $0x38] sm:$0x1]
        %v3562 = vld [vmem:[#allocation4 + $0x48] sm:$0x1]
        %v3563 = vld [vmem:[#allocation4 + $0x58] sm:$0x1]
        %v3564 = vld [vmem:[#allocation4 + $0x68] sm:$0x1]
        %v3565 = vld [vmem:[#allocation4 + $0x78] sm:$0x1]
        %v3566 = vld [vmem:[#allocation4 + $0x9] sm:$0x1]
        %v3567 = vld [vmem:[#allocation4 + $0x19] sm:$0x1]
        %v3568 = vld [vmem:[#allocation4 + $0x29] sm:$0x1]
        %v3569 = vld [vmem:[#allocation4 + $0x39] sm:$0x1]
        %v3570 = vld [vmem:[#allocation4 + $0x49] sm:$0x1]
        %v3571 = vld [vmem:[#allocation4 + $0x59] sm:$0x1]
        %v3572 = vld [vmem:[#allocation4 + $0x69] sm:$0x1]
        %v3573 = vld [vmem:[#allocation4 + $0x79] sm:$0x1]
        %v3574 = vadd.f32 %v3558, %v3566
        %v3575 = vadd.f32 %v3559, %v3567
        %v3576 = vadd.f32 %v3560, %v3568
        %v3577 = vadd.f32 %v3561, %v3569
        %v3578 = vadd.f32 %v3562, %v3570
        %v3579 = vadd.f32 %v3563, %v3571
        %v3580 = vadd.f32 %v3564, %v3572
        %v3581 = vadd.f32 %v3565, %v3573
        %v3582 = vld [vmem:[#allocation4 + $0xa] sm:$0x1]
        %v3583 = vld [vmem:[#allocation4 + $0x1a] sm:$0x1]
        %v3584 = vld [vmem:[#allocation4 + $0x2a] sm:$0x1]
        %v3585 = vld [vmem:[#allocation4 + $0x3a] sm:$0x1]
        %v3586 = vld [vmem:[#allocation4 + $0x4a] sm:$0x1]
        %v3587 = vld [vmem:[#allocation4 + $0x5a] sm:$0x1]
        %v3588 = vld [vmem:[#allocation4 + $0x6a] sm:$0x1]
        %v3589 = vld [vmem:[#allocation4 + $0x7a] sm:$0x1]
        %v3590 = vld [vmem:[#allocation4 + $0xb] sm:$0x1]
        %v3591 = vld [vmem:[#allocation4 + $0x1b] sm:$0x1]
        %v3592 = vld [vmem:[#allocation4 + $0x2b] sm:$0x1]
        %v3593 = vld [vmem:[#allocation4 + $0x3b] sm:$0x1]
        %v3594 = vld [vmem:[#allocation4 + $0x4b] sm:$0x1]
        %v3595 = vld [vmem:[#allocation4 + $0x5b] sm:$0x1]
        %v3596 = vld [vmem:[#allocation4 + $0x6b] sm:$0x1]
        %v3597 = vld [vmem:[#allocation4 + $0x7b] sm:$0x1]
        %v3598 = vadd.f32 %v3582, %v3590
        %v3599 = vadd.f32 %v3583, %v3591
        %v3600 = vadd.f32 %v3584, %v3592
        %v3601 = vadd.f32 %v3585, %v3593
        %v3602 = vadd.f32 %v3586, %v3594
        %v3603 = vadd.f32 %v3587, %v3595
        %v3604 = vadd.f32 %v3588, %v3596
        %v3605 = vadd.f32 %v3589, %v3597
        %v3606 = vld [vmem:[#allocation4 + $0xc] sm:$0x1]
        %v3607 = vld [vmem:[#allocation4 + $0x1c] sm:$0x1]
        %v3608 = vld [vmem:[#allocation4 + $0x2c] sm:$0x1]
        %v3609 = vld [vmem:[#allocation4 + $0x3c] sm:$0x1]
        %v3610 = vld [vmem:[#allocation4 + $0x4c] sm:$0x1]
        %v3611 = vld [vmem:[#allocation4 + $0x5c] sm:$0x1]
        %v3612 = vld [vmem:[#allocation4 + $0x6c] sm:$0x1]
        %v3613 = vld [vmem:[#allocation4 + $0x7c] sm:$0x1]
        %v3614 = vld [vmem:[#allocation4 + $0xd] sm:$0x1]
        %v3615 = vld [vmem:[#allocation4 + $0x1d] sm:$0x1]
        %v3616 = vld [vmem:[#allocation4 + $0x2d] sm:$0x1]
        %v3617 = vld [vmem:[#allocation4 + $0x3d] sm:$0x1]
        %v3618 = vld [vmem:[#allocation4 + $0x4d] sm:$0x1]
        %v3619 = vld [vmem:[#allocation4 + $0x5d] sm:$0x1]
        %v3620 = vld [vmem:[#allocation4 + $0x6d] sm:$0x1]
        %v3621 = vld [vmem:[#allocation4 + $0x7d] sm:$0x1]
        %v3622 = vadd.f32 %v3606, %v3614
        %v3623 = vadd.f32 %v3607, %v3615
        %v3624 = vadd.f32 %v3608, %v3616
        %v3625 = vadd.f32 %v3609, %v3617
        %v3626 = vadd.f32 %v3610, %v3618
        %v3627 = vadd.f32 %v3611, %v3619
        %v3628 = vadd.f32 %v3612, %v3620
        %v3629 = vadd.f32 %v3613, %v3621
        %v3630 = vld [vmem:[#allocation4 + $0xe] sm:$0x1]
        %v3631 = vld [vmem:[#allocation4 + $0x1e] sm:$0x1]
        %v3632 = vld [vmem:[#allocation4 + $0x2e] sm:$0x1]
        %v3633 = vld [vmem:[#allocation4 + $0x3e] sm:$0x1]
        %v3634 = vld [vmem:[#allocation4 + $0x4e] sm:$0x1]
        %v3635 = vld [vmem:[#allocation4 + $0x5e] sm:$0x1]
        %v3636 = vld [vmem:[#allocation4 + $0x6e] sm:$0x1]
        %v3637 = vld [vmem:[#allocation4 + $0x7e] sm:$0x1]
        %v3638 = vld [vmem:[#allocation4 + $0xf] sm:$0x1]
        %v3639 = vld [vmem:[#allocation4 + $0x1f] sm:$0x1]
        %v3640 = vld [vmem:[#allocation4 + $0x2f] sm:$0x1]
        %v3641 = vld [vmem:[#allocation4 + $0x3f] sm:$0x1]
        %v3642 = vld [vmem:[#allocation4 + $0x4f] sm:$0x1]
        %v3643 = vld [vmem:[#allocation4 + $0x5f] sm:$0x1]
        %v3644 = vld [vmem:[#allocation4 + $0x6f] sm:$0x1]
        %v3645 = vld [vmem:[#allocation4 + $0x7f] sm:$0x1]
        %v3646 = vadd.f32 %v3630, %v3638
        %v3647 = vadd.f32 %v3631, %v3639
        %v3648 = vadd.f32 %v3632, %v3640
        %v3649 = vadd.f32 %v3633, %v3641
        %v3650 = vadd.f32 %v3634, %v3642
        %v3651 = vadd.f32 %v3635, %v3643
        %v3652 = vadd.f32 %v3636, %v3644
        %v3653 = vadd.f32 %v3637, %v3645
        %v3662 = vrot.slane %v3479, 7
        %vm3663 = vcmask 1041409
        %v3664 = vsel %vm3663, %v3662, %v3478
        %v3665 = vrot.slane %v3480, 6
        %vm3666 = vcmask 1042434
        %v3667 = vsel %vm3666, %v3665, %v3664
        %v3668 = vrot.slane %v3481, 5
        %vm3669 = vcmask 1043459
        %v3670 = vsel %vm3669, %v3668, %v3667
        %v3671 = vrot.slane %v3482, 4
        %vm3672 = vcmask 1044484
        %v3673 = vsel %vm3672, %v3671, %v3670
        %v3674 = vrot.slane %v3483, 3
        %vm3675 = vcmask 1045509
        %v3676 = vsel %vm3675, %v3674, %v3673
        %v3677 = vrot.slane %v3484, 2
        %vm3678 = vcmask 1046534
        %v3679 = vsel %vm3678, %v3677, %v3676
        %v3680 = vrot.slane %v3485, 1
        %vm3681 = vcmask 1047559
        %v3682 = vsel %vm3681, %v3680, %v3679
        %v3692 = vrot.slane %v3503, 7
        %v3693 = vsel %vm3663, %v3692, %v3502
        %v3694 = vrot.slane %v3504, 6
        %v3695 = vsel %vm3666, %v3694, %v3693
        %v3696 = vrot.slane %v3505, 5
        %v3697 = vsel %vm3669, %v3696, %v3695
        %v3698 = vrot.slane %v3506, 4
        %v3699 = vsel %vm3672, %v3698, %v3697
        %v3700 = vrot.slane %v3507, 3
        %v3701 = vsel %vm3675, %v3700, %v3699
        %v3702 = vrot.slane %v3508, 2
        %v3703 = vsel %vm3678, %v3702, %v3701
        %v3704 = vrot.slane %v3509, 1
        %v3705 = vsel %vm3681, %v3704, %v3703
        %3706 = vrot.lane.b32.xlu0 %v3705, 8
        %v3707 = vpop.permute.xlu0 %3706
        %v3717 = vrot.slane %v3527, 7
        %v3718 = vsel %vm3663, %v3717, %v3526
        %v3719 = vrot.slane %v3528, 6
        %v3720 = vsel %vm3666, %v3719, %v3718
        %v3721 = vrot.slane %v3529, 5
        %v3722 = vsel %vm3669, %v3721, %v3720
        %v3723 = vrot.slane %v3530, 4
        %v3724 = vsel %vm3672, %v3723, %v3722
        %v3725 = vrot.slane %v3531, 3
        %v3726 = vsel %vm3675, %v3725, %v3724
        %v3727 = vrot.slane %v3532, 2
        %v3728 = vsel %vm3678, %v3727, %v3726
        %v3729 = vrot.slane %v3533, 1
        %v3730 = vsel %vm3681, %v3729, %v3728
        %3731 = vrot.lane.b32.xlu0 %v3730, 16
        %v3732 = vpop.permute.xlu0 %3731
        %v3742 = vrot.slane %v3551, 7
        %v3743 = vsel %vm3663, %v3742, %v3550
        %v3744 = vrot.slane %v3552, 6
        %v3745 = vsel %vm3666, %v3744, %v3743
        %v3746 = vrot.slane %v3553, 5
        %v3747 = vsel %vm3669, %v3746, %v3745
        %v3748 = vrot.slane %v3554, 4
        %v3749 = vsel %vm3672, %v3748, %v3747
        %v3750 = vrot.slane %v3555, 3
        %v3751 = vsel %vm3675, %v3750, %v3749
        %v3752 = vrot.slane %v3556, 2
        %v3753 = vsel %vm3678, %v3752, %v3751
        %v3754 = vrot.slane %v3557, 1
        %v3755 = vsel %vm3681, %v3754, %v3753
        %3756 = vrot.lane.b32.xlu0 %v3755, 24
        %v3757 = vpop.permute.xlu0 %3756
        %v3767 = vrot.slane %v3575, 7
        %v3768 = vsel %vm3663, %v3767, %v3574
        %v3769 = vrot.slane %v3576, 6
        %v3770 = vsel %vm3666, %v3769, %v3768
        %v3771 = vrot.slane %v3577, 5
        %v3772 = vsel %vm3669, %v3771, %v3770
        %v3773 = vrot.slane %v3578, 4
        %v3774 = vsel %vm3672, %v3773, %v3772
        %v3775 = vrot.slane %v3579, 3
        %v3776 = vsel %vm3675, %v3775, %v3774
        %v3777 = vrot.slane %v3580, 2
        %v3778 = vsel %vm3678, %v3777, %v3776
        %v3779 = vrot.slane %v3581, 1
        %v3780 = vsel %vm3681, %v3779, %v3778
        %3781 = vrot.lane.b32.xlu0 %v3780, 32
        %v3782 = vpop.permute.xlu0 %3781
        %v3792 = vrot.slane %v3599, 7
        %v3793 = vsel %vm3663, %v3792, %v3598
        %v3794 = vrot.slane %v3600, 6
        %v3795 = vsel %vm3666, %v3794, %v3793
        %v3796 = vrot.slane %v3601, 5
        %v3797 = vsel %vm3669, %v3796, %v3795
        %v3798 = vrot.slane %v3602, 4
        %v3799 = vsel %vm3672, %v3798, %v3797
        %v3800 = vrot.slane %v3603, 3
        %v3801 = vsel %vm3675, %v3800, %v3799
        %v3802 = vrot.slane %v3604, 2
        %v3803 = vsel %vm3678, %v3802, %v3801
        %v3804 = vrot.slane %v3605, 1
        %v3805 = vsel %vm3681, %v3804, %v3803
        %3806 = vrot.lane.b32.xlu0 %v3805, 40
        %v3807 = vpop.permute.xlu0 %3806
        %v3817 = vrot.slane %v3623, 7
        %v3818 = vsel %vm3663, %v3817, %v3622
        %v3819 = vrot.slane %v3624, 6
        %v3820 = vsel %vm3666, %v3819, %v3818
        %v3821 = vrot.slane %v3625, 5
        %v3822 = vsel %vm3669, %v3821, %v3820
        %v3823 = vrot.slane %v3626, 4
        %v3824 = vsel %vm3672, %v3823, %v3822
        %v3825 = vrot.slane %v3627, 3
        %v3826 = vsel %vm3675, %v3825, %v3824
        %v3827 = vrot.slane %v3628, 2
        %v3828 = vsel %vm3678, %v3827, %v3826
        %v3829 = vrot.slane %v3629, 1
        %v3830 = vsel %vm3681, %v3829, %v3828
        %3831 = vrot.lane.b32.xlu0 %v3830, 48
        %v3832 = vpop.permute.xlu0 %3831
        %v3842 = vrot.slane %v3647, 7
        %v3843 = vsel %vm3663, %v3842, %v3646
        %v3844 = vrot.slane %v3648, 6
        %v3845 = vsel %vm3666, %v3844, %v3843
        %v3846 = vrot.slane %v3649, 5
        %v3847 = vsel %vm3669, %v3846, %v3845
        %v3848 = vrot.slane %v3650, 4
        %v3849 = vsel %vm3672, %v3848, %v3847
        %v3850 = vrot.slane %v3651, 3
        %v3851 = vsel %vm3675, %v3850, %v3849
        %v3852 = vrot.slane %v3652, 2
        %v3853 = vsel %vm3678, %v3852, %v3851
        %v3854 = vrot.slane %v3653, 1
        %v3855 = vsel %vm3681, %v3854, %v3853
        %3856 = vrot.lane.b32.xlu0 %v3855, 56
        %v3857 = vpop.permute.xlu0 %3856
        %v3859 = vsel %vm1329, %v3682, %v3707
        %v3860 = vsel %vm1395, %v3859, %v3732
        %v3861 = vsel %vm1461, %v3860, %v3757
        %v3862 = vsel %vm1527, %v3861, %v3782
        %vm3863 = vcmask 326656
        %v3864 = vsel %vm3863, %v3862, %v3807
        %vm3865 = vcmask 392192
        %v3866 = vsel %vm3865, %v3864, %v3832
        %vm3867 = vcmask 457728
        %v3868 = vsel %vm3867, %v3866, %v3857
        %vm3869 = vcmask 523264
        %3870 = vst.msk [vmem:[%s271] sm:$0xff] %vm3869, %v3868
        %s3871 = sand.u32 %s181, 1
        %s3872 = scalar_lea.sflag [#allocation6], %s3871
        %s3873 = sand.u32 %s181, 1
        %s3874 = smul.addr %s3873, 8
        %s3875 = scalar_lea.vmem [#allocation5], %s3874
        // Predicated region
        $region49: #{tpu_custom_call.1} parent=47 // pred_check
          %p3876 = pneg %p191
        $region50: #{tpu_custom_call.1} parent=47 // pred_check_branch
          %3878 = sbr.rel (%p3876) target = $region52
        $region51: #{tpu_custom_call.1} parent=47 // pred_region
          %s3880 = ssub.s32 128, 128
          %3881 = vsyncadd %s3872, %s3880
          %s3882 = smul.addr %s21, 128
          %s3883 = scalar_lea.hbm %s7, %s3882
          %s3885 = sshll.u32 %s3875, 4
          %s3886 = int_to_ptr.vmem [resolvable:$true] %s3885
          %3888 = dma.vmem_to_hbm [thread:$0]  %s3886, 128, %s3883, %s3872
        $region52: #{tpu_custom_call.1} parent=47 // pred_fallthru
          _
      $region48: #{tpu_custom_call.1} parent=5 // pred_fallthru
        _
      %p3889 = scmp.le.s32.totalorder 2, %s16
      // Predicated region
      $region53: #{tpu_custom_call.1} parent=5 // pred_check
        %p3890 = pneg %p3889
      $region54: #{tpu_custom_call.1} parent=5 // pred_check_branch
        %3892 = sbr.rel (%p3890) target = $region56
      $region55: #{tpu_custom_call.1} parent=5 // pred_region
        %s3893 = ssub.s32 %s16, 2
        // Predicated region
        $region57: #{tpu_custom_call.1} parent=55 // pred_check
          %p3894 = pneg %p197
        $region58: #{tpu_custom_call.1} parent=55 // pred_check_branch
          %3896 = sbr.rel (%p3894) target = $region60
        $region59: #{tpu_custom_call.1} parent=55 // pred_region
          %s3897 = sand.u32 %s182, 1
          %s3898 = scalar_lea.sflag [#allocation6], %s3897
          %s3899 = sand.u32 %s182, 1
          %s3900 = smul.addr %s3899, 8
          %s3901 = scalar_lea.vmem [#allocation5], %s3900
          %3902 = dma.done %s3898, 128
        $region60: #{tpu_custom_call.1} parent=55 // pred_fallthru
          _
      $region56: #{tpu_custom_call.1} parent=5 // pred_fallthru
        _
    $region6: #{tpu_custom_call.1} parent=1 // loop_footer
      %s20 = sadd.s32 1, %s16
    $region7: #{tpu_custom_call.1} parent=1 // loop_footer_branch
      %15 = sbr.rel target = $region3
    $region8: #{tpu_custom_call.1} parent=1 // loop_exit
      _
    %3903 = vsyncpa [#allocation6], 1
    %s3904 = scalar_lea.sflag [#allocation6], 1
    %3905 = vsyncpa %s3904, 1

</llo_original>
